<compile_context>
chip_gen: v7x
topology: tpu7x:2x2x1
jax: 0.10.0
libtpu: 0.0.40
codegen_flags: <defaults>
</compile_context>

<pallas_src>
import jax
import jax.numpy as jnp
from jax import lax
from jax.experimental import pallas as pl
from jax.experimental.pallas import tpu as pltpu

INPUT_SIZE = 28
HIDDEN = 64
NUM_CLASSES = 10

G_COLS = 4 * HIDDEN            # 256 gate columns (i | f | g | o), 2 f32 vregs wide
B_PAD = 8                      # batch padded to one sublane group
OUT_PAD = 128                  # lane-dense output width for the final Linear


def lstm_last_linear_kernel(x_ref, w_ih_ref, w_hh_ref, b_ref,
                            w_out_ref, b_out_ref, out_ref, gx_scr):
    """Single-layer LSTM over T steps + Linear on the last hidden state.

    x_ref     : (T*B_PAD, INPUT_SIZE)  bf16, time-major rows, batch padded to 8
    w_ih_ref  : (INPUT_SIZE, G_COLS)   bf16 input weights (PyTorch i|f|g|o order)
    w_hh_ref  : (HIDDEN, G_COLS)       bf16 recurrent weights
    b_ref     : (1, G_COLS)            f32, b_ih + b_hh
    w_out_ref : (HIDDEN, OUT_PAD)      f32, cols >= NUM_CLASSES are zero
    b_out_ref : (1, OUT_PAD)           f32
    out_ref   : (B_PAD, OUT_PAD)       f32
    gx_scr    : (T*B_PAD, G_COLS)      f32, precomputed x @ W_ih + b
    """
    T = x_ref.shape[0] // B_PAD

    # --- Hoisted input projection: one big bf16 matmul off the serial path. ---
    gx_scr[...] = (jnp.dot(x_ref[...], w_ih_ref[...],
                           preferred_element_type=jnp.float32)
                   + b_ref[...])

    # Recurrent weights loaded once (bf16, 256 cols -> 8 vregs; safe to keep
    # live across the fully unrolled loop without spilling).
    w_hh = w_hh_ref[...]

    h0 = jnp.zeros((B_PAD, HIDDEN), jnp.float32)
    c0 = jnp.zeros((B_PAD, HIDDEN), jnp.float32)

    def step(t, carry):
        h, c = carry
        row = pl.multiple_of(t * B_PAD, B_PAD)        # sublane-aligned start
        gx_t = gx_scr[pl.ds(row, B_PAD), :]           # (B_PAD, G_COLS) f32
        # bf16 MXU operands, f32 accumulation; gate math stays f32.
        gates = gx_t + jnp.dot(h.astype(jnp.bfloat16), w_hh,
                               preferred_element_type=jnp.float32)
        # Gate slices at 64-lane offsets (cheap XLU lane selects; slot is idle).
        i_g = jax.nn.sigmoid(gates[:, 0 * HIDDEN:1 * HIDDEN])
        f_g = jax.nn.sigmoid(gates[:, 1 * HIDDEN:2 * HIDDEN])
        g_g = jnp.tanh(gates[:, 2 * HIDDEN:3 * HIDDEN])
        o_g = jax.nn.sigmoid(gates[:, 3 * HIDDEN:4 * HIDDEN])
        c_new = f_g * c + i_g * g_g
        h_new = o_g * jnp.tanh(c_new)
        return (h_new, c_new)

    # T=28 is static and the body is tiny: fully unroll for LLO visibility.
    h_last, _ = lax.fori_loop(0, T, step, (h0, c0), unroll=True)

    # Final Linear(64 -> 10), lane-dense 128-wide output (cols >= 10 are zero).
    out_ref[...] = (jnp.dot(h_last, w_out_ref[...],
                            preferred_element_type=jnp.float32)
                    + b_out_ref[...])


def rnn_forward(x, params):
    """x: (B, T, INPUT_SIZE) batch-first float32, like PyTorch batch_first=True."""
    B, T, I = x.shape
    assert I == INPUT_SIZE and B <= B_PAD

    # Time-major, batch padded to 8 sublanes, flattened for the single matmul.
    x_tm = jnp.transpose(x, (1, 0, 2))                      # (T, B, I)
    x_tm = jnp.pad(x_tm, ((0, 0), (0, B_PAD - B), (0, 0)))  # (T, B_PAD, I)
    x2d = x_tm.reshape(T * B_PAD, INPUT_SIZE).astype(jnp.bfloat16)

    # PyTorch stores weights as (4H, K) with gate order i|f|g|o -> transpose.
    w_ih = params["w_ih"].T.astype(jnp.bfloat16)            # (I, 256)
    w_hh = params["w_hh"].T.astype(jnp.bfloat16)            # (H, 256)
    b = (params["b_ih"] + params["b_hh"]).reshape(1, G_COLS).astype(jnp.float32)

    # Lane-dense final Linear: pad N from 10 to 128.
    w_out = jnp.zeros((HIDDEN, OUT_PAD), jnp.float32)
    w_out = w_out.at[:, :NUM_CLASSES].set(params["w_out"].T)
    b_out = jnp.zeros((1, OUT_PAD), jnp.float32)
    b_out = b_out.at[0, :NUM_CLASSES].set(params["b_out"])

    cost = pl.CostEstimate(
        flops=(2 * (T * B_PAD) * INPUT_SIZE * G_COLS          # input projection
               + T * 2 * B_PAD * HIDDEN * G_COLS              # recurrence
               + 2 * B_PAD * HIDDEN * OUT_PAD),               # final Linear
        transcendentals=T * 5 * B_PAD * HIDDEN,               # 4 gates + tanh(c)
        bytes_accessed=(x2d.size * 2 + w_ih.size * 2 + w_hh.size * 2
                        + b.size * 4 + w_out.size * 4 + b_out.size * 4
                        + B_PAD * OUT_PAD * 4),
    )

    out = pl.pallas_call(
        lstm_last_linear_kernel,
        out_shape=jax.ShapeDtypeStruct((B_PAD, OUT_PAD), jnp.float32),
        in_specs=[pl.BlockSpec(memory_space=pltpu.MemorySpace.VMEM)] * 6,
        out_specs=pl.BlockSpec(memory_space=pltpu.MemorySpace.VMEM),
        scratch_shapes=[pltpu.VMEM((T * B_PAD, G_COLS), jnp.float32)],
        cost_estimate=cost,
    )(x2d, w_ih, w_hh, b, w_out, b_out)
    return out[:B, :NUM_CLASSES]


def init_params(key):
    """Deterministic init mimicking PyTorch's U(-1/sqrt(H), 1/sqrt(H))."""
    ks = jax.random.split(key, 6)
    bound = 1.0 / jnp.sqrt(jnp.float32(HIDDEN))
    u = lambda k, shape: jax.random.uniform(k, shape, jnp.float32, -bound, bound)
    return {
        "w_ih": u(ks[0], (4 * HIDDEN, INPUT_SIZE)),
        "w_hh": u(ks[1], (4 * HIDDEN, HIDDEN)),
        "b_ih": u(ks[2], (4 * HIDDEN,)),
        "b_hh": u(ks[3], (4 * HIDDEN,)),
        "w_out": u(ks[4], (NUM_CLASSES, HIDDEN)),
        "b_out": u(ks[5], (NUM_CLASSES,)),
    }


def rnn_forward_reference(x, params):
    """Pure-JAX f32 reference (lax.scan, HIGHEST precision) of the same semantics."""
    B = x.shape[0]
    w_ih_t = params["w_ih"].T
    w_hh_t = params["w_hh"].T
    b = params["b_ih"] + params["b_hh"]
    hi = lax.Precision.HIGHEST

    def step(carry, x_t):
        h, c = carry
        gates = (jnp.dot(x_t, w_ih_t, precision=hi)
                 + jnp.dot(h, w_hh_t, precision=hi) + b)
        i_g = jax.nn.sigmoid(gates[:, 0 * HIDDEN:1 * HIDDEN])
        f_g = jax.nn.sigmoid(gates[:, 1 * HIDDEN:2 * HIDDEN])
        g_g = jnp.tanh(gates[:, 2 * HIDDEN:3 * HIDDEN])
        o_g = jax.nn.sigmoid(gates[:, 3 * HIDDEN:4 * HIDDEN])
        c_new = f_g * c + i_g * g_g
        h_new = o_g * jnp.tanh(c_new)
        return (h_new, c_new), None

    h0 = jnp.zeros((B, HIDDEN), jnp.float32)
    c0 = jnp.zeros((B, HIDDEN), jnp.float32)
    (h_last, _), _ = lax.scan(step, (h0, c0), jnp.transpose(x, (1, 0, 2)))
    return jnp.dot(h_last, params["w_out"].T, precision=hi) + params["b_out"]


if __name__ == "__main__":
    key = jax.random.PRNGKey(0)
    k_param, k_x = jax.random.split(key)
    params = init_params(k_param)

    B, T = 2, 28  # MNIST-style row sequence: (batch, time, INPUT_SIZE)
    x = jax.random.normal(k_x, (B, T, INPUT_SIZE), jnp.float32)

    out = rnn_forward(x, params)
    out = jax.block_until_ready(out)

    ref = jax.block_until_ready(rnn_forward_reference(x, params))
    assert out.shape == (B, NUM_CLASSES)
    # Kernel feeds the MXU bf16 operands (f32 accumulation); the reference is
    # full f32 HIGHEST, so the tolerance is set for bf16 matmul rounding.
    assert jnp.allclose(out, ref, atol=2e-2, rtol=2e-2), "mismatch vs JAX reference"

    print("KERNEL_OK")
</pallas_src>

<mosaic_0001>
module attributes {stable_mosaic.version = 11 : i64} {
  func.func @lstm_last_linear_kernel(%arg0: memref<224x28xbf16, #tpu.memory_space<vmem>>, %arg1: memref<28x256xbf16, #tpu.memory_space<vmem>>, %arg2: memref<64x256xbf16, #tpu.memory_space<vmem>>, %arg3: memref<1x256xf32, #tpu.memory_space<vmem>>, %arg4: memref<64x128xf32, #tpu.memory_space<vmem>>, %arg5: memref<1x128xf32, #tpu.memory_space<vmem>>, %arg6: memref<8x128xf32, #tpu.memory_space<vmem>>, %arg7: memref<224x256xf32, #tpu.memory_space<vmem>>) attributes {dimension_semantics = [], scalar_prefetch = 0 : i64, scratch_operands = 1 : i64, tpu.core_type = #tpu.core_type<tc>} {
    %c0 = arith.constant 0 : index
    %c0_0 = arith.constant 0 : index
    %0 = vector.load %arg0[%c0, %c0_0] : memref<224x28xbf16, #tpu.memory_space<vmem>>, vector<224x28xbf16>
    %c0_1 = arith.constant 0 : index
    %c0_2 = arith.constant 0 : index
    %1 = vector.load %arg1[%c0_1, %c0_2] : memref<28x256xbf16, #tpu.memory_space<vmem>>, vector<28x256xbf16>
    %cst = arith.constant dense<0.000000e+00> : vector<224x256xf32>
    %2 = tpu.matmul %0, %1, %cst {dimension_numbers = #tpu.dot_dimension_numbers<[1], [0], [0], [1], [0, 0, 1, 1], [], []>} : vector<224x28xbf16>, vector<28x256xbf16>, vector<224x256xf32> -> vector<224x256xf32>
    %c0_3 = arith.constant 0 : index
    %c0_4 = arith.constant 0 : index
    %3 = vector.load %arg3[%c0_3, %c0_4] : memref<1x256xf32, #tpu.memory_space<vmem>>, vector<1x256xf32>
    %4 = vector.broadcast %3 : vector<1x256xf32> to vector<224x256xf32>
    %5 = arith.addf %2, %4 : vector<224x256xf32>
    %c0_5 = arith.constant 0 : index
    %c0_6 = arith.constant 0 : index
    %6 = vector.load %arg7[%c0_5, %c0_6] : memref<224x256xf32, #tpu.memory_space<vmem>>, vector<224x256xf32>
    tpu.vector_store %arg7[%c0_5, %c0_6], %5 {strides = array<i32>} : memref<224x256xf32, #tpu.memory_space<vmem>>, vector<224x256xf32>,
    %c0_7 = arith.constant 0 : index
    %c0_8 = arith.constant 0 : index
    %7 = vector.load %arg2[%c0_7, %c0_8] : memref<64x256xbf16, #tpu.memory_space<vmem>>, vector<64x256xbf16>
    %cst_9 = arith.constant 0.000000e+00 : f32
    %8 = vector.broadcast %cst_9 : f32 to vector<8x64xf32>
    %cst_10 = arith.constant 0.000000e+00 : f32
    %9 = vector.broadcast %cst_10 : f32 to vector<8x64xf32>
    %c0_i32 = arith.constant 0 : i32
    %c8_i32 = arith.constant 8 : i32
    %10 = arith.muli %c0_i32, %c8_i32 : i32
    %11 = tpu.assume_multiple %10, 8 : i32
    %12 = arith.index_cast %11 : i32 to index
    %c0_11 = arith.constant 0 : index
    %13 = vector.load %arg7[%12, %c0_11] : memref<224x256xf32, #tpu.memory_space<vmem>>, vector<8x256xf32>
    %14 = arith.truncf %8 : vector<8x64xf32> to vector<8x64xbf16>
    %cst_12 = arith.constant dense<0.000000e+00> : vector<8x256xf32>
    %15 = tpu.matmul %14, %7, %cst_12 {dimension_numbers = #tpu.dot_dimension_numbers<[1], [0], [0], [1], [0, 0, 1, 1], [], []>} : vector<8x64xbf16>, vector<64x256xbf16>, vector<8x256xf32> -> vector<8x256xf32>
    %16 = arith.addf %13, %15 : vector<8x256xf32>
    %17 = vector.extract_strided_slice %16 {offsets = [0, 0], sizes = [8, 64], strides = [1, 1]} : vector<8x256xf32> to vector<8x64xf32>
    %18 = arith.negf %17 : vector<8x64xf32>
    %19 = math.exp %18 : vector<8x64xf32>
    %cst_13 = arith.constant 1.000000e+00 : f32
    %20 = vector.broadcast %cst_13 : f32 to vector<8x64xf32>
    %21 = arith.addf %20, %19 : vector<8x64xf32>
    %22 = arith.divf %20, %21 : vector<8x64xf32>
    %23 = vector.extract_strided_slice %16 {offsets = [0, 64], sizes = [8, 64], strides = [1, 1]} : vector<8x256xf32> to vector<8x64xf32>
    %24 = arith.negf %23 : vector<8x64xf32>
    %25 = math.exp %24 : vector<8x64xf32>
    %cst_14 = arith.constant 1.000000e+00 : f32
    %26 = vector.broadcast %cst_14 : f32 to vector<8x64xf32>
    %27 = arith.addf %26, %25 : vector<8x64xf32>
    %28 = arith.divf %26, %27 : vector<8x64xf32>
    %29 = vector.extract_strided_slice %16 {offsets = [0, 128], sizes = [8, 64], strides = [1, 1]} : vector<8x256xf32> to vector<8x64xf32>
    %30 = math.tanh %29 : vector<8x64xf32>
    %31 = vector.extract_strided_slice %16 {offsets = [0, 192], sizes = [8, 64], strides = [1, 1]} : vector<8x256xf32> to vector<8x64xf32>
    %32 = arith.negf %31 : vector<8x64xf32>
    %33 = math.exp %32 : vector<8x64xf32>
    %cst_15 = arith.constant 1.000000e+00 : f32
    %34 = vector.broadcast %cst_15 : f32 to vector<8x64xf32>
    %35 = arith.addf %34, %33 : vector<8x64xf32>
    %36 = arith.divf %34, %35 : vector<8x64xf32>
    %37 = arith.mulf %28, %9 : vector<8x64xf32>
    %38 = arith.mulf %22, %30 : vector<8x64xf32>
    %39 = arith.addf %37, %38 : vector<8x64xf32>
    %40 = math.tanh %39 : vector<8x64xf32>
    %41 = arith.mulf %36, %40 : vector<8x64xf32>
    %c1_i32 = arith.constant 1 : i32
    %c8_i32_16 = arith.constant 8 : i32
    %42 = arith.muli %c1_i32, %c8_i32_16 : i32
    %43 = tpu.assume_multiple %42, 8 : i32
    %44 = arith.index_cast %43 : i32 to index
    %c0_17 = arith.constant 0 : index
    %45 = vector.load %arg7[%44, %c0_17] : memref<224x256xf32, #tpu.memory_space<vmem>>, vector<8x256xf32>
    %46 = arith.truncf %41 : vector<8x64xf32> to vector<8x64xbf16>
    %cst_18 = arith.constant dense<0.000000e+00> : vector<8x256xf32>
    %47 = tpu.matmul %46, %7, %cst_18 {dimension_numbers = #tpu.dot_dimension_numbers<[1], [0], [0], [1], [0, 0, 1, 1], [], []>} : vector<8x64xbf16>, vector<64x256xbf16>, vector<8x256xf32> -> vector<8x256xf32>
    %48 = arith.addf %45, %47 : vector<8x256xf32>
    %49 = vector.extract_strided_slice %48 {offsets = [0, 0], sizes = [8, 64], strides = [1, 1]} : vector<8x256xf32> to vector<8x64xf32>
    %50 = arith.negf %49 : vector<8x64xf32>
    %51 = math.exp %50 : vector<8x64xf32>
    %cst_19 = arith.constant 1.000000e+00 : f32
    %52 = vector.broadcast %cst_19 : f32 to vector<8x64xf32>
    %53 = arith.addf %52, %51 : vector<8x64xf32>
    %54 = arith.divf %52, %53 : vector<8x64xf32>
    %55 = vector.extract_strided_slice %48 {offsets = [0, 64], sizes = [8, 64], strides = [1, 1]} : vector<8x256xf32> to vector<8x64xf32>
    %56 = arith.negf %55 : vector<8x64xf32>
    %57 = math.exp %56 : vector<8x64xf32>
    %cst_20 = arith.constant 1.000000e+00 : f32
    %58 = vector.broadcast %cst_20 : f32 to vector<8x64xf32>
    %59 = arith.addf %58, %57 : vector<8x64xf32>
    %60 = arith.divf %58, %59 : vector<8x64xf32>
    %61 = vector.extract_strided_slice %48 {offsets = [0, 128], sizes = [8, 64], strides = [1, 1]} : vector<8x256xf32> to vector<8x64xf32>
    %62 = math.tanh %61 : vector<8x64xf32>
    %63 = vector.extract_strided_slice %48 {offsets = [0, 192], sizes = [8, 64], strides = [1, 1]} : vector<8x256xf32> to vector<8x64xf32>
    %64 = arith.negf %63 : vector<8x64xf32>
    %65 = math.exp %64 : vector<8x64xf32>
    %cst_21 = arith.constant 1.000000e+00 : f32
    %66 = vector.broadcast %cst_21 : f32 to vector<8x64xf32>
    %67 = arith.addf %66, %65 : vector<8x64xf32>
    %68 = arith.divf %66, %67 : vector<8x64xf32>
    %69 = arith.mulf %60, %39 : vector<8x64xf32>
    %70 = arith.mulf %54, %62 : vector<8x64xf32>
    %71 = arith.addf %69, %70 : vector<8x64xf32>
    %72 = math.tanh %71 : vector<8x64xf32>
    %73 = arith.mulf %68, %72 : vector<8x64xf32>
    %c2_i32 = arith.constant 2 : i32
    %c8_i32_22 = arith.constant 8 : i32
    %74 = arith.muli %c2_i32, %c8_i32_22 : i32
    %75 = tpu.assume_multiple %74, 8 : i32
    %76 = arith.index_cast %75 : i32 to index
    %c0_23 = arith.constant 0 : index
    %77 = vector.load %arg7[%76, %c0_23] : memref<224x256xf32, #tpu.memory_space<vmem>>, vector<8x256xf32>
    %78 = arith.truncf %73 : vector<8x64xf32> to vector<8x64xbf16>
    %cst_24 = arith.constant dense<0.000000e+00> : vector<8x256xf32>
    %79 = tpu.matmul %78, %7, %cst_24 {dimension_numbers = #tpu.dot_dimension_numbers<[1], [0], [0], [1], [0, 0, 1, 1], [], []>} : vector<8x64xbf16>, vector<64x256xbf16>, vector<8x256xf32> -> vector<8x256xf32>
    %80 = arith.addf %77, %79 : vector<8x256xf32>
    %81 = vector.extract_strided_slice %80 {offsets = [0, 0], sizes = [8, 64], strides = [1, 1]} : vector<8x256xf32> to vector<8x64xf32>
    %82 = arith.negf %81 : vector<8x64xf32>
    %83 = math.exp %82 : vector<8x64xf32>
    %cst_25 = arith.constant 1.000000e+00 : f32
    %84 = vector.broadcast %cst_25 : f32 to vector<8x64xf32>
    %85 = arith.addf %84, %83 : vector<8x64xf32>
    %86 = arith.divf %84, %85 : vector<8x64xf32>
    %87 = vector.extract_strided_slice %80 {offsets = [0, 64], sizes = [8, 64], strides = [1, 1]} : vector<8x256xf32> to vector<8x64xf32>
    %88 = arith.negf %87 : vector<8x64xf32>
    %89 = math.exp %88 : vector<8x64xf32>
    %cst_26 = arith.constant 1.000000e+00 : f32
    %90 = vector.broadcast %cst_26 : f32 to vector<8x64xf32>
    %91 = arith.addf %90, %89 : vector<8x64xf32>
    %92 = arith.divf %90, %91 : vector<8x64xf32>
    %93 = vector.extract_strided_slice %80 {offsets = [0, 128], sizes = [8, 64], strides = [1, 1]} : vector<8x256xf32> to vector<8x64xf32>
    %94 = math.tanh %93 : vector<8x64xf32>
    %95 = vector.extract_strided_slice %80 {offsets = [0, 192], sizes = [8, 64], strides = [1, 1]} : vector<8x256xf32> to vector<8x64xf32>
    %96 = arith.negf %95 : vector<8x64xf32>
    %97 = math.exp %96 : vector<8x64xf32>
    %cst_27 = arith.constant 1.000000e+00 : f32
    %98 = vector.broadcast %cst_27 : f32 to vector<8x64xf32>
    %99 = arith.addf %98, %97 : vector<8x64xf32>
    %100 = arith.divf %98, %99 : vector<8x64xf32>
    %101 = arith.mulf %92, %71 : vector<8x64xf32>
    %102 = arith.mulf %86, %94 : vector<8x64xf32>
    %103 = arith.addf %101, %102 : vector<8x64xf32>
    %104 = math.tanh %103 : vector<8x64xf32>
    %105 = arith.mulf %100, %104 : vector<8x64xf32>
    %c3_i32 = arith.constant 3 : i32
    %c8_i32_28 = arith.constant 8 : i32
    %106 = arith.muli %c3_i32, %c8_i32_28 : i32
    %107 = tpu.assume_multiple %106, 8 : i32
    %108 = arith.index_cast %107 : i32 to index
    %c0_29 = arith.constant 0 : index
    %109 = vector.load %arg7[%108, %c0_29] : memref<224x256xf32, #tpu.memory_space<vmem>>, vector<8x256xf32>
    %110 = arith.truncf %105 : vector<8x64xf32> to vector<8x64xbf16>
    %cst_30 = arith.constant dense<0.000000e+00> : vector<8x256xf32>
    %111 = tpu.matmul %110, %7, %cst_30 {dimension_numbers = #tpu.dot_dimension_numbers<[1], [0], [0], [1], [0, 0, 1, 1], [], []>} : vector<8x64xbf16>, vector<64x256xbf16>, vector<8x256xf32> -> vector<8x256xf32>
    %112 = arith.addf %109, %111 : vector<8x256xf32>
    %113 = vector.extract_strided_slice %112 {offsets = [0, 0], sizes = [8, 64], strides = [1, 1]} : vector<8x256xf32> to vector<8x64xf32>
    %114 = arith.negf %113 : vector<8x64xf32>
    %115 = math.exp %114 : vector<8x64xf32>
    %cst_31 = arith.constant 1.000000e+00 : f32
    %116 = vector.broadcast %cst_31 : f32 to vector<8x64xf32>
    %117 = arith.addf %116, %115 : vector<8x64xf32>
    %118 = arith.divf %116, %117 : vector<8x64xf32>
    %119 = vector.extract_strided_slice %112 {offsets = [0, 64], sizes = [8, 64], strides = [1, 1]} : vector<8x256xf32> to vector<8x64xf32>
    %120 = arith.negf %119 : vector<8x64xf32>
    %121 = math.exp %120 : vector<8x64xf32>
    %cst_32 = arith.constant 1.000000e+00 : f32
    %122 = vector.broadcast %cst_32 : f32 to vector<8x64xf32>
    %123 = arith.addf %122, %121 : vector<8x64xf32>
    %124 = arith.divf %122, %123 : vector<8x64xf32>
    %125 = vector.extract_strided_slice %112 {offsets = [0, 128], sizes = [8, 64], strides = [1, 1]} : vector<8x256xf32> to vector<8x64xf32>
    %126 = math.tanh %125 : vector<8x64xf32>
    %127 = vector.extract_strided_slice %112 {offsets = [0, 192], sizes = [8, 64], strides = [1, 1]} : vector<8x256xf32> to vector<8x64xf32>
    %128 = arith.negf %127 : vector<8x64xf32>
    %129 = math.exp %128 : vector<8x64xf32>
    %cst_33 = arith.constant 1.000000e+00 : f32
    %130 = vector.broadcast %cst_33 : f32 to vector<8x64xf32>
    %131 = arith.addf %130, %129 : vector<8x64xf32>
    %132 = arith.divf %130, %131 : vector<8x64xf32>
    %133 = arith.mulf %124, %103 : vector<8x64xf32>
    %134 = arith.mulf %118, %126 : vector<8x64xf32>
    %135 = arith.addf %133, %134 : vector<8x64xf32>
    %136 = math.tanh %135 : vector<8x64xf32>
    %137 = arith.mulf %132, %136 : vector<8x64xf32>
    %c4_i32 = arith.constant 4 : i32
    %c8_i32_34 = arith.constant 8 : i32
    %138 = arith.muli %c4_i32, %c8_i32_34 : i32
    %139 = tpu.assume_multiple %138, 8 : i32
    %140 = arith.index_cast %139 : i32 to index
    %c0_35 = arith.constant 0 : index
    %141 = vector.load %arg7[%140, %c0_35] : memref<224x256xf32, #tpu.memory_space<vmem>>, vector<8x256xf32>
    %142 = arith.truncf %137 : vector<8x64xf32> to vector<8x64xbf16>
    %cst_36 = arith.constant dense<0.000000e+00> : vector<8x256xf32>
    %143 = tpu.matmul %142, %7, %cst_36 {dimension_numbers = #tpu.dot_dimension_numbers<[1], [0], [0], [1], [0, 0, 1, 1], [], []>} : vector<8x64xbf16>, vector<64x256xbf16>, vector<8x256xf32> -> vector<8x256xf32>
    %144 = arith.addf %141, %143 : vector<8x256xf32>
    %145 = vector.extract_strided_slice %144 {offsets = [0, 0], sizes = [8, 64], strides = [1, 1]} : vector<8x256xf32> to vector<8x64xf32>
    %146 = arith.negf %145 : vector<8x64xf32>
    %147 = math.exp %146 : vector<8x64xf32>
    %cst_37 = arith.constant 1.000000e+00 : f32
    %148 = vector.broadcast %cst_37 : f32 to vector<8x64xf32>
    %149 = arith.addf %148, %147 : vector<8x64xf32>
    %150 = arith.divf %148, %149 : vector<8x64xf32>
    %151 = vector.extract_strided_slice %144 {offsets = [0, 64], sizes = [8, 64], strides = [1, 1]} : vector<8x256xf32> to vector<8x64xf32>
    %152 = arith.negf %151 : vector<8x64xf32>
    %153 = math.exp %152 : vector<8x64xf32>
    %cst_38 = arith.constant 1.000000e+00 : f32
    %154 = vector.broadcast %cst_38 : f32 to vector<8x64xf32>
    %155 = arith.addf %154, %153 : vector<8x64xf32>
    %156 = arith.divf %154, %155 : vector<8x64xf32>
    %157 = vector.extract_strided_slice %144 {offsets = [0, 128], sizes = [8, 64], strides = [1, 1]} : vector<8x256xf32> to vector<8x64xf32>
    %158 = math.tanh %157 : vector<8x64xf32>
    %159 = vector.extract_strided_slice %144 {offsets = [0, 192], sizes = [8, 64], strides = [1, 1]} : vector<8x256xf32> to vector<8x64xf32>
    %160 = arith.negf %159 : vector<8x64xf32>
    %161 = math.exp %160 : vector<8x64xf32>
    %cst_39 = arith.constant 1.000000e+00 : f32
    %162 = vector.broadcast %cst_39 : f32 to vector<8x64xf32>
    %163 = arith.addf %162, %161 : vector<8x64xf32>
    %164 = arith.divf %162, %163 : vector<8x64xf32>
    %165 = arith.mulf %156, %135 : vector<8x64xf32>
    %166 = arith.mulf %150, %158 : vector<8x64xf32>
    %167 = arith.addf %165, %166 : vector<8x64xf32>
    %168 = math.tanh %167 : vector<8x64xf32>
    %169 = arith.mulf %164, %168 : vector<8x64xf32>
    %c5_i32 = arith.constant 5 : i32
    %c8_i32_40 = arith.constant 8 : i32
    %170 = arith.muli %c5_i32, %c8_i32_40 : i32
    %171 = tpu.assume_multiple %170, 8 : i32
    %172 = arith.index_cast %171 : i32 to index
    %c0_41 = arith.constant 0 : index
    %173 = vector.load %arg7[%172, %c0_41] : memref<224x256xf32, #tpu.memory_space<vmem>>, vector<8x256xf32>
    %174 = arith.truncf %169 : vector<8x64xf32> to vector<8x64xbf16>
    %cst_42 = arith.constant dense<0.000000e+00> : vector<8x256xf32>
    %175 = tpu.matmul %174, %7, %cst_42 {dimension_numbers = #tpu.dot_dimension_numbers<[1], [0], [0], [1], [0, 0, 1, 1], [], []>} : vector<8x64xbf16>, vector<64x256xbf16>, vector<8x256xf32> -> vector<8x256xf32>
    %176 = arith.addf %173, %175 : vector<8x256xf32>
    %177 = vector.extract_strided_slice %176 {offsets = [0, 0], sizes = [8, 64], strides = [1, 1]} : vector<8x256xf32> to vector<8x64xf32>
    %178 = arith.negf %177 : vector<8x64xf32>
    %179 = math.exp %178 : vector<8x64xf32>
    %cst_43 = arith.constant 1.000000e+00 : f32
    %180 = vector.broadcast %cst_43 : f32 to vector<8x64xf32>
    %181 = arith.addf %180, %179 : vector<8x64xf32>
    %182 = arith.divf %180, %181 : vector<8x64xf32>
    %183 = vector.extract_strided_slice %176 {offsets = [0, 64], sizes = [8, 64], strides = [1, 1]} : vector<8x256xf32> to vector<8x64xf32>
    %184 = arith.negf %183 : vector<8x64xf32>
    %185 = math.exp %184 : vector<8x64xf32>
    %cst_44 = arith.constant 1.000000e+00 : f32
    %186 = vector.broadcast %cst_44 : f32 to vector<8x64xf32>
    %187 = arith.addf %186, %185 : vector<8x64xf32>
    %188 = arith.divf %186, %187 : vector<8x64xf32>
    %189 = vector.extract_strided_slice %176 {offsets = [0, 128], sizes = [8, 64], strides = [1, 1]} : vector<8x256xf32> to vector<8x64xf32>
    %190 = math.tanh %189 : vector<8x64xf32>
    %191 = vector.extract_strided_slice %176 {offsets = [0, 192], sizes = [8, 64], strides = [1, 1]} : vector<8x256xf32> to vector<8x64xf32>
    %192 = arith.negf %191 : vector<8x64xf32>
    %193 = math.exp %192 : vector<8x64xf32>
    %cst_45 = arith.constant 1.000000e+00 : f32
    %194 = vector.broadcast %cst_45 : f32 to vector<8x64xf32>
    %195 = arith.addf %194, %193 : vector<8x64xf32>
    %196 = arith.divf %194, %195 : vector<8x64xf32>
    %197 = arith.mulf %188, %167 : vector<8x64xf32>
    %198 = arith.mulf %182, %190 : vector<8x64xf32>
    %199 = arith.addf %197, %198 : vector<8x64xf32>
    %200 = math.tanh %199 : vector<8x64xf32>
    %201 = arith.mulf %196, %200 : vector<8x64xf32>
    %c6_i32 = arith.constant 6 : i32
    %c8_i32_46 = arith.constant 8 : i32
    %202 = arith.muli %c6_i32, %c8_i32_46 : i32
    %203 = tpu.assume_multiple %202, 8 : i32
    %204 = arith.index_cast %203 : i32 to index
    %c0_47 = arith.constant 0 : index
    %205 = vector.load %arg7[%204, %c0_47] : memref<224x256xf32, #tpu.memory_space<vmem>>, vector<8x256xf32>
    %206 = arith.truncf %201 : vector<8x64xf32> to vector<8x64xbf16>
    %cst_48 = arith.constant dense<0.000000e+00> : vector<8x256xf32>
    %207 = tpu.matmul %206, %7, %cst_48 {dimension_numbers = #tpu.dot_dimension_numbers<[1], [0], [0], [1], [0, 0, 1, 1], [], []>} : vector<8x64xbf16>, vector<64x256xbf16>, vector<8x256xf32> -> vector<8x256xf32>
    %208 = arith.addf %205, %207 : vector<8x256xf32>
    %209 = vector.extract_strided_slice %208 {offsets = [0, 0], sizes = [8, 64], strides = [1, 1]} : vector<8x256xf32> to vector<8x64xf32>
    %210 = arith.negf %209 : vector<8x64xf32>
    %211 = math.exp %210 : vector<8x64xf32>
    %cst_49 = arith.constant 1.000000e+00 : f32
    %212 = vector.broadcast %cst_49 : f32 to vector<8x64xf32>
    %213 = arith.addf %212, %211 : vector<8x64xf32>
    %214 = arith.divf %212, %213 : vector<8x64xf32>
    %215 = vector.extract_strided_slice %208 {offsets = [0, 64], sizes = [8, 64], strides = [1, 1]} : vector<8x256xf32> to vector<8x64xf32>
    %216 = arith.negf %215 : vector<8x64xf32>
    %217 = math.exp %216 : vector<8x64xf32>
    %cst_50 = arith.constant 1.000000e+00 : f32
    %218 = vector.broadcast %cst_50 : f32 to vector<8x64xf32>
    %219 = arith.addf %218, %217 : vector<8x64xf32>
    %220 = arith.divf %218, %219 : vector<8x64xf32>
    %221 = vector.extract_strided_slice %208 {offsets = [0, 128], sizes = [8, 64], strides = [1, 1]} : vector<8x256xf32> to vector<8x64xf32>
    %222 = math.tanh %221 : vector<8x64xf32>
    %223 = vector.extract_strided_slice %208 {offsets = [0, 192], sizes = [8, 64], strides = [1, 1]} : vector<8x256xf32> to vector<8x64xf32>
    %224 = arith.negf %223 : vector<8x64xf32>
    %225 = math.exp %224 : vector<8x64xf32>
    %cst_51 = arith.constant 1.000000e+00 : f32
    %226 = vector.broadcast %cst_51 : f32 to vector<8x64xf32>
    %227 = arith.addf %226, %225 : vector<8x64xf32>
    %228 = arith.divf %226, %227 : vector<8x64xf32>
    %229 = arith.mulf %220, %199 : vector<8x64xf32>
    %230 = arith.mulf %214, %222 : vector<8x64xf32>
    %231 = arith.addf %229, %230 : vector<8x64xf32>
    %232 = math.tanh %231 : vector<8x64xf32>
    %233 = arith.mulf %228, %232 : vector<8x64xf32>
    %c7_i32 = arith.constant 7 : i32
    %c8_i32_52 = arith.constant 8 : i32
    %234 = arith.muli %c7_i32, %c8_i32_52 : i32
    %235 = tpu.assume_multiple %234, 8 : i32
    %236 = arith.index_cast %235 : i32 to index
    %c0_53 = arith.constant 0 : index
    %237 = vector.load %arg7[%236, %c0_53] : memref<224x256xf32, #tpu.memory_space<vmem>>, vector<8x256xf32>
    %238 = arith.truncf %233 : vector<8x64xf32> to vector<8x64xbf16>
    %cst_54 = arith.constant dense<0.000000e+00> : vector<8x256xf32>
    %239 = tpu.matmul %238, %7, %cst_54 {dimension_numbers = #tpu.dot_dimension_numbers<[1], [0], [0], [1], [0, 0, 1, 1], [], []>} : vector<8x64xbf16>, vector<64x256xbf16>, vector<8x256xf32> -> vector<8x256xf32>
    %240 = arith.addf %237, %239 : vector<8x256xf32>
    %241 = vector.extract_strided_slice %240 {offsets = [0, 0], sizes = [8, 64], strides = [1, 1]} : vector<8x256xf32> to vector<8x64xf32>
    %242 = arith.negf %241 : vector<8x64xf32>
    %243 = math.exp %242 : vector<8x64xf32>
    %cst_55 = arith.constant 1.000000e+00 : f32
    %244 = vector.broadcast %cst_55 : f32 to vector<8x64xf32>
    %245 = arith.addf %244, %243 : vector<8x64xf32>
    %246 = arith.divf %244, %245 : vector<8x64xf32>
    %247 = vector.extract_strided_slice %240 {offsets = [0, 64], sizes = [8, 64], strides = [1, 1]} : vector<8x256xf32> to vector<8x64xf32>
    %248 = arith.negf %247 : vector<8x64xf32>
    %249 = math.exp %248 : vector<8x64xf32>
    %cst_56 = arith.constant 1.000000e+00 : f32
    %250 = vector.broadcast %cst_56 : f32 to vector<8x64xf32>
    %251 = arith.addf %250, %249 : vector<8x64xf32>
    %252 = arith.divf %250, %251 : vector<8x64xf32>
    %253 = vector.extract_strided_slice %240 {offsets = [0, 128], sizes = [8, 64], strides = [1, 1]} : vector<8x256xf32> to vector<8x64xf32>
    %254 = math.tanh %253 : vector<8x64xf32>
    %255 = vector.extract_strided_slice %240 {offsets = [0, 192], sizes = [8, 64], strides = [1, 1]} : vector<8x256xf32> to vector<8x64xf32>
    %256 = arith.negf %255 : vector<8x64xf32>
    %257 = math.exp %256 : vector<8x64xf32>
    %cst_57 = arith.constant 1.000000e+00 : f32
    %258 = vector.broadcast %cst_57 : f32 to vector<8x64xf32>
    %259 = arith.addf %258, %257 : vector<8x64xf32>
    %260 = arith.divf %258, %259 : vector<8x64xf32>
    %261 = arith.mulf %252, %231 : vector<8x64xf32>
    %262 = arith.mulf %246, %254 : vector<8x64xf32>
    %263 = arith.addf %261, %262 : vector<8x64xf32>
    %264 = math.tanh %263 : vector<8x64xf32>
    %265 = arith.mulf %260, %264 : vector<8x64xf32>
    %c8_i32_58 = arith.constant 8 : i32
    %c8_i32_59 = arith.constant 8 : i32
    %266 = arith.muli %c8_i32_58, %c8_i32_59 : i32
    %267 = tpu.assume_multiple %266, 8 : i32
    %268 = arith.index_cast %267 : i32 to index
    %c0_60 = arith.constant 0 : index
    %269 = vector.load %arg7[%268, %c0_60] : memref<224x256xf32, #tpu.memory_space<vmem>>, vector<8x256xf32>
    %270 = arith.truncf %265 : vector<8x64xf32> to vector<8x64xbf16>
    %cst_61 = arith.constant dense<0.000000e+00> : vector<8x256xf32>
    %271 = tpu.matmul %270, %7, %cst_61 {dimension_numbers = #tpu.dot_dimension_numbers<[1], [0], [0], [1], [0, 0, 1, 1], [], []>} : vector<8x64xbf16>, vector<64x256xbf16>, vector<8x256xf32> -> vector<8x256xf32>
    %272 = arith.addf %269, %271 : vector<8x256xf32>
    %273 = vector.extract_strided_slice %272 {offsets = [0, 0], sizes = [8, 64], strides = [1, 1]} : vector<8x256xf32> to vector<8x64xf32>
    %274 = arith.negf %273 : vector<8x64xf32>
    %275 = math.exp %274 : vector<8x64xf32>
    %cst_62 = arith.constant 1.000000e+00 : f32
    %276 = vector.broadcast %cst_62 : f32 to vector<8x64xf32>
    %277 = arith.addf %276, %275 : vector<8x64xf32>
    %278 = arith.divf %276, %277 : vector<8x64xf32>
    %279 = vector.extract_strided_slice %272 {offsets = [0, 64], sizes = [8, 64], strides = [1, 1]} : vector<8x256xf32> to vector<8x64xf32>
    %280 = arith.negf %279 : vector<8x64xf32>
    %281 = math.exp %280 : vector<8x64xf32>
    %cst_63 = arith.constant 1.000000e+00 : f32
    %282 = vector.broadcast %cst_63 : f32 to vector<8x64xf32>
    %283 = arith.addf %282, %281 : vector<8x64xf32>
    %284 = arith.divf %282, %283 : vector<8x64xf32>
    %285 = vector.extract_strided_slice %272 {offsets = [0, 128], sizes = [8, 64], strides = [1, 1]} : vector<8x256xf32> to vector<8x64xf32>
    %286 = math.tanh %285 : vector<8x64xf32>
    %287 = vector.extract_strided_slice %272 {offsets = [0, 192], sizes = [8, 64], strides = [1, 1]} : vector<8x256xf32> to vector<8x64xf32>
    %288 = arith.negf %287 : vector<8x64xf32>
    %289 = math.exp %288 : vector<8x64xf32>
    %cst_64 = arith.constant 1.000000e+00 : f32
    %290 = vector.broadcast %cst_64 : f32 to vector<8x64xf32>
    %291 = arith.addf %290, %289 : vector<8x64xf32>
    %292 = arith.divf %290, %291 : vector<8x64xf32>
    %293 = arith.mulf %284, %263 : vector<8x64xf32>
    %294 = arith.mulf %278, %286 : vector<8x64xf32>
    %295 = arith.addf %293, %294 : vector<8x64xf32>
    %296 = math.tanh %295 : vector<8x64xf32>
    %297 = arith.mulf %292, %296 : vector<8x64xf32>
    %c9_i32 = arith.constant 9 : i32
    %c8_i32_65 = arith.constant 8 : i32
    %298 = arith.muli %c9_i32, %c8_i32_65 : i32
    %299 = tpu.assume_multiple %298, 8 : i32
    %300 = arith.index_cast %299 : i32 to index
    %c0_66 = arith.constant 0 : index
    %301 = vector.load %arg7[%300, %c0_66] : memref<224x256xf32, #tpu.memory_space<vmem>>, vector<8x256xf32>
    %302 = arith.truncf %297 : vector<8x64xf32> to vector<8x64xbf16>
    %cst_67 = arith.constant dense<0.000000e+00> : vector<8x256xf32>
    %303 = tpu.matmul %302, %7, %cst_67 {dimension_numbers = #tpu.dot_dimension_numbers<[1], [0], [0], [1], [0, 0, 1, 1], [], []>} : vector<8x64xbf16>, vector<64x256xbf16>, vector<8x256xf32> -> vector<8x256xf32>
    %304 = arith.addf %301, %303 : vector<8x256xf32>
    %305 = vector.extract_strided_slice %304 {offsets = [0, 0], sizes = [8, 64], strides = [1, 1]} : vector<8x256xf32> to vector<8x64xf32>
    %306 = arith.negf %305 : vector<8x64xf32>
    %307 = math.exp %306 : vector<8x64xf32>
    %cst_68 = arith.constant 1.000000e+00 : f32
    %308 = vector.broadcast %cst_68 : f32 to vector<8x64xf32>
    %309 = arith.addf %308, %307 : vector<8x64xf32>
    %310 = arith.divf %308, %309 : vector<8x64xf32>
    %311 = vector.extract_strided_slice %304 {offsets = [0, 64], sizes = [8, 64], strides = [1, 1]} : vector<8x256xf32> to vector<8x64xf32>
    %312 = arith.negf %311 : vector<8x64xf32>
    %313 = math.exp %312 : vector<8x64xf32>
    %cst_69 = arith.constant 1.000000e+00 : f32
    %314 = vector.broadcast %cst_69 : f32 to vector<8x64xf32>
    %315 = arith.addf %314, %313 : vector<8x64xf32>
    %316 = arith.divf %314, %315 : vector<8x64xf32>
    %317 = vector.extract_strided_slice %304 {offsets = [0, 128], sizes = [8, 64], strides = [1, 1]} : vector<8x256xf32> to vector<8x64xf32>
    %318 = math.tanh %317 : vector<8x64xf32>
    %319 = vector.extract_strided_slice %304 {offsets = [0, 192], sizes = [8, 64], strides = [1, 1]} : vector<8x256xf32> to vector<8x64xf32>
    %320 = arith.negf %319 : vector<8x64xf32>
    %321 = math.exp %320 : vector<8x64xf32>
    %cst_70 = arith.constant 1.000000e+00 : f32
    %322 = vector.broadcast %cst_70 : f32 to vector<8x64xf32>
    %323 = arith.addf %322, %321 : vector<8x64xf32>
    %324 = arith.divf %322, %323 : vector<8x64xf32>
    %325 = arith.mulf %316, %295 : vector<8x64xf32>
    %326 = arith.mulf %310, %318 : vector<8x64xf32>
    %327 = arith.addf %325, %326 : vector<8x64xf32>
    %328 = math.tanh %327 : vector<8x64xf32>
    %329 = arith.mulf %324, %328 : vector<8x64xf32>
    %c10_i32 = arith.constant 10 : i32
    %c8_i32_71 = arith.constant 8 : i32
    %330 = arith.muli %c10_i32, %c8_i32_71 : i32
    %331 = tpu.assume_multiple %330, 8 : i32
    %332 = arith.index_cast %331 : i32 to index
    %c0_72 = arith.constant 0 : index
    %333 = vector.load %arg7[%332, %c0_72] : memref<224x256xf32, #tpu.memory_space<vmem>>, vector<8x256xf32>
    %334 = arith.truncf %329 : vector<8x64xf32> to vector<8x64xbf16>
    %cst_73 = arith.constant dense<0.000000e+00> : vector<8x256xf32>
    %335 = tpu.matmul %334, %7, %cst_73 {dimension_numbers = #tpu.dot_dimension_numbers<[1], [0], [0], [1], [0, 0, 1, 1], [], []>} : vector<8x64xbf16>, vector<64x256xbf16>, vector<8x256xf32> -> vector<8x256xf32>
    %336 = arith.addf %333, %335 : vector<8x256xf32>
    %337 = vector.extract_strided_slice %336 {offsets = [0, 0], sizes = [8, 64], strides = [1, 1]} : vector<8x256xf32> to vector<8x64xf32>
    %338 = arith.negf %337 : vector<8x64xf32>
    %339 = math.exp %338 : vector<8x64xf32>
    %cst_74 = arith.constant 1.000000e+00 : f32
    %340 = vector.broadcast %cst_74 : f32 to vector<8x64xf32>
    %341 = arith.addf %340, %339 : vector<8x64xf32>
    %342 = arith.divf %340, %341 : vector<8x64xf32>
    %343 = vector.extract_strided_slice %336 {offsets = [0, 64], sizes = [8, 64], strides = [1, 1]} : vector<8x256xf32> to vector<8x64xf32>
    %344 = arith.negf %343 : vector<8x64xf32>
    %345 = math.exp %344 : vector<8x64xf32>
    %cst_75 = arith.constant 1.000000e+00 : f32
    %346 = vector.broadcast %cst_75 : f32 to vector<8x64xf32>
    %347 = arith.addf %346, %345 : vector<8x64xf32>
    %348 = arith.divf %346, %347 : vector<8x64xf32>
    %349 = vector.extract_strided_slice %336 {offsets = [0, 128], sizes = [8, 64], strides = [1, 1]} : vector<8x256xf32> to vector<8x64xf32>
    %350 = math.tanh %349 : vector<8x64xf32>
    %351 = vector.extract_strided_slice %336 {offsets = [0, 192], sizes = [8, 64], strides = [1, 1]} : vector<8x256xf32> to vector<8x64xf32>
    %352 = arith.negf %351 : vector<8x64xf32>
    %353 = math.exp %352 : vector<8x64xf32>
    %cst_76 = arith.constant 1.000000e+00 : f32
    %354 = vector.broadcast %cst_76 : f32 to vector<8x64xf32>
    %355 = arith.addf %354, %353 : vector<8x64xf32>
    %356 = arith.divf %354, %355 : vector<8x64xf32>
    %357 = arith.mulf %348, %327 : vector<8x64xf32>
    %358 = arith.mulf %342, %350 : vector<8x64xf32>
    %359 = arith.addf %357, %358 : vector<8x64xf32>
    %360 = math.tanh %359 : vector<8x64xf32>
    %361 = arith.mulf %356, %360 : vector<8x64xf32>
    %c11_i32 = arith.constant 11 : i32
    %c8_i32_77 = arith.constant 8 : i32
    %362 = arith.muli %c11_i32, %c8_i32_77 : i32
    %363 = tpu.assume_multiple %362, 8 : i32
    %364 = arith.index_cast %363 : i32 to index
    %c0_78 = arith.constant 0 : index
    %365 = vector.load %arg7[%364, %c0_78] : memref<224x256xf32, #tpu.memory_space<vmem>>, vector<8x256xf32>
    %366 = arith.truncf %361 : vector<8x64xf32> to vector<8x64xbf16>
    %cst_79 = arith.constant dense<0.000000e+00> : vector<8x256xf32>
    %367 = tpu.matmul %366, %7, %cst_79 {dimension_numbers = #tpu.dot_dimension_numbers<[1], [0], [0], [1], [0, 0, 1, 1], [], []>} : vector<8x64xbf16>, vector<64x256xbf16>, vector<8x256xf32> -> vector<8x256xf32>
    %368 = arith.addf %365, %367 : vector<8x256xf32>
    %369 = vector.extract_strided_slice %368 {offsets = [0, 0], sizes = [8, 64], strides = [1, 1]} : vector<8x256xf32> to vector<8x64xf32>
    %370 = arith.negf %369 : vector<8x64xf32>
    %371 = math.exp %370 : vector<8x64xf32>
    %cst_80 = arith.constant 1.000000e+00 : f32
    %372 = vector.broadcast %cst_80 : f32 to vector<8x64xf32>
    %373 = arith.addf %372, %371 : vector<8x64xf32>
    %374 = arith.divf %372, %373 : vector<8x64xf32>
    %375 = vector.extract_strided_slice %368 {offsets = [0, 64], sizes = [8, 64], strides = [1, 1]} : vector<8x256xf32> to vector<8x64xf32>
    %376 = arith.negf %375 : vector<8x64xf32>
    %377 = math.exp %376 : vector<8x64xf32>
    %cst_81 = arith.constant 1.000000e+00 : f32
    %378 = vector.broadcast %cst_81 : f32 to vector<8x64xf32>
    %379 = arith.addf %378, %377 : vector<8x64xf32>
    %380 = arith.divf %378, %379 : vector<8x64xf32>
    %381 = vector.extract_strided_slice %368 {offsets = [0, 128], sizes = [8, 64], strides = [1, 1]} : vector<8x256xf32> to vector<8x64xf32>
    %382 = math.tanh %381 : vector<8x64xf32>
    %383 = vector.extract_strided_slice %368 {offsets = [0, 192], sizes = [8, 64], strides = [1, 1]} : vector<8x256xf32> to vector<8x64xf32>
    %384 = arith.negf %383 : vector<8x64xf32>
    %385 = math.exp %384 : vector<8x64xf32>
    %cst_82 = arith.constant 1.000000e+00 : f32
    %386 = vector.broadcast %cst_82 : f32 to vector<8x64xf32>
    %387 = arith.addf %386, %385 : vector<8x64xf32>
    %388 = arith.divf %386, %387 : vector<8x64xf32>
    %389 = arith.mulf %380, %359 : vector<8x64xf32>
    %390 = arith.mulf %374, %382 : vector<8x64xf32>
    %391 = arith.addf %389, %390 : vector<8x64xf32>
    %392 = math.tanh %391 : vector<8x64xf32>
    %393 = arith.mulf %388, %392 : vector<8x64xf32>
    %c12_i32 = arith.constant 12 : i32
    %c8_i32_83 = arith.constant 8 : i32
    %394 = arith.muli %c12_i32, %c8_i32_83 : i32
    %395 = tpu.assume_multiple %394, 8 : i32
    %396 = arith.index_cast %395 : i32 to index
    %c0_84 = arith.constant 0 : index
    %397 = vector.load %arg7[%396, %c0_84] : memref<224x256xf32, #tpu.memory_space<vmem>>, vector<8x256xf32>
    %398 = arith.truncf %393 : vector<8x64xf32> to vector<8x64xbf16>
    %cst_85 = arith.constant dense<0.000000e+00> : vector<8x256xf32>
    %399 = tpu.matmul %398, %7, %cst_85 {dimension_numbers = #tpu.dot_dimension_numbers<[1], [0], [0], [1], [0, 0, 1, 1], [], []>} : vector<8x64xbf16>, vector<64x256xbf16>, vector<8x256xf32> -> vector<8x256xf32>
    %400 = arith.addf %397, %399 : vector<8x256xf32>
    %401 = vector.extract_strided_slice %400 {offsets = [0, 0], sizes = [8, 64], strides = [1, 1]} : vector<8x256xf32> to vector<8x64xf32>
    %402 = arith.negf %401 : vector<8x64xf32>
    %403 = math.exp %402 : vector<8x64xf32>
    %cst_86 = arith.constant 1.000000e+00 : f32
    %404 = vector.broadcast %cst_86 : f32 to vector<8x64xf32>
    %405 = arith.addf %404, %403 : vector<8x64xf32>
    %406 = arith.divf %404, %405 : vector<8x64xf32>
    %407 = vector.extract_strided_slice %400 {offsets = [0, 64], sizes = [8, 64], strides = [1, 1]} : vector<8x256xf32> to vector<8x64xf32>
    %408 = arith.negf %407 : vector<8x64xf32>
    %409 = math.exp %408 : vector<8x64xf32>
    %cst_87 = arith.constant 1.000000e+00 : f32
    %410 = vector.broadcast %cst_87 : f32 to vector<8x64xf32>
    %411 = arith.addf %410, %409 : vector<8x64xf32>
    %412 = arith.divf %410, %411 : vector<8x64xf32>
    %413 = vector.extract_strided_slice %400 {offsets = [0, 128], sizes = [8, 64], strides = [1, 1]} : vector<8x256xf32> to vector<8x64xf32>
    %414 = math.tanh %413 : vector<8x64xf32>
    %415 = vector.extract_strided_slice %400 {offsets = [0, 192], sizes = [8, 64], strides = [1, 1]} : vector<8x256xf32> to vector<8x64xf32>
    %416 = arith.negf %415 : vector<8x64xf32>
    %417 = math.exp %416 : vector<8x64xf32>
    %cst_88 = arith.constant 1.000000e+00 : f32
    %418 = vector.broadcast %cst_88 : f32 to vector<8x64xf32>
    %419 = arith.addf %418, %417 : vector<8x64xf32>
    %420 = arith.divf %418, %419 : vector<8x64xf32>
    %421 = arith.mulf %412, %391 : vector<8x64xf32>
    %422 = arith.mulf %406, %414 : vector<8x64xf32>
    %423 = arith.addf %421, %422 : vector<8x64xf32>
    %424 = math.tanh %423 : vector<8x64xf32>
    %425 = arith.mulf %420, %424 : vector<8x64xf32>
    %c13_i32 = arith.constant 13 : i32
    %c8_i32_89 = arith.constant 8 : i32
    %426 = arith.muli %c13_i32, %c8_i32_89 : i32
    %427 = tpu.assume_multiple %426, 8 : i32
    %428 = arith.index_cast %427 : i32 to index
    %c0_90 = arith.constant 0 : index
    %429 = vector.load %arg7[%428, %c0_90] : memref<224x256xf32, #tpu.memory_space<vmem>>, vector<8x256xf32>
    %430 = arith.truncf %425 : vector<8x64xf32> to vector<8x64xbf16>
    %cst_91 = arith.constant dense<0.000000e+00> : vector<8x256xf32>
    %431 = tpu.matmul %430, %7, %cst_91 {dimension_numbers = #tpu.dot_dimension_numbers<[1], [0], [0], [1], [0, 0, 1, 1], [], []>} : vector<8x64xbf16>, vector<64x256xbf16>, vector<8x256xf32> -> vector<8x256xf32>
    %432 = arith.addf %429, %431 : vector<8x256xf32>
    %433 = vector.extract_strided_slice %432 {offsets = [0, 0], sizes = [8, 64], strides = [1, 1]} : vector<8x256xf32> to vector<8x64xf32>
    %434 = arith.negf %433 : vector<8x64xf32>
    %435 = math.exp %434 : vector<8x64xf32>
    %cst_92 = arith.constant 1.000000e+00 : f32
    %436 = vector.broadcast %cst_92 : f32 to vector<8x64xf32>
    %437 = arith.addf %436, %435 : vector<8x64xf32>
    %438 = arith.divf %436, %437 : vector<8x64xf32>
    %439 = vector.extract_strided_slice %432 {offsets = [0, 64], sizes = [8, 64], strides = [1, 1]} : vector<8x256xf32> to vector<8x64xf32>
    %440 = arith.negf %439 : vector<8x64xf32>
    %441 = math.exp %440 : vector<8x64xf32>
    %cst_93 = arith.constant 1.000000e+00 : f32
    %442 = vector.broadcast %cst_93 : f32 to vector<8x64xf32>
    %443 = arith.addf %442, %441 : vector<8x64xf32>
    %444 = arith.divf %442, %443 : vector<8x64xf32>
    %445 = vector.extract_strided_slice %432 {offsets = [0, 128], sizes = [8, 64], strides = [1, 1]} : vector<8x256xf32> to vector<8x64xf32>
    %446 = math.tanh %445 : vector<8x64xf32>
    %447 = vector.extract_strided_slice %432 {offsets = [0, 192], sizes = [8, 64], strides = [1, 1]} : vector<8x256xf32> to vector<8x64xf32>
    %448 = arith.negf %447 : vector<8x64xf32>
    %449 = math.exp %448 : vector<8x64xf32>
    %cst_94 = arith.constant 1.000000e+00 : f32
    %450 = vector.broadcast %cst_94 : f32 to vector<8x64xf32>
    %451 = arith.addf %450, %449 : vector<8x64xf32>
    %452 = arith.divf %450, %451 : vector<8x64xf32>
    %453 = arith.mulf %444, %423 : vector<8x64xf32>
    %454 = arith.mulf %438, %446 : vector<8x64xf32>
    %455 = arith.addf %453, %454 : vector<8x64xf32>
    %456 = math.tanh %455 : vector<8x64xf32>
    %457 = arith.mulf %452, %456 : vector<8x64xf32>
    %c14_i32 = arith.constant 14 : i32
    %c8_i32_95 = arith.constant 8 : i32
    %458 = arith.muli %c14_i32, %c8_i32_95 : i32
    %459 = tpu.assume_multiple %458, 8 : i32
    %460 = arith.index_cast %459 : i32 to index
    %c0_96 = arith.constant 0 : index
    %461 = vector.load %arg7[%460, %c0_96] : memref<224x256xf32, #tpu.memory_space<vmem>>, vector<8x256xf32>
    %462 = arith.truncf %457 : vector<8x64xf32> to vector<8x64xbf16>
    %cst_97 = arith.constant dense<0.000000e+00> : vector<8x256xf32>
    %463 = tpu.matmul %462, %7, %cst_97 {dimension_numbers = #tpu.dot_dimension_numbers<[1], [0], [0], [1], [0, 0, 1, 1], [], []>} : vector<8x64xbf16>, vector<64x256xbf16>, vector<8x256xf32> -> vector<8x256xf32>
    %464 = arith.addf %461, %463 : vector<8x256xf32>
    %465 = vector.extract_strided_slice %464 {offsets = [0, 0], sizes = [8, 64], strides = [1, 1]} : vector<8x256xf32> to vector<8x64xf32>
    %466 = arith.negf %465 : vector<8x64xf32>
    %467 = math.exp %466 : vector<8x64xf32>
    %cst_98 = arith.constant 1.000000e+00 : f32
    %468 = vector.broadcast %cst_98 : f32 to vector<8x64xf32>
    %469 = arith.addf %468, %467 : vector<8x64xf32>
    %470 = arith.divf %468, %469 : vector<8x64xf32>
    %471 = vector.extract_strided_slice %464 {offsets = [0, 64], sizes = [8, 64], strides = [1, 1]} : vector<8x256xf32> to vector<8x64xf32>
    %472 = arith.negf %471 : vector<8x64xf32>
    %473 = math.exp %472 : vector<8x64xf32>
    %cst_99 = arith.constant 1.000000e+00 : f32
    %474 = vector.broadcast %cst_99 : f32 to vector<8x64xf32>
    %475 = arith.addf %474, %473 : vector<8x64xf32>
    %476 = arith.divf %474, %475 : vector<8x64xf32>
    %477 = vector.extract_strided_slice %464 {offsets = [0, 128], sizes = [8, 64], strides = [1, 1]} : vector<8x256xf32> to vector<8x64xf32>
    %478 = math.tanh %477 : vector<8x64xf32>
    %479 = vector.extract_strided_slice %464 {offsets = [0, 192], sizes = [8, 64], strides = [1, 1]} : vector<8x256xf32> to vector<8x64xf32>
    %480 = arith.negf %479 : vector<8x64xf32>
    %481 = math.exp %480 : vector<8x64xf32>
    %cst_100 = arith.constant 1.000000e+00 : f32
    %482 = vector.broadcast %cst_100 : f32 to vector<8x64xf32>
    %483 = arith.addf %482, %481 : vector<8x64xf32>
    %484 = arith.divf %482, %483 : vector<8x64xf32>
    %485 = arith.mulf %476, %455 : vector<8x64xf32>
    %486 = arith.mulf %470, %478 : vector<8x64xf32>
    %487 = arith.addf %485, %486 : vector<8x64xf32>
    %488 = math.tanh %487 : vector<8x64xf32>
    %489 = arith.mulf %484, %488 : vector<8x64xf32>
    %c15_i32 = arith.constant 15 : i32
    %c8_i32_101 = arith.constant 8 : i32
    %490 = arith.muli %c15_i32, %c8_i32_101 : i32
    %491 = tpu.assume_multiple %490, 8 : i32
    %492 = arith.index_cast %491 : i32 to index
    %c0_102 = arith.constant 0 : index
    %493 = vector.load %arg7[%492, %c0_102] : memref<224x256xf32, #tpu.memory_space<vmem>>, vector<8x256xf32>
    %494 = arith.truncf %489 : vector<8x64xf32> to vector<8x64xbf16>
    %cst_103 = arith.constant dense<0.000000e+00> : vector<8x256xf32>
    %495 = tpu.matmul %494, %7, %cst_103 {dimension_numbers = #tpu.dot_dimension_numbers<[1], [0], [0], [1], [0, 0, 1, 1], [], []>} : vector<8x64xbf16>, vector<64x256xbf16>, vector<8x256xf32> -> vector<8x256xf32>
    %496 = arith.addf %493, %495 : vector<8x256xf32>
    %497 = vector.extract_strided_slice %496 {offsets = [0, 0], sizes = [8, 64], strides = [1, 1]} : vector<8x256xf32> to vector<8x64xf32>
    %498 = arith.negf %497 : vector<8x64xf32>
    %499 = math.exp %498 : vector<8x64xf32>
    %cst_104 = arith.constant 1.000000e+00 : f32
    %500 = vector.broadcast %cst_104 : f32 to vector<8x64xf32>
    %501 = arith.addf %500, %499 : vector<8x64xf32>
    %502 = arith.divf %500, %501 : vector<8x64xf32>
    %503 = vector.extract_strided_slice %496 {offsets = [0, 64], sizes = [8, 64], strides = [1, 1]} : vector<8x256xf32> to vector<8x64xf32>
    %504 = arith.negf %503 : vector<8x64xf32>
    %505 = math.exp %504 : vector<8x64xf32>
    %cst_105 = arith.constant 1.000000e+00 : f32
    %506 = vector.broadcast %cst_105 : f32 to vector<8x64xf32>
    %507 = arith.addf %506, %505 : vector<8x64xf32>
    %508 = arith.divf %506, %507 : vector<8x64xf32>
    %509 = vector.extract_strided_slice %496 {offsets = [0, 128], sizes = [8, 64], strides = [1, 1]} : vector<8x256xf32> to vector<8x64xf32>
    %510 = math.tanh %509 : vector<8x64xf32>
    %511 = vector.extract_strided_slice %496 {offsets = [0, 192], sizes = [8, 64], strides = [1, 1]} : vector<8x256xf32> to vector<8x64xf32>
    %512 = arith.negf %511 : vector<8x64xf32>
    %513 = math.exp %512 : vector<8x64xf32>
    %cst_106 = arith.constant 1.000000e+00 : f32
    %514 = vector.broadcast %cst_106 : f32 to vector<8x64xf32>
    %515 = arith.addf %514, %513 : vector<8x64xf32>
    %516 = arith.divf %514, %515 : vector<8x64xf32>
    %517 = arith.mulf %508, %487 : vector<8x64xf32>
    %518 = arith.mulf %502, %510 : vector<8x64xf32>
    %519 = arith.addf %517, %518 : vector<8x64xf32>
    %520 = math.tanh %519 : vector<8x64xf32>
    %521 = arith.mulf %516, %520 : vector<8x64xf32>
    %c16_i32 = arith.constant 16 : i32
    %c8_i32_107 = arith.constant 8 : i32
    %522 = arith.muli %c16_i32, %c8_i32_107 : i32
    %523 = tpu.assume_multiple %522, 8 : i32
    %524 = arith.index_cast %523 : i32 to index
    %c0_108 = arith.constant 0 : index
    %525 = vector.load %arg7[%524, %c0_108] : memref<224x256xf32, #tpu.memory_space<vmem>>, vector<8x256xf32>
    %526 = arith.truncf %521 : vector<8x64xf32> to vector<8x64xbf16>
    %cst_109 = arith.constant dense<0.000000e+00> : vector<8x256xf32>
    %527 = tpu.matmul %526, %7, %cst_109 {dimension_numbers = #tpu.dot_dimension_numbers<[1], [0], [0], [1], [0, 0, 1, 1], [], []>} : vector<8x64xbf16>, vector<64x256xbf16>, vector<8x256xf32> -> vector<8x256xf32>
    %528 = arith.addf %525, %527 : vector<8x256xf32>
    %529 = vector.extract_strided_slice %528 {offsets = [0, 0], sizes = [8, 64], strides = [1, 1]} : vector<8x256xf32> to vector<8x64xf32>
    %530 = arith.negf %529 : vector<8x64xf32>
    %531 = math.exp %530 : vector<8x64xf32>
    %cst_110 = arith.constant 1.000000e+00 : f32
    %532 = vector.broadcast %cst_110 : f32 to vector<8x64xf32>
    %533 = arith.addf %532, %531 : vector<8x64xf32>
    %534 = arith.divf %532, %533 : vector<8x64xf32>
    %535 = vector.extract_strided_slice %528 {offsets = [0, 64], sizes = [8, 64], strides = [1, 1]} : vector<8x256xf32> to vector<8x64xf32>
    %536 = arith.negf %535 : vector<8x64xf32>
    %537 = math.exp %536 : vector<8x64xf32>
    %cst_111 = arith.constant 1.000000e+00 : f32
    %538 = vector.broadcast %cst_111 : f32 to vector<8x64xf32>
    %539 = arith.addf %538, %537 : vector<8x64xf32>
    %540 = arith.divf %538, %539 : vector<8x64xf32>
    %541 = vector.extract_strided_slice %528 {offsets = [0, 128], sizes = [8, 64], strides = [1, 1]} : vector<8x256xf32> to vector<8x64xf32>
    %542 = math.tanh %541 : vector<8x64xf32>
    %543 = vector.extract_strided_slice %528 {offsets = [0, 192], sizes = [8, 64], strides = [1, 1]} : vector<8x256xf32> to vector<8x64xf32>
    %544 = arith.negf %543 : vector<8x64xf32>
    %545 = math.exp %544 : vector<8x64xf32>
    %cst_112 = arith.constant 1.000000e+00 : f32
    %546 = vector.broadcast %cst_112 : f32 to vector<8x64xf32>
    %547 = arith.addf %546, %545 : vector<8x64xf32>
    %548 = arith.divf %546, %547 : vector<8x64xf32>
    %549 = arith.mulf %540, %519 : vector<8x64xf32>
    %550 = arith.mulf %534, %542 : vector<8x64xf32>
    %551 = arith.addf %549, %550 : vector<8x64xf32>
    %552 = math.tanh %551 : vector<8x64xf32>
    %553 = arith.mulf %548, %552 : vector<8x64xf32>
    %c17_i32 = arith.constant 17 : i32
    %c8_i32_113 = arith.constant 8 : i32
    %554 = arith.muli %c17_i32, %c8_i32_113 : i32
    %555 = tpu.assume_multiple %554, 8 : i32
    %556 = arith.index_cast %555 : i32 to index
    %c0_114 = arith.constant 0 : index
    %557 = vector.load %arg7[%556, %c0_114] : memref<224x256xf32, #tpu.memory_space<vmem>>, vector<8x256xf32>
    %558 = arith.truncf %553 : vector<8x64xf32> to vector<8x64xbf16>
    %cst_115 = arith.constant dense<0.000000e+00> : vector<8x256xf32>
    %559 = tpu.matmul %558, %7, %cst_115 {dimension_numbers = #tpu.dot_dimension_numbers<[1], [0], [0], [1], [0, 0, 1, 1], [], []>} : vector<8x64xbf16>, vector<64x256xbf16>, vector<8x256xf32> -> vector<8x256xf32>
    %560 = arith.addf %557, %559 : vector<8x256xf32>
    %561 = vector.extract_strided_slice %560 {offsets = [0, 0], sizes = [8, 64], strides = [1, 1]} : vector<8x256xf32> to vector<8x64xf32>
    %562 = arith.negf %561 : vector<8x64xf32>
    %563 = math.exp %562 : vector<8x64xf32>
    %cst_116 = arith.constant 1.000000e+00 : f32
    %564 = vector.broadcast %cst_116 : f32 to vector<8x64xf32>
    %565 = arith.addf %564, %563 : vector<8x64xf32>
    %566 = arith.divf %564, %565 : vector<8x64xf32>
    %567 = vector.extract_strided_slice %560 {offsets = [0, 64], sizes = [8, 64], strides = [1, 1]} : vector<8x256xf32> to vector<8x64xf32>
    %568 = arith.negf %567 : vector<8x64xf32>
    %569 = math.exp %568 : vector<8x64xf32>
    %cst_117 = arith.constant 1.000000e+00 : f32
    %570 = vector.broadcast %cst_117 : f32 to vector<8x64xf32>
    %571 = arith.addf %570, %569 : vector<8x64xf32>
    %572 = arith.divf %570, %571 : vector<8x64xf32>
    %573 = vector.extract_strided_slice %560 {offsets = [0, 128], sizes = [8, 64], strides = [1, 1]} : vector<8x256xf32> to vector<8x64xf32>
    %574 = math.tanh %573 : vector<8x64xf32>
    %575 = vector.extract_strided_slice %560 {offsets = [0, 192], sizes = [8, 64], strides = [1, 1]} : vector<8x256xf32> to vector<8x64xf32>
    %576 = arith.negf %575 : vector<8x64xf32>
    %577 = math.exp %576 : vector<8x64xf32>
    %cst_118 = arith.constant 1.000000e+00 : f32
    %578 = vector.broadcast %cst_118 : f32 to vector<8x64xf32>
    %579 = arith.addf %578, %577 : vector<8x64xf32>
    %580 = arith.divf %578, %579 : vector<8x64xf32>
    %581 = arith.mulf %572, %551 : vector<8x64xf32>
    %582 = arith.mulf %566, %574 : vector<8x64xf32>
    %583 = arith.addf %581, %582 : vector<8x64xf32>
    %584 = math.tanh %583 : vector<8x64xf32>
    %585 = arith.mulf %580, %584 : vector<8x64xf32>
    %c18_i32 = arith.constant 18 : i32
    %c8_i32_119 = arith.constant 8 : i32
    %586 = arith.muli %c18_i32, %c8_i32_119 : i32
    %587 = tpu.assume_multiple %586, 8 : i32
    %588 = arith.index_cast %587 : i32 to index
    %c0_120 = arith.constant 0 : index
    %589 = vector.load %arg7[%588, %c0_120] : memref<224x256xf32, #tpu.memory_space<vmem>>, vector<8x256xf32>
    %590 = arith.truncf %585 : vector<8x64xf32> to vector<8x64xbf16>
    %cst_121 = arith.constant dense<0.000000e+00> : vector<8x256xf32>
    %591 = tpu.matmul %590, %7, %cst_121 {dimension_numbers = #tpu.dot_dimension_numbers<[1], [0], [0], [1], [0, 0, 1, 1], [], []>} : vector<8x64xbf16>, vector<64x256xbf16>, vector<8x256xf32> -> vector<8x256xf32>
    %592 = arith.addf %589, %591 : vector<8x256xf32>
    %593 = vector.extract_strided_slice %592 {offsets = [0, 0], sizes = [8, 64], strides = [1, 1]} : vector<8x256xf32> to vector<8x64xf32>
    %594 = arith.negf %593 : vector<8x64xf32>
    %595 = math.exp %594 : vector<8x64xf32>
    %cst_122 = arith.constant 1.000000e+00 : f32
    %596 = vector.broadcast %cst_122 : f32 to vector<8x64xf32>
    %597 = arith.addf %596, %595 : vector<8x64xf32>
    %598 = arith.divf %596, %597 : vector<8x64xf32>
    %599 = vector.extract_strided_slice %592 {offsets = [0, 64], sizes = [8, 64], strides = [1, 1]} : vector<8x256xf32> to vector<8x64xf32>
    %600 = arith.negf %599 : vector<8x64xf32>
    %601 = math.exp %600 : vector<8x64xf32>
    %cst_123 = arith.constant 1.000000e+00 : f32
    %602 = vector.broadcast %cst_123 : f32 to vector<8x64xf32>
    %603 = arith.addf %602, %601 : vector<8x64xf32>
    %604 = arith.divf %602, %603 : vector<8x64xf32>
    %605 = vector.extract_strided_slice %592 {offsets = [0, 128], sizes = [8, 64], strides = [1, 1]} : vector<8x256xf32> to vector<8x64xf32>
    %606 = math.tanh %605 : vector<8x64xf32>
    %607 = vector.extract_strided_slice %592 {offsets = [0, 192], sizes = [8, 64], strides = [1, 1]} : vector<8x256xf32> to vector<8x64xf32>
    %608 = arith.negf %607 : vector<8x64xf32>
    %609 = math.exp %608 : vector<8x64xf32>
    %cst_124 = arith.constant 1.000000e+00 : f32
    %610 = vector.broadcast %cst_124 : f32 to vector<8x64xf32>
    %611 = arith.addf %610, %609 : vector<8x64xf32>
    %612 = arith.divf %610, %611 : vector<8x64xf32>
    %613 = arith.mulf %604, %583 : vector<8x64xf32>
    %614 = arith.mulf %598, %606 : vector<8x64xf32>
    %615 = arith.addf %613, %614 : vector<8x64xf32>
    %616 = math.tanh %615 : vector<8x64xf32>
    %617 = arith.mulf %612, %616 : vector<8x64xf32>
    %c19_i32 = arith.constant 19 : i32
    %c8_i32_125 = arith.constant 8 : i32
    %618 = arith.muli %c19_i32, %c8_i32_125 : i32
    %619 = tpu.assume_multiple %618, 8 : i32
    %620 = arith.index_cast %619 : i32 to index
    %c0_126 = arith.constant 0 : index
    %621 = vector.load %arg7[%620, %c0_126] : memref<224x256xf32, #tpu.memory_space<vmem>>, vector<8x256xf32>
    %622 = arith.truncf %617 : vector<8x64xf32> to vector<8x64xbf16>
    %cst_127 = arith.constant dense<0.000000e+00> : vector<8x256xf32>
    %623 = tpu.matmul %622, %7, %cst_127 {dimension_numbers = #tpu.dot_dimension_numbers<[1], [0], [0], [1], [0, 0, 1, 1], [], []>} : vector<8x64xbf16>, vector<64x256xbf16>, vector<8x256xf32> -> vector<8x256xf32>
    %624 = arith.addf %621, %623 : vector<8x256xf32>
    %625 = vector.extract_strided_slice %624 {offsets = [0, 0], sizes = [8, 64], strides = [1, 1]} : vector<8x256xf32> to vector<8x64xf32>
    %626 = arith.negf %625 : vector<8x64xf32>
    %627 = math.exp %626 : vector<8x64xf32>
    %cst_128 = arith.constant 1.000000e+00 : f32
    %628 = vector.broadcast %cst_128 : f32 to vector<8x64xf32>
    %629 = arith.addf %628, %627 : vector<8x64xf32>
    %630 = arith.divf %628, %629 : vector<8x64xf32>
    %631 = vector.extract_strided_slice %624 {offsets = [0, 64], sizes = [8, 64], strides = [1, 1]} : vector<8x256xf32> to vector<8x64xf32>
    %632 = arith.negf %631 : vector<8x64xf32>
    %633 = math.exp %632 : vector<8x64xf32>
    %cst_129 = arith.constant 1.000000e+00 : f32
    %634 = vector.broadcast %cst_129 : f32 to vector<8x64xf32>
    %635 = arith.addf %634, %633 : vector<8x64xf32>
    %636 = arith.divf %634, %635 : vector<8x64xf32>
    %637 = vector.extract_strided_slice %624 {offsets = [0, 128], sizes = [8, 64], strides = [1, 1]} : vector<8x256xf32> to vector<8x64xf32>
    %638 = math.tanh %637 : vector<8x64xf32>
    %639 = vector.extract_strided_slice %624 {offsets = [0, 192], sizes = [8, 64], strides = [1, 1]} : vector<8x256xf32> to vector<8x64xf32>
    %640 = arith.negf %639 : vector<8x64xf32>
    %641 = math.exp %640 : vector<8x64xf32>
    %cst_130 = arith.constant 1.000000e+00 : f32
    %642 = vector.broadcast %cst_130 : f32 to vector<8x64xf32>
    %643 = arith.addf %642, %641 : vector<8x64xf32>
    %644 = arith.divf %642, %643 : vector<8x64xf32>
    %645 = arith.mulf %636, %615 : vector<8x64xf32>
    %646 = arith.mulf %630, %638 : vector<8x64xf32>
    %647 = arith.addf %645, %646 : vector<8x64xf32>
    %648 = math.tanh %647 : vector<8x64xf32>
    %649 = arith.mulf %644, %648 : vector<8x64xf32>
    %c20_i32 = arith.constant 20 : i32
    %c8_i32_131 = arith.constant 8 : i32
    %650 = arith.muli %c20_i32, %c8_i32_131 : i32
    %651 = tpu.assume_multiple %650, 8 : i32
    %652 = arith.index_cast %651 : i32 to index
    %c0_132 = arith.constant 0 : index
    %653 = vector.load %arg7[%652, %c0_132] : memref<224x256xf32, #tpu.memory_space<vmem>>, vector<8x256xf32>
    %654 = arith.truncf %649 : vector<8x64xf32> to vector<8x64xbf16>
    %cst_133 = arith.constant dense<0.000000e+00> : vector<8x256xf32>
    %655 = tpu.matmul %654, %7, %cst_133 {dimension_numbers = #tpu.dot_dimension_numbers<[1], [0], [0], [1], [0, 0, 1, 1], [], []>} : vector<8x64xbf16>, vector<64x256xbf16>, vector<8x256xf32> -> vector<8x256xf32>
    %656 = arith.addf %653, %655 : vector<8x256xf32>
    %657 = vector.extract_strided_slice %656 {offsets = [0, 0], sizes = [8, 64], strides = [1, 1]} : vector<8x256xf32> to vector<8x64xf32>
    %658 = arith.negf %657 : vector<8x64xf32>
    %659 = math.exp %658 : vector<8x64xf32>
    %cst_134 = arith.constant 1.000000e+00 : f32
    %660 = vector.broadcast %cst_134 : f32 to vector<8x64xf32>
    %661 = arith.addf %660, %659 : vector<8x64xf32>
    %662 = arith.divf %660, %661 : vector<8x64xf32>
    %663 = vector.extract_strided_slice %656 {offsets = [0, 64], sizes = [8, 64], strides = [1, 1]} : vector<8x256xf32> to vector<8x64xf32>
    %664 = arith.negf %663 : vector<8x64xf32>
    %665 = math.exp %664 : vector<8x64xf32>
    %cst_135 = arith.constant 1.000000e+00 : f32
    %666 = vector.broadcast %cst_135 : f32 to vector<8x64xf32>
    %667 = arith.addf %666, %665 : vector<8x64xf32>
    %668 = arith.divf %666, %667 : vector<8x64xf32>
    %669 = vector.extract_strided_slice %656 {offsets = [0, 128], sizes = [8, 64], strides = [1, 1]} : vector<8x256xf32> to vector<8x64xf32>
    %670 = math.tanh %669 : vector<8x64xf32>
    %671 = vector.extract_strided_slice %656 {offsets = [0, 192], sizes = [8, 64], strides = [1, 1]} : vector<8x256xf32> to vector<8x64xf32>
    %672 = arith.negf %671 : vector<8x64xf32>
    %673 = math.exp %672 : vector<8x64xf32>
    %cst_136 = arith.constant 1.000000e+00 : f32
    %674 = vector.broadcast %cst_136 : f32 to vector<8x64xf32>
    %675 = arith.addf %674, %673 : vector<8x64xf32>
    %676 = arith.divf %674, %675 : vector<8x64xf32>
    %677 = arith.mulf %668, %647 : vector<8x64xf32>
    %678 = arith.mulf %662, %670 : vector<8x64xf32>
    %679 = arith.addf %677, %678 : vector<8x64xf32>
    %680 = math.tanh %679 : vector<8x64xf32>
    %681 = arith.mulf %676, %680 : vector<8x64xf32>
    %c21_i32 = arith.constant 21 : i32
    %c8_i32_137 = arith.constant 8 : i32
    %682 = arith.muli %c21_i32, %c8_i32_137 : i32
    %683 = tpu.assume_multiple %682, 8 : i32
    %684 = arith.index_cast %683 : i32 to index
    %c0_138 = arith.constant 0 : index
    %685 = vector.load %arg7[%684, %c0_138] : memref<224x256xf32, #tpu.memory_space<vmem>>, vector<8x256xf32>
    %686 = arith.truncf %681 : vector<8x64xf32> to vector<8x64xbf16>
    %cst_139 = arith.constant dense<0.000000e+00> : vector<8x256xf32>
    %687 = tpu.matmul %686, %7, %cst_139 {dimension_numbers = #tpu.dot_dimension_numbers<[1], [0], [0], [1], [0, 0, 1, 1], [], []>} : vector<8x64xbf16>, vector<64x256xbf16>, vector<8x256xf32> -> vector<8x256xf32>
    %688 = arith.addf %685, %687 : vector<8x256xf32>
    %689 = vector.extract_strided_slice %688 {offsets = [0, 0], sizes = [8, 64], strides = [1, 1]} : vector<8x256xf32> to vector<8x64xf32>
    %690 = arith.negf %689 : vector<8x64xf32>
    %691 = math.exp %690 : vector<8x64xf32>
    %cst_140 = arith.constant 1.000000e+00 : f32
    %692 = vector.broadcast %cst_140 : f32 to vector<8x64xf32>
    %693 = arith.addf %692, %691 : vector<8x64xf32>
    %694 = arith.divf %692, %693 : vector<8x64xf32>
    %695 = vector.extract_strided_slice %688 {offsets = [0, 64], sizes = [8, 64], strides = [1, 1]} : vector<8x256xf32> to vector<8x64xf32>
    %696 = arith.negf %695 : vector<8x64xf32>
    %697 = math.exp %696 : vector<8x64xf32>
    %cst_141 = arith.constant 1.000000e+00 : f32
    %698 = vector.broadcast %cst_141 : f32 to vector<8x64xf32>
    %699 = arith.addf %698, %697 : vector<8x64xf32>
    %700 = arith.divf %698, %699 : vector<8x64xf32>
    %701 = vector.extract_strided_slice %688 {offsets = [0, 128], sizes = [8, 64], strides = [1, 1]} : vector<8x256xf32> to vector<8x64xf32>
    %702 = math.tanh %701 : vector<8x64xf32>
    %703 = vector.extract_strided_slice %688 {offsets = [0, 192], sizes = [8, 64], strides = [1, 1]} : vector<8x256xf32> to vector<8x64xf32>
    %704 = arith.negf %703 : vector<8x64xf32>
    %705 = math.exp %704 : vector<8x64xf32>
    %cst_142 = arith.constant 1.000000e+00 : f32
    %706 = vector.broadcast %cst_142 : f32 to vector<8x64xf32>
    %707 = arith.addf %706, %705 : vector<8x64xf32>
    %708 = arith.divf %706, %707 : vector<8x64xf32>
    %709 = arith.mulf %700, %679 : vector<8x64xf32>
    %710 = arith.mulf %694, %702 : vector<8x64xf32>
    %711 = arith.addf %709, %710 : vector<8x64xf32>
    %712 = math.tanh %711 : vector<8x64xf32>
    %713 = arith.mulf %708, %712 : vector<8x64xf32>
    %c22_i32 = arith.constant 22 : i32
    %c8_i32_143 = arith.constant 8 : i32
    %714 = arith.muli %c22_i32, %c8_i32_143 : i32
    %715 = tpu.assume_multiple %714, 8 : i32
    %716 = arith.index_cast %715 : i32 to index
    %c0_144 = arith.constant 0 : index
    %717 = vector.load %arg7[%716, %c0_144] : memref<224x256xf32, #tpu.memory_space<vmem>>, vector<8x256xf32>
    %718 = arith.truncf %713 : vector<8x64xf32> to vector<8x64xbf16>
    %cst_145 = arith.constant dense<0.000000e+00> : vector<8x256xf32>
    %719 = tpu.matmul %718, %7, %cst_145 {dimension_numbers = #tpu.dot_dimension_numbers<[1], [0], [0], [1], [0, 0, 1, 1], [], []>} : vector<8x64xbf16>, vector<64x256xbf16>, vector<8x256xf32> -> vector<8x256xf32>
    %720 = arith.addf %717, %719 : vector<8x256xf32>
    %721 = vector.extract_strided_slice %720 {offsets = [0, 0], sizes = [8, 64], strides = [1, 1]} : vector<8x256xf32> to vector<8x64xf32>
    %722 = arith.negf %721 : vector<8x64xf32>
    %723 = math.exp %722 : vector<8x64xf32>
    %cst_146 = arith.constant 1.000000e+00 : f32
    %724 = vector.broadcast %cst_146 : f32 to vector<8x64xf32>
    %725 = arith.addf %724, %723 : vector<8x64xf32>
    %726 = arith.divf %724, %725 : vector<8x64xf32>
    %727 = vector.extract_strided_slice %720 {offsets = [0, 64], sizes = [8, 64], strides = [1, 1]} : vector<8x256xf32> to vector<8x64xf32>
    %728 = arith.negf %727 : vector<8x64xf32>
    %729 = math.exp %728 : vector<8x64xf32>
    %cst_147 = arith.constant 1.000000e+00 : f32
    %730 = vector.broadcast %cst_147 : f32 to vector<8x64xf32>
    %731 = arith.addf %730, %729 : vector<8x64xf32>
    %732 = arith.divf %730, %731 : vector<8x64xf32>
    %733 = vector.extract_strided_slice %720 {offsets = [0, 128], sizes = [8, 64], strides = [1, 1]} : vector<8x256xf32> to vector<8x64xf32>
    %734 = math.tanh %733 : vector<8x64xf32>
    %735 = vector.extract_strided_slice %720 {offsets = [0, 192], sizes = [8, 64], strides = [1, 1]} : vector<8x256xf32> to vector<8x64xf32>
    %736 = arith.negf %735 : vector<8x64xf32>
    %737 = math.exp %736 : vector<8x64xf32>
    %cst_148 = arith.constant 1.000000e+00 : f32
    %738 = vector.broadcast %cst_148 : f32 to vector<8x64xf32>
    %739 = arith.addf %738, %737 : vector<8x64xf32>
    %740 = arith.divf %738, %739 : vector<8x64xf32>
    %741 = arith.mulf %732, %711 : vector<8x64xf32>
    %742 = arith.mulf %726, %734 : vector<8x64xf32>
    %743 = arith.addf %741, %742 : vector<8x64xf32>
    %744 = math.tanh %743 : vector<8x64xf32>
    %745 = arith.mulf %740, %744 : vector<8x64xf32>
    %c23_i32 = arith.constant 23 : i32
    %c8_i32_149 = arith.constant 8 : i32
    %746 = arith.muli %c23_i32, %c8_i32_149 : i32
    %747 = tpu.assume_multiple %746, 8 : i32
    %748 = arith.index_cast %747 : i32 to index
    %c0_150 = arith.constant 0 : index
    %749 = vector.load %arg7[%748, %c0_150] : memref<224x256xf32, #tpu.memory_space<vmem>>, vector<8x256xf32>
    %750 = arith.truncf %745 : vector<8x64xf32> to vector<8x64xbf16>
    %cst_151 = arith.constant dense<0.000000e+00> : vector<8x256xf32>
    %751 = tpu.matmul %750, %7, %cst_151 {dimension_numbers = #tpu.dot_dimension_numbers<[1], [0], [0], [1], [0, 0, 1, 1], [], []>} : vector<8x64xbf16>, vector<64x256xbf16>, vector<8x256xf32> -> vector<8x256xf32>
    %752 = arith.addf %749, %751 : vector<8x256xf32>
    %753 = vector.extract_strided_slice %752 {offsets = [0, 0], sizes = [8, 64], strides = [1, 1]} : vector<8x256xf32> to vector<8x64xf32>
    %754 = arith.negf %753 : vector<8x64xf32>
    %755 = math.exp %754 : vector<8x64xf32>
    %cst_152 = arith.constant 1.000000e+00 : f32
    %756 = vector.broadcast %cst_152 : f32 to vector<8x64xf32>
    %757 = arith.addf %756, %755 : vector<8x64xf32>
    %758 = arith.divf %756, %757 : vector<8x64xf32>
    %759 = vector.extract_strided_slice %752 {offsets = [0, 64], sizes = [8, 64], strides = [1, 1]} : vector<8x256xf32> to vector<8x64xf32>
    %760 = arith.negf %759 : vector<8x64xf32>
    %761 = math.exp %760 : vector<8x64xf32>
    %cst_153 = arith.constant 1.000000e+00 : f32
    %762 = vector.broadcast %cst_153 : f32 to vector<8x64xf32>
    %763 = arith.addf %762, %761 : vector<8x64xf32>
    %764 = arith.divf %762, %763 : vector<8x64xf32>
    %765 = vector.extract_strided_slice %752 {offsets = [0, 128], sizes = [8, 64], strides = [1, 1]} : vector<8x256xf32> to vector<8x64xf32>
    %766 = math.tanh %765 : vector<8x64xf32>
    %767 = vector.extract_strided_slice %752 {offsets = [0, 192], sizes = [8, 64], strides = [1, 1]} : vector<8x256xf32> to vector<8x64xf32>
    %768 = arith.negf %767 : vector<8x64xf32>
    %769 = math.exp %768 : vector<8x64xf32>
    %cst_154 = arith.constant 1.000000e+00 : f32
    %770 = vector.broadcast %cst_154 : f32 to vector<8x64xf32>
    %771 = arith.addf %770, %769 : vector<8x64xf32>
    %772 = arith.divf %770, %771 : vector<8x64xf32>
    %773 = arith.mulf %764, %743 : vector<8x64xf32>
    %774 = arith.mulf %758, %766 : vector<8x64xf32>
    %775 = arith.addf %773, %774 : vector<8x64xf32>
    %776 = math.tanh %775 : vector<8x64xf32>
    %777 = arith.mulf %772, %776 : vector<8x64xf32>
    %c24_i32 = arith.constant 24 : i32
    %c8_i32_155 = arith.constant 8 : i32
    %778 = arith.muli %c24_i32, %c8_i32_155 : i32
    %779 = tpu.assume_multiple %778, 8 : i32
    %780 = arith.index_cast %779 : i32 to index
    %c0_156 = arith.constant 0 : index
    %781 = vector.load %arg7[%780, %c0_156] : memref<224x256xf32, #tpu.memory_space<vmem>>, vector<8x256xf32>
    %782 = arith.truncf %777 : vector<8x64xf32> to vector<8x64xbf16>
    %cst_157 = arith.constant dense<0.000000e+00> : vector<8x256xf32>
    %783 = tpu.matmul %782, %7, %cst_157 {dimension_numbers = #tpu.dot_dimension_numbers<[1], [0], [0], [1], [0, 0, 1, 1], [], []>} : vector<8x64xbf16>, vector<64x256xbf16>, vector<8x256xf32> -> vector<8x256xf32>
    %784 = arith.addf %781, %783 : vector<8x256xf32>
    %785 = vector.extract_strided_slice %784 {offsets = [0, 0], sizes = [8, 64], strides = [1, 1]} : vector<8x256xf32> to vector<8x64xf32>
    %786 = arith.negf %785 : vector<8x64xf32>
    %787 = math.exp %786 : vector<8x64xf32>
    %cst_158 = arith.constant 1.000000e+00 : f32
    %788 = vector.broadcast %cst_158 : f32 to vector<8x64xf32>
    %789 = arith.addf %788, %787 : vector<8x64xf32>
    %790 = arith.divf %788, %789 : vector<8x64xf32>
    %791 = vector.extract_strided_slice %784 {offsets = [0, 64], sizes = [8, 64], strides = [1, 1]} : vector<8x256xf32> to vector<8x64xf32>
    %792 = arith.negf %791 : vector<8x64xf32>
    %793 = math.exp %792 : vector<8x64xf32>
    %cst_159 = arith.constant 1.000000e+00 : f32
    %794 = vector.broadcast %cst_159 : f32 to vector<8x64xf32>
    %795 = arith.addf %794, %793 : vector<8x64xf32>
    %796 = arith.divf %794, %795 : vector<8x64xf32>
    %797 = vector.extract_strided_slice %784 {offsets = [0, 128], sizes = [8, 64], strides = [1, 1]} : vector<8x256xf32> to vector<8x64xf32>
    %798 = math.tanh %797 : vector<8x64xf32>
    %799 = vector.extract_strided_slice %784 {offsets = [0, 192], sizes = [8, 64], strides = [1, 1]} : vector<8x256xf32> to vector<8x64xf32>
    %800 = arith.negf %799 : vector<8x64xf32>
    %801 = math.exp %800 : vector<8x64xf32>
    %cst_160 = arith.constant 1.000000e+00 : f32
    %802 = vector.broadcast %cst_160 : f32 to vector<8x64xf32>
    %803 = arith.addf %802, %801 : vector<8x64xf32>
    %804 = arith.divf %802, %803 : vector<8x64xf32>
    %805 = arith.mulf %796, %775 : vector<8x64xf32>
    %806 = arith.mulf %790, %798 : vector<8x64xf32>
    %807 = arith.addf %805, %806 : vector<8x64xf32>
    %808 = math.tanh %807 : vector<8x64xf32>
    %809 = arith.mulf %804, %808 : vector<8x64xf32>
    %c25_i32 = arith.constant 25 : i32
    %c8_i32_161 = arith.constant 8 : i32
    %810 = arith.muli %c25_i32, %c8_i32_161 : i32
    %811 = tpu.assume_multiple %810, 8 : i32
    %812 = arith.index_cast %811 : i32 to index
    %c0_162 = arith.constant 0 : index
    %813 = vector.load %arg7[%812, %c0_162] : memref<224x256xf32, #tpu.memory_space<vmem>>, vector<8x256xf32>
    %814 = arith.truncf %809 : vector<8x64xf32> to vector<8x64xbf16>
    %cst_163 = arith.constant dense<0.000000e+00> : vector<8x256xf32>
    %815 = tpu.matmul %814, %7, %cst_163 {dimension_numbers = #tpu.dot_dimension_numbers<[1], [0], [0], [1], [0, 0, 1, 1], [], []>} : vector<8x64xbf16>, vector<64x256xbf16>, vector<8x256xf32> -> vector<8x256xf32>
    %816 = arith.addf %813, %815 : vector<8x256xf32>
    %817 = vector.extract_strided_slice %816 {offsets = [0, 0], sizes = [8, 64], strides = [1, 1]} : vector<8x256xf32> to vector<8x64xf32>
    %818 = arith.negf %817 : vector<8x64xf32>
    %819 = math.exp %818 : vector<8x64xf32>
    %cst_164 = arith.constant 1.000000e+00 : f32
    %820 = vector.broadcast %cst_164 : f32 to vector<8x64xf32>
    %821 = arith.addf %820, %819 : vector<8x64xf32>
    %822 = arith.divf %820, %821 : vector<8x64xf32>
    %823 = vector.extract_strided_slice %816 {offsets = [0, 64], sizes = [8, 64], strides = [1, 1]} : vector<8x256xf32> to vector<8x64xf32>
    %824 = arith.negf %823 : vector<8x64xf32>
    %825 = math.exp %824 : vector<8x64xf32>
    %cst_165 = arith.constant 1.000000e+00 : f32
    %826 = vector.broadcast %cst_165 : f32 to vector<8x64xf32>
    %827 = arith.addf %826, %825 : vector<8x64xf32>
    %828 = arith.divf %826, %827 : vector<8x64xf32>
    %829 = vector.extract_strided_slice %816 {offsets = [0, 128], sizes = [8, 64], strides = [1, 1]} : vector<8x256xf32> to vector<8x64xf32>
    %830 = math.tanh %829 : vector<8x64xf32>
    %831 = vector.extract_strided_slice %816 {offsets = [0, 192], sizes = [8, 64], strides = [1, 1]} : vector<8x256xf32> to vector<8x64xf32>
    %832 = arith.negf %831 : vector<8x64xf32>
    %833 = math.exp %832 : vector<8x64xf32>
    %cst_166 = arith.constant 1.000000e+00 : f32
    %834 = vector.broadcast %cst_166 : f32 to vector<8x64xf32>
    %835 = arith.addf %834, %833 : vector<8x64xf32>
    %836 = arith.divf %834, %835 : vector<8x64xf32>
    %837 = arith.mulf %828, %807 : vector<8x64xf32>
    %838 = arith.mulf %822, %830 : vector<8x64xf32>
    %839 = arith.addf %837, %838 : vector<8x64xf32>
    %840 = math.tanh %839 : vector<8x64xf32>
    %841 = arith.mulf %836, %840 : vector<8x64xf32>
    %c26_i32 = arith.constant 26 : i32
    %c8_i32_167 = arith.constant 8 : i32
    %842 = arith.muli %c26_i32, %c8_i32_167 : i32
    %843 = tpu.assume_multiple %842, 8 : i32
    %844 = arith.index_cast %843 : i32 to index
    %c0_168 = arith.constant 0 : index
    %845 = vector.load %arg7[%844, %c0_168] : memref<224x256xf32, #tpu.memory_space<vmem>>, vector<8x256xf32>
    %846 = arith.truncf %841 : vector<8x64xf32> to vector<8x64xbf16>
    %cst_169 = arith.constant dense<0.000000e+00> : vector<8x256xf32>
    %847 = tpu.matmul %846, %7, %cst_169 {dimension_numbers = #tpu.dot_dimension_numbers<[1], [0], [0], [1], [0, 0, 1, 1], [], []>} : vector<8x64xbf16>, vector<64x256xbf16>, vector<8x256xf32> -> vector<8x256xf32>
    %848 = arith.addf %845, %847 : vector<8x256xf32>
    %849 = vector.extract_strided_slice %848 {offsets = [0, 0], sizes = [8, 64], strides = [1, 1]} : vector<8x256xf32> to vector<8x64xf32>
    %850 = arith.negf %849 : vector<8x64xf32>
    %851 = math.exp %850 : vector<8x64xf32>
    %cst_170 = arith.constant 1.000000e+00 : f32
    %852 = vector.broadcast %cst_170 : f32 to vector<8x64xf32>
    %853 = arith.addf %852, %851 : vector<8x64xf32>
    %854 = arith.divf %852, %853 : vector<8x64xf32>
    %855 = vector.extract_strided_slice %848 {offsets = [0, 64], sizes = [8, 64], strides = [1, 1]} : vector<8x256xf32> to vector<8x64xf32>
    %856 = arith.negf %855 : vector<8x64xf32>
    %857 = math.exp %856 : vector<8x64xf32>
    %cst_171 = arith.constant 1.000000e+00 : f32
    %858 = vector.broadcast %cst_171 : f32 to vector<8x64xf32>
    %859 = arith.addf %858, %857 : vector<8x64xf32>
    %860 = arith.divf %858, %859 : vector<8x64xf32>
    %861 = vector.extract_strided_slice %848 {offsets = [0, 128], sizes = [8, 64], strides = [1, 1]} : vector<8x256xf32> to vector<8x64xf32>
    %862 = math.tanh %861 : vector<8x64xf32>
    %863 = vector.extract_strided_slice %848 {offsets = [0, 192], sizes = [8, 64], strides = [1, 1]} : vector<8x256xf32> to vector<8x64xf32>
    %864 = arith.negf %863 : vector<8x64xf32>
    %865 = math.exp %864 : vector<8x64xf32>
    %cst_172 = arith.constant 1.000000e+00 : f32
    %866 = vector.broadcast %cst_172 : f32 to vector<8x64xf32>
    %867 = arith.addf %866, %865 : vector<8x64xf32>
    %868 = arith.divf %866, %867 : vector<8x64xf32>
    %869 = arith.mulf %860, %839 : vector<8x64xf32>
    %870 = arith.mulf %854, %862 : vector<8x64xf32>
    %871 = arith.addf %869, %870 : vector<8x64xf32>
    %872 = math.tanh %871 : vector<8x64xf32>
    %873 = arith.mulf %868, %872 : vector<8x64xf32>
    %c27_i32 = arith.constant 27 : i32
    %c8_i32_173 = arith.constant 8 : i32
    %874 = arith.muli %c27_i32, %c8_i32_173 : i32
    %875 = tpu.assume_multiple %874, 8 : i32
    %876 = arith.index_cast %875 : i32 to index
    %c0_174 = arith.constant 0 : index
    %877 = vector.load %arg7[%876, %c0_174] : memref<224x256xf32, #tpu.memory_space<vmem>>, vector<8x256xf32>
    %878 = arith.truncf %873 : vector<8x64xf32> to vector<8x64xbf16>
    %cst_175 = arith.constant dense<0.000000e+00> : vector<8x256xf32>
    %879 = tpu.matmul %878, %7, %cst_175 {dimension_numbers = #tpu.dot_dimension_numbers<[1], [0], [0], [1], [0, 0, 1, 1], [], []>} : vector<8x64xbf16>, vector<64x256xbf16>, vector<8x256xf32> -> vector<8x256xf32>
    %880 = arith.addf %877, %879 : vector<8x256xf32>
    %881 = vector.extract_strided_slice %880 {offsets = [0, 0], sizes = [8, 64], strides = [1, 1]} : vector<8x256xf32> to vector<8x64xf32>
    %882 = arith.negf %881 : vector<8x64xf32>
    %883 = math.exp %882 : vector<8x64xf32>
    %cst_176 = arith.constant 1.000000e+00 : f32
    %884 = vector.broadcast %cst_176 : f32 to vector<8x64xf32>
    %885 = arith.addf %884, %883 : vector<8x64xf32>
    %886 = arith.divf %884, %885 : vector<8x64xf32>
    %887 = vector.extract_strided_slice %880 {offsets = [0, 64], sizes = [8, 64], strides = [1, 1]} : vector<8x256xf32> to vector<8x64xf32>
    %888 = arith.negf %887 : vector<8x64xf32>
    %889 = math.exp %888 : vector<8x64xf32>
    %cst_177 = arith.constant 1.000000e+00 : f32
    %890 = vector.broadcast %cst_177 : f32 to vector<8x64xf32>
    %891 = arith.addf %890, %889 : vector<8x64xf32>
    %892 = arith.divf %890, %891 : vector<8x64xf32>
    %893 = vector.extract_strided_slice %880 {offsets = [0, 128], sizes = [8, 64], strides = [1, 1]} : vector<8x256xf32> to vector<8x64xf32>
    %894 = math.tanh %893 : vector<8x64xf32>
    %895 = vector.extract_strided_slice %880 {offsets = [0, 192], sizes = [8, 64], strides = [1, 1]} : vector<8x256xf32> to vector<8x64xf32>
    %896 = arith.negf %895 : vector<8x64xf32>
    %897 = math.exp %896 : vector<8x64xf32>
    %cst_178 = arith.constant 1.000000e+00 : f32
    %898 = vector.broadcast %cst_178 : f32 to vector<8x64xf32>
    %899 = arith.addf %898, %897 : vector<8x64xf32>
    %900 = arith.divf %898, %899 : vector<8x64xf32>
    %901 = arith.mulf %892, %871 : vector<8x64xf32>
    %902 = arith.mulf %886, %894 : vector<8x64xf32>
    %903 = arith.addf %901, %902 : vector<8x64xf32>
    %904 = math.tanh %903 : vector<8x64xf32>
    %905 = arith.mulf %900, %904 : vector<8x64xf32>
    %c28_i32 = arith.constant 28 : i32
    %c0_179 = arith.constant 0 : index
    %c0_180 = arith.constant 0 : index
    %906 = vector.load %arg4[%c0_179, %c0_180] : memref<64x128xf32, #tpu.memory_space<vmem>>, vector<64x128xf32>
    %cst_181 = arith.constant dense<0.000000e+00> : vector<8x128xf32>
    %907 = tpu.matmul %905, %906, %cst_181 {dimension_numbers = #tpu.dot_dimension_numbers<[1], [0], [0], [1], [0, 0, 1, 1], [], []>} : vector<8x64xf32>, vector<64x128xf32>, vector<8x128xf32> -> vector<8x128xf32>
    %c0_182 = arith.constant 0 : index
    %c0_183 = arith.constant 0 : index
    %908 = vector.load %arg5[%c0_182, %c0_183] : memref<1x128xf32, #tpu.memory_space<vmem>>, vector<1x128xf32>
    %909 = vector.broadcast %908 : vector<1x128xf32> to vector<8x128xf32>
    %910 = arith.addf %907, %909 : vector<8x128xf32>
    %c0_184 = arith.constant 0 : index
    %c0_185 = arith.constant 0 : index
    %911 = vector.load %arg6[%c0_184, %c0_185] : memref<8x128xf32, #tpu.memory_space<vmem>>, vector<8x128xf32>
    tpu.vector_store %arg6[%c0_184, %c0_185], %910 {strides = array<i32>} : memref<8x128xf32, #tpu.memory_space<vmem>>, vector<8x128xf32>,
    return
  }
}

</mosaic_0001>

<llo_original>
// kernel: tpu_custom_call.1
$region0: #{tpu_custom_call.1}
  #allocation0 [shape = 'u32[]', space=smem, size = 0x4, offset = 0x4, fixed_abs, tag = 'smem constant byte address 0x4 - core index']
  #allocation1 [shape = 'u32[144,128]{1,0:T(1,128)}', space=vmem, size = 0x12000, scoped, tag = 'internal scratch']
  #allocation2 [shape = 'f32[224,256]{1,0:T(8,128)}', space=vmem, size = 0x38000, scoped, tag = 'scratch operand']
  %s0 = inlined_call_operand.vmem [shape: bf16[224,28], index: 0, kind: input, shape index: {}]
  %s1 = inlined_call_operand.hbm [shape: bf16[28,256], index: 1, kind: input, shape index: {}]
  %s2 = inlined_call_operand.vmem [shape: bf16[64,256], index: 2, kind: input, shape index: {}]
  %s3 = inlined_call_operand.vmem [shape: f32[1,256], index: 3, kind: input, shape index: {}]
  %s4 = inlined_call_operand.vmem [shape: f32[64,128], index: 4, kind: input, shape index: {}]
  %s5 = inlined_call_operand.vmem [shape: f32[1,128], index: 5, kind: input, shape index: {}]
  %s6 = inlined_call_operand.hbm [shape: f32[8,128], index: 6, kind: output, shape index: {}]
  %s7 = sld [smem:[#allocation0]]
  $region38: #{tpu_custom_call.1} parent=0
    _
  %s9 = ssub.s32 1, %s7
  %s10 = scalar_select 0, %s9, %s7
  $region1: #{tpu_custom_call.1} parent=0
    #allocation3 [shape = 'u8[16384]{0}', space=vmem, size = 0x4000, scoped, tag = 'input window, operand 1, single buffered']
    #allocation4 [shape = 's32[1]{0}', space=sflag, size = 0x4, scoped, tag = 'scoped memory for tpu_custom_call.1']
    #allocation5 [shape = 's32[1]{0}', space=sflag, size = 0x4, scoped, tag = 'scoped memory for tpu_custom_call.1']
    #allocation6 [shape = 'u8[4096]{0}', space=vmem, size = 0x1000, scoped, tag = 'output window, operand 0, single buffered']
    %11 = vsyncpa [#allocation4], 0
    %12 = vsyncpa [#allocation5], 0
    // Predicated region
    $region2: #{tpu_custom_call.1} parent=1 // pred_check
      _
    $region3: #{tpu_custom_call.1} parent=1 // pred_check_branch
      %14 = sbr.rel (0) target = $region5
    $region4: #{tpu_custom_call.1} parent=1 // pred_region
      _
    $region5: #{tpu_custom_call.1} parent=1 // pred_fallthru
      _
    // Predicated region
    $region6: #{tpu_custom_call.1} parent=1 // pred_check
      _
    $region7: #{tpu_custom_call.1} parent=1 // pred_check_branch
      %16 = sbr.rel (0) target = $region9
    $region8: #{tpu_custom_call.1} parent=1 // pred_region
      %s18 = ssub.s32 512, 512
      %19 = vsyncadd [#allocation4], %s18
      %s20 = sshll.u32 [#allocation3], 4
      %s21 = int_to_ptr.vmem [resolvable:$true] %s20
      %26 = dma.hbm_to_vmem [thread:$0]  %s1, 512, %s21, [#allocation4], 128, 128, 8
    $region9: #{tpu_custom_call.1} parent=1 // pred_fallthru
      _
    // Predicated region
    $region10: #{tpu_custom_call.1} parent=1 // pred_check
      _
    $region11: #{tpu_custom_call.1} parent=1 // pred_check_branch
      %28 = sbr.rel (0) target = $region13
    $region12: #{tpu_custom_call.1} parent=1 // pred_region
      _
    $region13: #{tpu_custom_call.1} parent=1 // pred_fallthru
      _
    // Predicated region
    $region14: #{tpu_custom_call.1} parent=1 // pred_check
      _
    $region15: #{tpu_custom_call.1} parent=1 // pred_check_branch
      %30 = sbr.rel (0) target = $region17
    $region16: #{tpu_custom_call.1} parent=1 // pred_region
      _
    $region17: #{tpu_custom_call.1} parent=1 // pred_fallthru
      _
    // Predicated region
    $region18: #{tpu_custom_call.1} parent=1 // pred_check
      _
    $region19: #{tpu_custom_call.1} parent=1 // pred_check_branch
      %32 = sbr.rel (0) target = $region21
    $region20: #{tpu_custom_call.1} parent=1 // pred_region
      _
    $region21: #{tpu_custom_call.1} parent=1 // pred_fallthru
      _
    // Predicated region
    $region22: #{tpu_custom_call.1} parent=1 // pred_check
      _
    $region23: #{tpu_custom_call.1} parent=1 // pred_check_branch
      %34 = sbr.rel (0) target = $region25
    $region24: #{tpu_custom_call.1} parent=1 // pred_region
      _
    $region25: #{tpu_custom_call.1} parent=1 // pred_fallthru
      _
    // Predicated region
    $region26: #{tpu_custom_call.1} parent=1 // pred_check
      _
    $region27: #{tpu_custom_call.1} parent=1 // pred_check_branch
      %36 = sbr.rel (0) target = $region29
    $region28: #{tpu_custom_call.1} parent=1 // pred_region
      %37 = dma.done [#allocation4], 512
    $region29: #{tpu_custom_call.1} parent=1 // pred_fallthru
      _
    %v39 = vld [vmem:[%s0] sm:$0xf]
    %v40 = vld [vmem:[%s0 + $0x4] sm:$0xf]
    %v41 = vld [vmem:[%s0 + $0x8] sm:$0xf]
    %v42 = vld [vmem:[%s0 + $0xc] sm:$0xf]
    %v43 = vld [vmem:[%s0 + $0x10] sm:$0xf]
    %v44 = vld [vmem:[%s0 + $0x14] sm:$0xf]
    %v45 = vld [vmem:[%s0 + $0x18] sm:$0xf]
    %v46 = vld [vmem:[%s0 + $0x1c] sm:$0xf]
    %v47 = vld [vmem:[%s0 + $0x20] sm:$0xf]
    %v48 = vld [vmem:[%s0 + $0x24] sm:$0xf]
    %v49 = vld [vmem:[%s0 + $0x28] sm:$0xf]
    %v50 = vld [vmem:[%s0 + $0x2c] sm:$0xf]
    %v51 = vld [vmem:[%s0 + $0x30] sm:$0xf]
    %v52 = vld [vmem:[%s0 + $0x34] sm:$0xf]
    %v53 = vld [vmem:[%s0 + $0x38] sm:$0xf]
    %v54 = vld [vmem:[%s0 + $0x3c] sm:$0xf]
    %v55 = vld [vmem:[%s0 + $0x40] sm:$0xf]
    %v56 = vld [vmem:[%s0 + $0x44] sm:$0xf]
    %v57 = vld [vmem:[%s0 + $0x48] sm:$0xf]
    %v58 = vld [vmem:[%s0 + $0x4c] sm:$0xf]
    %v59 = vld [vmem:[%s0 + $0x50] sm:$0xf]
    %v60 = vld [vmem:[%s0 + $0x54] sm:$0xf]
    %v61 = vld [vmem:[%s0 + $0x58] sm:$0xf]
    %v62 = vld [vmem:[%s0 + $0x5c] sm:$0xf]
    %v63 = vld [vmem:[%s0 + $0x60] sm:$0xf]
    %v64 = vld [vmem:[%s0 + $0x64] sm:$0xf]
    %v65 = vld [vmem:[%s0 + $0x68] sm:$0xf]
    %v66 = vld [vmem:[%s0 + $0x6c] sm:$0xf]
    %v67 = vld [vmem:[#allocation3] sm:$0xff]
    %v68 = vld [vmem:[#allocation3 + $0x8] sm:$0xff]
    %v69 = vld [vmem:[#allocation3 + $0x10] sm:$0xff]
    %v70 = vld [vmem:[#allocation3 + $0x18] sm:$0x33]
    %v71 = vld [vmem:[%s3] sm:$0x3]
    %v73 = vlaneseq
    %v74 = vshrl.u32 %v73, 7
    %v75 = vsub.s32 0, %v74
    %v76 = vrot.slane %v71, %v75
    %v77 = vlaneseq
    %v78 = vshrl.u32 %v77, 7
    %v79 = vsub.s32 1, %v78
    %v80 = vrot.slane %v71, %v79
    %v111 = vunpack.c.l.b16 %v39
    %v112 = vunpack.c.l.b16 %v40
    %v113 = vunpack.c.l.b16 %v41
    %v114 = vunpack.c.l.b16 %v42
    %v115 = vunpack.c.l.b16 %v43
    %v116 = vunpack.c.l.b16 %v44
    %v117 = vunpack.c.l.b16 %v45
    %v118 = vunpack.c.l.b16 %v46
    %v119 = vunpack.c.l.b16 %v47
    %v120 = vunpack.c.l.b16 %v48
    %v121 = vunpack.c.l.b16 %v49
    %v122 = vunpack.c.l.b16 %v50
    %v123 = vunpack.c.l.b16 %v51
    %v124 = vunpack.c.l.b16 %v52
    %v125 = vunpack.c.l.b16 %v53
    %v126 = vunpack.c.l.b16 %v54
    %v127 = vunpack.c.l.b16 %v55
    %v128 = vunpack.c.l.b16 %v56
    %v129 = vunpack.c.l.b16 %v57
    %v130 = vunpack.c.l.b16 %v58
    %v131 = vunpack.c.l.b16 %v59
    %v132 = vunpack.c.l.b16 %v60
    %v133 = vunpack.c.l.b16 %v61
    %v134 = vunpack.c.l.b16 %v62
    %v135 = vunpack.c.l.b16 %v63
    %v136 = vunpack.c.l.b16 %v64
    %v137 = vunpack.c.l.b16 %v65
    %v138 = vunpack.c.l.b16 %v66
    %v139 = vpack.c.b16 %v112, %v111
    %v140 = vpack.c.b16 %v114, %v113
    %v141 = vpack.c.b16 %v116, %v115
    %v142 = vpack.c.b16 %v118, %v117
    %v143 = vpack.c.b16 %v120, %v119
    %v144 = vpack.c.b16 %v122, %v121
    %v145 = vpack.c.b16 %v124, %v123
    %v146 = vpack.c.b16 %v126, %v125
    %v147 = vpack.c.b16 %v128, %v127
    %v148 = vpack.c.b16 %v130, %v129
    %v149 = vpack.c.b16 %v132, %v131
    %v150 = vpack.c.b16 %v134, %v133
    %v151 = vpack.c.b16 %v136, %v135
    %v152 = vpack.c.b16 %v138, %v137
    %v157 = vunpack.c.l.b16 %v67
    %v158 = vunpack.c.h.b16 %v67
    %v159 = vunpack.c.l.b16 %v68
    %v160 = vunpack.c.h.b16 %v68
    %v161 = vunpack.c.l.b16 %v69
    %v162 = vunpack.c.h.b16 %v69
    %v163 = vunpack.c.l.b16 %v70
    %v164 = vunpack.c.h.b16 %v70
    %v165 = vpack.c.b16 %v159, %v157
    %v166 = vpack.c.b16 %v160, %v158
    %v167 = vpack.c.b16 %v163, %v161
    %v168 = vpack.c.b16 %v164, %v162
    %vm171 = vcmask 228352
    %v173 = vsel %vm171, %v139, 0
    %v176 = vsel %vm171, %v140, 0
    %v179 = vsel %vm171, %v141, 0
    %v182 = vsel %vm171, %v142, 0
    %v185 = vsel %vm171, %v143, 0
    %v188 = vsel %vm171, %v144, 0
    %v191 = vsel %vm171, %v145, 0
    %v194 = vsel %vm171, %v146, 0
    %v197 = vsel %vm171, %v147, 0
    %v200 = vsel %vm171, %v148, 0
    %v203 = vsel %vm171, %v149, 0
    %v206 = vsel %vm171, %v150, 0
    %v209 = vsel %vm171, %v151, 0
    %v212 = vsel %vm171, %v152, 0
    %vm214 = vcmask 1045504
    %v216 = vsel %vm214, %v167, 0
    %v219 = vsel %vm214, %v168, 0
    %221 = vmatprep.subr.bf16.mxu0 %v166
    %222 = vmatpush1.bf16.msra.mxu0 %v165
    %223 = vmatprep.subr.bf16.mxu0 %v219
    %224 = vmatpush1.bf16.msra.mxu0 %v216
    %225 = vmatprep.subr.bf16.mxu0 0
    %226 = vmatpush1.bf16.msra.mxu0 0
    %227 = vmatprep.subr.bf16.mxu0 0
    %228 = vmatpush1.bf16.msra.mxu0 0
    %229 = vmatprep.subr.bf16.mxu0 0
    %230 = vmatpush1.bf16.msra.mxu0 0
    %231 = vmatprep.subr.bf16.mxu0 0
    %232 = vmatpush1.bf16.msra.mxu0 0
    %233 = vmatprep.subr.bf16.mxu0 0
    %234 = vmatpush1.bf16.msra.mxu0 0
    %235 = vmatprep.subr.bf16.mxu0 0
    %236 = vmatpush1.bf16.msra.mxu0 0
    %237 = vmatprep.subr.bf16.mxu0 0
    %238 = vmatpush1.bf16.msra.mxu0 0
    %239 = vmatprep.subr.bf16.mxu0 0
    %240 = vmatpush1.bf16.msra.mxu0 0
    %241 = vmatprep.subr.bf16.mxu0 0
    %242 = vmatpush1.bf16.msra.mxu0 0
    %243 = vmatprep.subr.bf16.mxu0 0
    %244 = vmatpush1.bf16.msra.mxu0 0
    %245 = vmatprep.subr.bf16.mxu0 0
    %246 = vmatpush1.bf16.msra.mxu0 0
    %247 = vmatprep.subr.bf16.mxu0 0
    %248 = vmatpush1.bf16.msra.mxu0 0
    %249 = vmatprep.subr.bf16.mxu0 0
    %250 = vmatpush1.bf16.msra.mxu0 0
    %251 = vmatprep.subr.bf16.mxu0 0
    %252 = vmatpush1.bf16.msra.mxu0 0
    %253 = vmatprep.mubr.bf16.mxu0 0
    %254 = vmatmul.mubr.bf16.gmra.mrb[0].mxu0 %v173
    %v255 = vpop.f32.mrb[0].mxu0
    %v256 = vadd.f32 %v76, %v255
    %v257 = vpop.f32.mrb[0].mxu0
    %v258 = vadd.f32 %v80, %v257
    %v259 = vpop.f32.mrb[0].mxu0
    %v260 = vadd.f32 %v76, %v259
    %v261 = vpop.f32.mrb[0].mxu0
    %v262 = vadd.f32 %v80, %v261
    %263 = vmatprep.mubr.bf16.mxu0 0
    %264 = vmatmul.mubr.bf16.gmra.mrb[0].mxu0 %v176
    %v265 = vpop.f32.mrb[0].mxu0
    %v266 = vadd.f32 %v76, %v265
    %v267 = vpop.f32.mrb[0].mxu0
    %v268 = vadd.f32 %v80, %v267
    %v269 = vpop.f32.mrb[0].mxu0
    %v270 = vadd.f32 %v76, %v269
    %v271 = vpop.f32.mrb[0].mxu0
    %v272 = vadd.f32 %v80, %v271
    %273 = vmatprep.mubr.bf16.mxu0 0
    %274 = vmatmul.mubr.bf16.gmra.mrb[0].mxu0 %v179
    %v275 = vpop.f32.mrb[0].mxu0
    %v276 = vadd.f32 %v76, %v275
    %v277 = vpop.f32.mrb[0].mxu0
    %v278 = vadd.f32 %v80, %v277
    %v279 = vpop.f32.mrb[0].mxu0
    %v280 = vadd.f32 %v76, %v279
    %v281 = vpop.f32.mrb[0].mxu0
    %v282 = vadd.f32 %v80, %v281
    %283 = vmatprep.mubr.bf16.mxu0 0
    %284 = vmatmul.mubr.bf16.gmra.mrb[0].mxu0 %v182
    %v285 = vpop.f32.mrb[0].mxu0
    %v286 = vadd.f32 %v76, %v285
    %v287 = vpop.f32.mrb[0].mxu0
    %v288 = vadd.f32 %v80, %v287
    %v289 = vpop.f32.mrb[0].mxu0
    %v290 = vadd.f32 %v76, %v289
    %v291 = vpop.f32.mrb[0].mxu0
    %v292 = vadd.f32 %v80, %v291
    %293 = vmatprep.mubr.bf16.mxu0 0
    %294 = vmatmul.mubr.bf16.gmra.mrb[0].mxu0 %v185
    %v295 = vpop.f32.mrb[0].mxu0
    %v296 = vadd.f32 %v76, %v295
    %v297 = vpop.f32.mrb[0].mxu0
    %v298 = vadd.f32 %v80, %v297
    %v299 = vpop.f32.mrb[0].mxu0
    %v300 = vadd.f32 %v76, %v299
    %v301 = vpop.f32.mrb[0].mxu0
    %v302 = vadd.f32 %v80, %v301
    %303 = vmatprep.mubr.bf16.mxu0 0
    %304 = vmatmul.mubr.bf16.gmra.mrb[0].mxu0 %v188
    %v305 = vpop.f32.mrb[0].mxu0
    %v306 = vadd.f32 %v76, %v305
    %v307 = vpop.f32.mrb[0].mxu0
    %v308 = vadd.f32 %v80, %v307
    %v309 = vpop.f32.mrb[0].mxu0
    %v310 = vadd.f32 %v76, %v309
    %v311 = vpop.f32.mrb[0].mxu0
    %v312 = vadd.f32 %v80, %v311
    %313 = vmatprep.mubr.bf16.mxu0 0
    %314 = vmatmul.mubr.bf16.gmra.mrb[0].mxu0 %v191
    %v315 = vpop.f32.mrb[0].mxu0
    %v316 = vadd.f32 %v76, %v315
    %v317 = vpop.f32.mrb[0].mxu0
    %v318 = vadd.f32 %v80, %v317
    %v319 = vpop.f32.mrb[0].mxu0
    %v320 = vadd.f32 %v76, %v319
    %v321 = vpop.f32.mrb[0].mxu0
    %v322 = vadd.f32 %v80, %v321
    %323 = vmatprep.mubr.bf16.mxu0 0
    %324 = vmatmul.mubr.bf16.gmra.mrb[0].mxu0 %v194
    %v325 = vpop.f32.mrb[0].mxu0
    %v326 = vadd.f32 %v76, %v325
    %v327 = vpop.f32.mrb[0].mxu0
    %v328 = vadd.f32 %v80, %v327
    %v329 = vpop.f32.mrb[0].mxu0
    %v330 = vadd.f32 %v76, %v329
    %v331 = vpop.f32.mrb[0].mxu0
    %v332 = vadd.f32 %v80, %v331
    %333 = vmatprep.mubr.bf16.mxu0 0
    %334 = vmatmul.mubr.bf16.gmra.mrb[0].mxu0 %v197
    %v335 = vpop.f32.mrb[0].mxu0
    %v336 = vadd.f32 %v76, %v335
    %v337 = vpop.f32.mrb[0].mxu0
    %v338 = vadd.f32 %v80, %v337
    %v339 = vpop.f32.mrb[0].mxu0
    %v340 = vadd.f32 %v76, %v339
    %v341 = vpop.f32.mrb[0].mxu0
    %v342 = vadd.f32 %v80, %v341
    %343 = vmatprep.mubr.bf16.mxu0 0
    %344 = vmatmul.mubr.bf16.gmra.mrb[0].mxu0 %v200
    %v345 = vpop.f32.mrb[0].mxu0
    %v346 = vadd.f32 %v76, %v345
    %v347 = vpop.f32.mrb[0].mxu0
    %v348 = vadd.f32 %v80, %v347
    %v349 = vpop.f32.mrb[0].mxu0
    %v350 = vadd.f32 %v76, %v349
    %v351 = vpop.f32.mrb[0].mxu0
    %v352 = vadd.f32 %v80, %v351
    %353 = vmatprep.mubr.bf16.mxu0 0
    %354 = vmatmul.mubr.bf16.gmra.mrb[0].mxu0 %v203
    %v355 = vpop.f32.mrb[0].mxu0
    %v356 = vadd.f32 %v76, %v355
    %v357 = vpop.f32.mrb[0].mxu0
    %v358 = vadd.f32 %v80, %v357
    %v359 = vpop.f32.mrb[0].mxu0
    %v360 = vadd.f32 %v76, %v359
    %v361 = vpop.f32.mrb[0].mxu0
    %v362 = vadd.f32 %v80, %v361
    %363 = vmatprep.mubr.bf16.mxu0 0
    %364 = vmatmul.mubr.bf16.gmra.mrb[0].mxu0 %v206
    %v365 = vpop.f32.mrb[0].mxu0
    %v366 = vadd.f32 %v76, %v365
    %v367 = vpop.f32.mrb[0].mxu0
    %v368 = vadd.f32 %v80, %v367
    %v369 = vpop.f32.mrb[0].mxu0
    %v370 = vadd.f32 %v76, %v369
    %v371 = vpop.f32.mrb[0].mxu0
    %v372 = vadd.f32 %v80, %v371
    %373 = vmatprep.mubr.bf16.mxu0 0
    %374 = vmatmul.mubr.bf16.gmra.mrb[0].mxu0 %v209
    %v375 = vpop.f32.mrb[0].mxu0
    %v376 = vadd.f32 %v76, %v375
    %v377 = vpop.f32.mrb[0].mxu0
    %v378 = vadd.f32 %v80, %v377
    %v379 = vpop.f32.mrb[0].mxu0
    %v380 = vadd.f32 %v76, %v379
    %v381 = vpop.f32.mrb[0].mxu0
    %v382 = vadd.f32 %v80, %v381
    %383 = vmatprep.mubr.bf16.mxu0 0
    %384 = vmatmul.mubr.bf16.gmra.mrb[0].mxu0 %v212
    %v385 = vpop.f32.mrb[0].mxu0
    %v386 = vadd.f32 %v76, %v385
    %v387 = vpop.f32.mrb[0].mxu0
    %v388 = vadd.f32 %v80, %v387
    %v389 = vpop.f32.mrb[0].mxu0
    %v390 = vadd.f32 %v76, %v389
    %v391 = vpop.f32.mrb[0].mxu0
    %v392 = vadd.f32 %v80, %v391
    %393 = vdwg.mxu0
    %394 = vst [vmem:[#allocation2] sm:$0xff] %v256
    %395 = vst [vmem:[#allocation2 + $0x8] sm:$0xff] %v258
    %396 = vst [vmem:[#allocation2 + $0x10] sm:$0xff] %v260
    %397 = vst [vmem:[#allocation2 + $0x18] sm:$0xff] %v262
    %398 = vst [vmem:[#allocation2 + $0x20] sm:$0xff] %v266
    %399 = vst [vmem:[#allocation2 + $0x28] sm:$0xff] %v268
    %400 = vst [vmem:[#allocation2 + $0x30] sm:$0xff] %v270
    %401 = vst [vmem:[#allocation2 + $0x38] sm:$0xff] %v272
    %402 = vst [vmem:[#allocation2 + $0x40] sm:$0xff] %v276
    %403 = vst [vmem:[#allocation2 + $0x48] sm:$0xff] %v278
    %404 = vst [vmem:[#allocation2 + $0x50] sm:$0xff] %v280
    %405 = vst [vmem:[#allocation2 + $0x58] sm:$0xff] %v282
    %406 = vst [vmem:[#allocation2 + $0x60] sm:$0xff] %v286
    %407 = vst [vmem:[#allocation2 + $0x68] sm:$0xff] %v288
    %408 = vst [vmem:[#allocation2 + $0x70] sm:$0xff] %v290
    %409 = vst [vmem:[#allocation2 + $0x78] sm:$0xff] %v292
    %410 = vst [vmem:[#allocation2 + $0x80] sm:$0xff] %v296
    %411 = vst [vmem:[#allocation2 + $0x88] sm:$0xff] %v298
    %412 = vst [vmem:[#allocation2 + $0x90] sm:$0xff] %v300
    %413 = vst [vmem:[#allocation2 + $0x98] sm:$0xff] %v302
    %414 = vst [vmem:[#allocation2 + $0xa0] sm:$0xff] %v306
    %415 = vst [vmem:[#allocation2 + $0xa8] sm:$0xff] %v308
    %416 = vst [vmem:[#allocation2 + $0xb0] sm:$0xff] %v310
    %417 = vst [vmem:[#allocation2 + $0xb8] sm:$0xff] %v312
    %418 = vst [vmem:[#allocation2 + $0xc0] sm:$0xff] %v316
    %419 = vst [vmem:[#allocation2 + $0xc8] sm:$0xff] %v318
    %420 = vst [vmem:[#allocation2 + $0xd0] sm:$0xff] %v320
    %421 = vst [vmem:[#allocation2 + $0xd8] sm:$0xff] %v322
    %422 = vst [vmem:[#allocation2 + $0xe0] sm:$0xff] %v326
    %423 = vst [vmem:[#allocation2 + $0xe8] sm:$0xff] %v328
    %424 = vst [vmem:[#allocation2 + $0xf0] sm:$0xff] %v330
    %425 = vst [vmem:[#allocation2 + $0xf8] sm:$0xff] %v332
    %426 = vst [vmem:[#allocation2 + $0x100] sm:$0xff] %v336
    %427 = vst [vmem:[#allocation2 + $0x108] sm:$0xff] %v338
    %428 = vst [vmem:[#allocation2 + $0x110] sm:$0xff] %v340
    %429 = vst [vmem:[#allocation2 + $0x118] sm:$0xff] %v342
    %430 = vst [vmem:[#allocation2 + $0x120] sm:$0xff] %v346
    %431 = vst [vmem:[#allocation2 + $0x128] sm:$0xff] %v348
    %432 = vst [vmem:[#allocation2 + $0x130] sm:$0xff] %v350
    %433 = vst [vmem:[#allocation2 + $0x138] sm:$0xff] %v352
    %434 = vst [vmem:[#allocation2 + $0x140] sm:$0xff] %v356
    %435 = vst [vmem:[#allocation2 + $0x148] sm:$0xff] %v358
    %436 = vst [vmem:[#allocation2 + $0x150] sm:$0xff] %v360
    %437 = vst [vmem:[#allocation2 + $0x158] sm:$0xff] %v362
    %438 = vst [vmem:[#allocation2 + $0x160] sm:$0xff] %v366
    %439 = vst [vmem:[#allocation2 + $0x168] sm:$0xff] %v368
    %440 = vst [vmem:[#allocation2 + $0x170] sm:$0xff] %v370
    %441 = vst [vmem:[#allocation2 + $0x178] sm:$0xff] %v372
    %442 = vst [vmem:[#allocation2 + $0x180] sm:$0xff] %v376
    %443 = vst [vmem:[#allocation2 + $0x188] sm:$0xff] %v378
    %444 = vst [vmem:[#allocation2 + $0x190] sm:$0xff] %v380
    %445 = vst [vmem:[#allocation2 + $0x198] sm:$0xff] %v382
    %446 = vst [vmem:[#allocation2 + $0x1a0] sm:$0xff] %v386
    %447 = vst [vmem:[#allocation2 + $0x1a8] sm:$0xff] %v388
    %448 = vst [vmem:[#allocation2 + $0x1b0] sm:$0xff] %v390
    %449 = vst [vmem:[#allocation2 + $0x1b8] sm:$0xff] %v392
    %v450 = vld [vmem:[%s2] sm:$0xff]
    %v451 = vld [vmem:[%s2 + $0x8] sm:$0xff]
    %v452 = vld [vmem:[%s2 + $0x10] sm:$0xff]
    %v453 = vld [vmem:[%s2 + $0x18] sm:$0xff]
    %v454 = vld [vmem:[%s2 + $0x20] sm:$0xff]
    %v455 = vld [vmem:[%s2 + $0x28] sm:$0xff]
    %v456 = vld [vmem:[%s2 + $0x30] sm:$0xff]
    %v457 = vld [vmem:[%s2 + $0x38] sm:$0xff]
    %s458 = smul.u32 0, 2
    %s459 = smul.addr %s458, 8
    %s460 = scalar_lea.vmem [#allocation2], %s459
    %v461 = vld [vmem:[%s460] sm:$0xff]
    %v462 = vld [vmem:[%s460 + $0x8] sm:$0xff]
    %v471 = vunpack.c.l.b16 %v450
    %v472 = vunpack.c.h.b16 %v450
    %v473 = vunpack.c.l.b16 %v451
    %v474 = vunpack.c.h.b16 %v451
    %v475 = vunpack.c.l.b16 %v452
    %v476 = vunpack.c.h.b16 %v452
    %v477 = vunpack.c.l.b16 %v453
    %v478 = vunpack.c.h.b16 %v453
    %v479 = vunpack.c.l.b16 %v454
    %v480 = vunpack.c.h.b16 %v454
    %v481 = vunpack.c.l.b16 %v455
    %v482 = vunpack.c.h.b16 %v455
    %v483 = vunpack.c.l.b16 %v456
    %v484 = vunpack.c.h.b16 %v456
    %v485 = vunpack.c.l.b16 %v457
    %v486 = vunpack.c.h.b16 %v457
    %v487 = vpack.c.b16 %v473, %v471
    %v488 = vpack.c.b16 %v474, %v472
    %v489 = vpack.c.b16 %v477, %v475
    %v490 = vpack.c.b16 %v478, %v476
    %v491 = vpack.c.b16 %v481, %v479
    %v492 = vpack.c.b16 %v482, %v480
    %v493 = vpack.c.b16 %v485, %v483
    %v494 = vpack.c.b16 %v486, %v484
    %vm503 = vcmask 523264
    %v505 = vsel %vm503, 0, 0
    %507 = vmatprep.subr.bf16.mxu0 %v488
    %508 = vmatpush1.bf16.msra.mxu0 %v487
    %509 = vmatprep.subr.bf16.mxu0 %v490
    %510 = vmatpush1.bf16.msra.mxu0 %v489
    %511 = vmatprep.subr.bf16.mxu0 %v492
    %512 = vmatpush1.bf16.msra.mxu0 %v491
    %513 = vmatprep.subr.bf16.mxu0 %v494
    %514 = vmatpush1.bf16.msra.mxu0 %v493
    %515 = vmatprep.subr.bf16.mxu0 0
    %516 = vmatpush1.bf16.msra.mxu0 0
    %517 = vmatprep.subr.bf16.mxu0 0
    %518 = vmatpush1.bf16.msra.mxu0 0
    %519 = vmatprep.subr.bf16.mxu0 0
    %520 = vmatpush1.bf16.msra.mxu0 0
    %521 = vmatprep.subr.bf16.mxu0 0
    %522 = vmatpush1.bf16.msra.mxu0 0
    %523 = vmatprep.subr.bf16.mxu0 0
    %524 = vmatpush1.bf16.msra.mxu0 0
    %525 = vmatprep.subr.bf16.mxu0 0
    %526 = vmatpush1.bf16.msra.mxu0 0
    %527 = vmatprep.subr.bf16.mxu0 0
    %528 = vmatpush1.bf16.msra.mxu0 0
    %529 = vmatprep.subr.bf16.mxu0 0
    %530 = vmatpush1.bf16.msra.mxu0 0
    %531 = vmatprep.subr.bf16.mxu0 0
    %532 = vmatpush1.bf16.msra.mxu0 0
    %533 = vmatprep.subr.bf16.mxu0 0
    %534 = vmatpush1.bf16.msra.mxu0 0
    %535 = vmatprep.subr.bf16.mxu0 0
    %536 = vmatpush1.bf16.msra.mxu0 0
    %537 = vmatprep.subr.bf16.mxu0 0
    %538 = vmatpush1.bf16.msra.mxu0 0
    %539 = vmatprep.mubr.bf16.mxu0 0
    %540 = vmatmul.mubr.bf16.gmra.mrb[0].mxu0 %v505
    %v541 = vpop.f32.mrb[0].mxu0
    %v542 = vadd.f32 0.0, %v541
    %v543 = vpop.f32.mrb[0].mxu0
    %v544 = vadd.f32 0.0, %v543
    %v545 = vpop.f32.mrb[0].mxu0
    %v546 = vpop.f32.mrb[0].mxu0
    %547 = vdwg.mxu0
    %v548 = vadd.f32 %v461, %v542
    %v549 = vadd.f32 %v462, %v544
    %v550 = vxor.u32 %v548, 2147483648
    %v551 = vmul.f32 %v550, 1.442695
    %v552 = vpow.pop %v551
    %v553 = vadd.f32 %v552, 1.0
    %v554 = vrcp.pop %v553
    %v555 = vmul.f32 1.0, %v554
    %v556 = vtanh.pop %v549
    %v557 = vxor.u32 %v549, 2147483648
    %v558 = vmul.f32 %v557, 1.442695
    %v559 = vpow.pop %v558
    %v560 = vadd.f32 %v559, 1.0
    %v561 = vrcp.pop %v560
    %v562 = vmul.f32 1.0, %v561
    %v563 = vmul.f32 %v555, 0.0
    %v564 = vmul.f32 %v555, %v556
    %566 = vrot.lane.b32.xlu0 %v564, 64
    %v567 = vpop.permute.xlu0 %566
    %v569 = vadd.f32 %v563, %v567
    %v570 = vtanh.pop %v569
    %v571 = vmul.f32 %v562, %v570
    %s572 = smul.u32 1, 2
    %s573 = smul.addr %s572, 8
    %s574 = scalar_lea.vmem [#allocation2], %s573
    %v575 = vld [vmem:[%s574] sm:$0xff]
    %v576 = vld [vmem:[%s574 + $0x8] sm:$0xff]
    %v577 = vpack.c.bf16 %v571, %v571
    %579 = vrot.lane.b32.xlu0 %v577, 64
    %v580 = vpop.permute.xlu0 %579
    %v582 = vsel %vm503, %v580, 0
    %584 = vmatprep.subr.bf16.mxu0 %v488
    %585 = vmatpush1.bf16.msra.mxu0 %v487
    %586 = vmatprep.subr.bf16.mxu0 %v490
    %587 = vmatpush1.bf16.msra.mxu0 %v489
    %588 = vmatprep.subr.bf16.mxu0 %v492
    %589 = vmatpush1.bf16.msra.mxu0 %v491
    %590 = vmatprep.subr.bf16.mxu0 %v494
    %591 = vmatpush1.bf16.msra.mxu0 %v493
    %592 = vmatprep.subr.bf16.mxu0 0
    %593 = vmatpush1.bf16.msra.mxu0 0
    %594 = vmatprep.subr.bf16.mxu0 0
    %595 = vmatpush1.bf16.msra.mxu0 0
    %596 = vmatprep.subr.bf16.mxu0 0
    %597 = vmatpush1.bf16.msra.mxu0 0
    %598 = vmatprep.subr.bf16.mxu0 0
    %599 = vmatpush1.bf16.msra.mxu0 0
    %600 = vmatprep.subr.bf16.mxu0 0
    %601 = vmatpush1.bf16.msra.mxu0 0
    %602 = vmatprep.subr.bf16.mxu0 0
    %603 = vmatpush1.bf16.msra.mxu0 0
    %604 = vmatprep.subr.bf16.mxu0 0
    %605 = vmatpush1.bf16.msra.mxu0 0
    %606 = vmatprep.subr.bf16.mxu0 0
    %607 = vmatpush1.bf16.msra.mxu0 0
    %608 = vmatprep.subr.bf16.mxu0 0
    %609 = vmatpush1.bf16.msra.mxu0 0
    %610 = vmatprep.subr.bf16.mxu0 0
    %611 = vmatpush1.bf16.msra.mxu0 0
    %612 = vmatprep.subr.bf16.mxu0 0
    %613 = vmatpush1.bf16.msra.mxu0 0
    %614 = vmatprep.subr.bf16.mxu0 0
    %615 = vmatpush1.bf16.msra.mxu0 0
    %616 = vmatprep.mubr.bf16.mxu0 0
    %617 = vmatmul.mubr.bf16.gmra.mrb[0].mxu0 %v582
    %v618 = vpop.f32.mrb[0].mxu0
    %v619 = vadd.f32 0.0, %v618
    %v620 = vpop.f32.mrb[0].mxu0
    %v621 = vadd.f32 0.0, %v620
    %v622 = vpop.f32.mrb[0].mxu0
    %v623 = vpop.f32.mrb[0].mxu0
    %624 = vdwg.mxu0
    %v625 = vadd.f32 %v575, %v619
    %v626 = vadd.f32 %v576, %v621
    %v627 = vxor.u32 %v625, 2147483648
    %v628 = vmul.f32 %v627, 1.442695
    %v629 = vpow.pop %v628
    %v630 = vadd.f32 %v629, 1.0
    %v631 = vrcp.pop %v630
    %v632 = vmul.f32 1.0, %v631
    %v633 = vtanh.pop %v626
    %v634 = vxor.u32 %v626, 2147483648
    %v635 = vmul.f32 %v634, 1.442695
    %v636 = vpow.pop %v635
    %v637 = vadd.f32 %v636, 1.0
    %v638 = vrcp.pop %v637
    %v639 = vmul.f32 1.0, %v638
    %v640 = vmul.f32 %v632, %v569
    %v641 = vmul.f32 %v632, %v633
    %643 = vrot.lane.b32.xlu0 %v641, 64
    %v644 = vpop.permute.xlu0 %643
    %v646 = vadd.f32 %v640, %v644
    %v647 = vtanh.pop %v646
    %v648 = vmul.f32 %v639, %v647
    %s649 = smul.u32 2, 2
    %s650 = smul.addr %s649, 8
    %s651 = scalar_lea.vmem [#allocation2], %s650
    %v652 = vld [vmem:[%s651] sm:$0xff]
    %v653 = vld [vmem:[%s651 + $0x8] sm:$0xff]
    %v654 = vpack.c.bf16 %v648, %v648
    %656 = vrot.lane.b32.xlu0 %v654, 64
    %v657 = vpop.permute.xlu0 %656
    %v659 = vsel %vm503, %v657, 0
    %661 = vmatprep.subr.bf16.mxu0 %v488
    %662 = vmatpush1.bf16.msra.mxu0 %v487
    %663 = vmatprep.subr.bf16.mxu0 %v490
    %664 = vmatpush1.bf16.msra.mxu0 %v489
    %665 = vmatprep.subr.bf16.mxu0 %v492
    %666 = vmatpush1.bf16.msra.mxu0 %v491
    %667 = vmatprep.subr.bf16.mxu0 %v494
    %668 = vmatpush1.bf16.msra.mxu0 %v493
    %669 = vmatprep.subr.bf16.mxu0 0
    %670 = vmatpush1.bf16.msra.mxu0 0
    %671 = vmatprep.subr.bf16.mxu0 0
    %672 = vmatpush1.bf16.msra.mxu0 0
    %673 = vmatprep.subr.bf16.mxu0 0
    %674 = vmatpush1.bf16.msra.mxu0 0
    %675 = vmatprep.subr.bf16.mxu0 0
    %676 = vmatpush1.bf16.msra.mxu0 0
    %677 = vmatprep.subr.bf16.mxu0 0
    %678 = vmatpush1.bf16.msra.mxu0 0
    %679 = vmatprep.subr.bf16.mxu0 0
    %680 = vmatpush1.bf16.msra.mxu0 0
    %681 = vmatprep.subr.bf16.mxu0 0
    %682 = vmatpush1.bf16.msra.mxu0 0
    %683 = vmatprep.subr.bf16.mxu0 0
    %684 = vmatpush1.bf16.msra.mxu0 0
    %685 = vmatprep.subr.bf16.mxu0 0
    %686 = vmatpush1.bf16.msra.mxu0 0
    %687 = vmatprep.subr.bf16.mxu0 0
    %688 = vmatpush1.bf16.msra.mxu0 0
    %689 = vmatprep.subr.bf16.mxu0 0
    %690 = vmatpush1.bf16.msra.mxu0 0
    %691 = vmatprep.subr.bf16.mxu0 0
    %692 = vmatpush1.bf16.msra.mxu0 0
    %693 = vmatprep.mubr.bf16.mxu0 0
    %694 = vmatmul.mubr.bf16.gmra.mrb[0].mxu0 %v659
    %v695 = vpop.f32.mrb[0].mxu0
    %v696 = vadd.f32 0.0, %v695
    %v697 = vpop.f32.mrb[0].mxu0
    %v698 = vadd.f32 0.0, %v697
    %v699 = vpop.f32.mrb[0].mxu0
    %v700 = vpop.f32.mrb[0].mxu0
    %701 = vdwg.mxu0
    %v702 = vadd.f32 %v652, %v696
    %v703 = vadd.f32 %v653, %v698
    %v704 = vxor.u32 %v702, 2147483648
    %v705 = vmul.f32 %v704, 1.442695
    %v706 = vpow.pop %v705
    %v707 = vadd.f32 %v706, 1.0
    %v708 = vrcp.pop %v707
    %v709 = vmul.f32 1.0, %v708
    %v710 = vtanh.pop %v703
    %v711 = vxor.u32 %v703, 2147483648
    %v712 = vmul.f32 %v711, 1.442695
    %v713 = vpow.pop %v712
    %v714 = vadd.f32 %v713, 1.0
    %v715 = vrcp.pop %v714
    %v716 = vmul.f32 1.0, %v715
    %v717 = vmul.f32 %v709, %v646
    %v718 = vmul.f32 %v709, %v710
    %720 = vrot.lane.b32.xlu0 %v718, 64
    %v721 = vpop.permute.xlu0 %720
    %v723 = vadd.f32 %v717, %v721
    %v724 = vtanh.pop %v723
    %v725 = vmul.f32 %v716, %v724
    %s726 = smul.u32 3, 2
    %s727 = smul.addr %s726, 8
    %s728 = scalar_lea.vmem [#allocation2], %s727
    %v729 = vld [vmem:[%s728] sm:$0xff]
    %v730 = vld [vmem:[%s728 + $0x8] sm:$0xff]
    %v731 = vpack.c.bf16 %v725, %v725
    %733 = vrot.lane.b32.xlu0 %v731, 64
    %v734 = vpop.permute.xlu0 %733
    %v736 = vsel %vm503, %v734, 0
    %738 = vmatprep.subr.bf16.mxu0 %v488
    %739 = vmatpush1.bf16.msra.mxu0 %v487
    %740 = vmatprep.subr.bf16.mxu0 %v490
    %741 = vmatpush1.bf16.msra.mxu0 %v489
    %742 = vmatprep.subr.bf16.mxu0 %v492
    %743 = vmatpush1.bf16.msra.mxu0 %v491
    %744 = vmatprep.subr.bf16.mxu0 %v494
    %745 = vmatpush1.bf16.msra.mxu0 %v493
    %746 = vmatprep.subr.bf16.mxu0 0
    %747 = vmatpush1.bf16.msra.mxu0 0
    %748 = vmatprep.subr.bf16.mxu0 0
    %749 = vmatpush1.bf16.msra.mxu0 0
    %750 = vmatprep.subr.bf16.mxu0 0
    %751 = vmatpush1.bf16.msra.mxu0 0
    %752 = vmatprep.subr.bf16.mxu0 0
    %753 = vmatpush1.bf16.msra.mxu0 0
    %754 = vmatprep.subr.bf16.mxu0 0
    %755 = vmatpush1.bf16.msra.mxu0 0
    %756 = vmatprep.subr.bf16.mxu0 0
    %757 = vmatpush1.bf16.msra.mxu0 0
    %758 = vmatprep.subr.bf16.mxu0 0
    %759 = vmatpush1.bf16.msra.mxu0 0
    %760 = vmatprep.subr.bf16.mxu0 0
    %761 = vmatpush1.bf16.msra.mxu0 0
    %762 = vmatprep.subr.bf16.mxu0 0
    %763 = vmatpush1.bf16.msra.mxu0 0
    %764 = vmatprep.subr.bf16.mxu0 0
    %765 = vmatpush1.bf16.msra.mxu0 0
    %766 = vmatprep.subr.bf16.mxu0 0
    %767 = vmatpush1.bf16.msra.mxu0 0
    %768 = vmatprep.subr.bf16.mxu0 0
    %769 = vmatpush1.bf16.msra.mxu0 0
    %770 = vmatprep.mubr.bf16.mxu0 0
    %771 = vmatmul.mubr.bf16.gmra.mrb[0].mxu0 %v736
    %v772 = vpop.f32.mrb[0].mxu0
    %v773 = vadd.f32 0.0, %v772
    %v774 = vpop.f32.mrb[0].mxu0
    %v775 = vadd.f32 0.0, %v774
    %v776 = vpop.f32.mrb[0].mxu0
    %v777 = vpop.f32.mrb[0].mxu0
    %778 = vdwg.mxu0
    %v779 = vadd.f32 %v729, %v773
    %v780 = vadd.f32 %v730, %v775
    %v781 = vxor.u32 %v779, 2147483648
    %v782 = vmul.f32 %v781, 1.442695
    %v783 = vpow.pop %v782
    %v784 = vadd.f32 %v783, 1.0
    %v785 = vrcp.pop %v784
    %v786 = vmul.f32 1.0, %v785
    %v787 = vtanh.pop %v780
    %v788 = vxor.u32 %v780, 2147483648
    %v789 = vmul.f32 %v788, 1.442695
    %v790 = vpow.pop %v789
    %v791 = vadd.f32 %v790, 1.0
    %v792 = vrcp.pop %v791
    %v793 = vmul.f32 1.0, %v792
    %v794 = vmul.f32 %v786, %v723
    %v795 = vmul.f32 %v786, %v787
    %797 = vrot.lane.b32.xlu0 %v795, 64
    %v798 = vpop.permute.xlu0 %797
    %v800 = vadd.f32 %v794, %v798
    %v801 = vtanh.pop %v800
    %v802 = vmul.f32 %v793, %v801
    %s803 = smul.u32 4, 2
    %s804 = smul.addr %s803, 8
    %s805 = scalar_lea.vmem [#allocation2], %s804
    %v806 = vld [vmem:[%s805] sm:$0xff]
    %v807 = vld [vmem:[%s805 + $0x8] sm:$0xff]
    %v808 = vpack.c.bf16 %v802, %v802
    %810 = vrot.lane.b32.xlu0 %v808, 64
    %v811 = vpop.permute.xlu0 %810
    %v813 = vsel %vm503, %v811, 0
    %815 = vmatprep.subr.bf16.mxu0 %v488
    %816 = vmatpush1.bf16.msra.mxu0 %v487
    %817 = vmatprep.subr.bf16.mxu0 %v490
    %818 = vmatpush1.bf16.msra.mxu0 %v489
    %819 = vmatprep.subr.bf16.mxu0 %v492
    %820 = vmatpush1.bf16.msra.mxu0 %v491
    %821 = vmatprep.subr.bf16.mxu0 %v494
    %822 = vmatpush1.bf16.msra.mxu0 %v493
    %823 = vmatprep.subr.bf16.mxu0 0
    %824 = vmatpush1.bf16.msra.mxu0 0
    %825 = vmatprep.subr.bf16.mxu0 0
    %826 = vmatpush1.bf16.msra.mxu0 0
    %827 = vmatprep.subr.bf16.mxu0 0
    %828 = vmatpush1.bf16.msra.mxu0 0
    %829 = vmatprep.subr.bf16.mxu0 0
    %830 = vmatpush1.bf16.msra.mxu0 0
    %831 = vmatprep.subr.bf16.mxu0 0
    %832 = vmatpush1.bf16.msra.mxu0 0
    %833 = vmatprep.subr.bf16.mxu0 0
    %834 = vmatpush1.bf16.msra.mxu0 0
    %835 = vmatprep.subr.bf16.mxu0 0
    %836 = vmatpush1.bf16.msra.mxu0 0
    %837 = vmatprep.subr.bf16.mxu0 0
    %838 = vmatpush1.bf16.msra.mxu0 0
    %839 = vmatprep.subr.bf16.mxu0 0
    %840 = vmatpush1.bf16.msra.mxu0 0
    %841 = vmatprep.subr.bf16.mxu0 0
    %842 = vmatpush1.bf16.msra.mxu0 0
    %843 = vmatprep.subr.bf16.mxu0 0
    %844 = vmatpush1.bf16.msra.mxu0 0
    %845 = vmatprep.subr.bf16.mxu0 0
    %846 = vmatpush1.bf16.msra.mxu0 0
    %847 = vmatprep.mubr.bf16.mxu0 0
    %848 = vmatmul.mubr.bf16.gmra.mrb[0].mxu0 %v813
    %v849 = vpop.f32.mrb[0].mxu0
    %v850 = vadd.f32 0.0, %v849
    %v851 = vpop.f32.mrb[0].mxu0
    %v852 = vadd.f32 0.0, %v851
    %v853 = vpop.f32.mrb[0].mxu0
    %v854 = vpop.f32.mrb[0].mxu0
    %855 = vdwg.mxu0
    %v856 = vadd.f32 %v806, %v850
    %v857 = vadd.f32 %v807, %v852
    %v858 = vxor.u32 %v856, 2147483648
    %v859 = vmul.f32 %v858, 1.442695
    %v860 = vpow.pop %v859
    %v861 = vadd.f32 %v860, 1.0
    %v862 = vrcp.pop %v861
    %v863 = vmul.f32 1.0, %v862
    %v864 = vtanh.pop %v857
    %v865 = vxor.u32 %v857, 2147483648
    %v866 = vmul.f32 %v865, 1.442695
    %v867 = vpow.pop %v866
    %v868 = vadd.f32 %v867, 1.0
    %v869 = vrcp.pop %v868
    %v870 = vmul.f32 1.0, %v869
    %v871 = vmul.f32 %v863, %v800
    %v872 = vmul.f32 %v863, %v864
    %874 = vrot.lane.b32.xlu0 %v872, 64
    %v875 = vpop.permute.xlu0 %874
    %v877 = vadd.f32 %v871, %v875
    %v878 = vtanh.pop %v877
    %v879 = vmul.f32 %v870, %v878
    %s880 = smul.u32 5, 2
    %s881 = smul.addr %s880, 8
    %s882 = scalar_lea.vmem [#allocation2], %s881
    %v883 = vld [vmem:[%s882] sm:$0xff]
    %v884 = vld [vmem:[%s882 + $0x8] sm:$0xff]
    %v885 = vpack.c.bf16 %v879, %v879
    %887 = vrot.lane.b32.xlu0 %v885, 64
    %v888 = vpop.permute.xlu0 %887
    %v890 = vsel %vm503, %v888, 0
    %892 = vmatprep.subr.bf16.mxu0 %v488
    %893 = vmatpush1.bf16.msra.mxu0 %v487
    %894 = vmatprep.subr.bf16.mxu0 %v490
    %895 = vmatpush1.bf16.msra.mxu0 %v489
    %896 = vmatprep.subr.bf16.mxu0 %v492
    %897 = vmatpush1.bf16.msra.mxu0 %v491
    %898 = vmatprep.subr.bf16.mxu0 %v494
    %899 = vmatpush1.bf16.msra.mxu0 %v493
    %900 = vmatprep.subr.bf16.mxu0 0
    %901 = vmatpush1.bf16.msra.mxu0 0
    %902 = vmatprep.subr.bf16.mxu0 0
    %903 = vmatpush1.bf16.msra.mxu0 0
    %904 = vmatprep.subr.bf16.mxu0 0
    %905 = vmatpush1.bf16.msra.mxu0 0
    %906 = vmatprep.subr.bf16.mxu0 0
    %907 = vmatpush1.bf16.msra.mxu0 0
    %908 = vmatprep.subr.bf16.mxu0 0
    %909 = vmatpush1.bf16.msra.mxu0 0
    %910 = vmatprep.subr.bf16.mxu0 0
    %911 = vmatpush1.bf16.msra.mxu0 0
    %912 = vmatprep.subr.bf16.mxu0 0
    %913 = vmatpush1.bf16.msra.mxu0 0
    %914 = vmatprep.subr.bf16.mxu0 0
    %915 = vmatpush1.bf16.msra.mxu0 0
    %916 = vmatprep.subr.bf16.mxu0 0
    %917 = vmatpush1.bf16.msra.mxu0 0
    %918 = vmatprep.subr.bf16.mxu0 0
    %919 = vmatpush1.bf16.msra.mxu0 0
    %920 = vmatprep.subr.bf16.mxu0 0
    %921 = vmatpush1.bf16.msra.mxu0 0
    %922 = vmatprep.subr.bf16.mxu0 0
    %923 = vmatpush1.bf16.msra.mxu0 0
    %924 = vmatprep.mubr.bf16.mxu0 0
    %925 = vmatmul.mubr.bf16.gmra.mrb[0].mxu0 %v890
    %v926 = vpop.f32.mrb[0].mxu0
    %v927 = vadd.f32 0.0, %v926
    %v928 = vpop.f32.mrb[0].mxu0
    %v929 = vadd.f32 0.0, %v928
    %v930 = vpop.f32.mrb[0].mxu0
    %v931 = vpop.f32.mrb[0].mxu0
    %932 = vdwg.mxu0
    %v933 = vadd.f32 %v883, %v927
    %v934 = vadd.f32 %v884, %v929
    %v935 = vxor.u32 %v933, 2147483648
    %v936 = vmul.f32 %v935, 1.442695
    %v937 = vpow.pop %v936
    %v938 = vadd.f32 %v937, 1.0
    %v939 = vrcp.pop %v938
    %v940 = vmul.f32 1.0, %v939
    %v941 = vtanh.pop %v934
    %v942 = vxor.u32 %v934, 2147483648
    %v943 = vmul.f32 %v942, 1.442695
    %v944 = vpow.pop %v943
    %v945 = vadd.f32 %v944, 1.0
    %v946 = vrcp.pop %v945
    %v947 = vmul.f32 1.0, %v946
    %v948 = vmul.f32 %v940, %v877
    %v949 = vmul.f32 %v940, %v941
    %951 = vrot.lane.b32.xlu0 %v949, 64
    %v952 = vpop.permute.xlu0 %951
    %v954 = vadd.f32 %v948, %v952
    %v955 = vtanh.pop %v954
    %v956 = vmul.f32 %v947, %v955
    %s957 = smul.u32 6, 2
    %s958 = smul.addr %s957, 8
    %s959 = scalar_lea.vmem [#allocation2], %s958
    %v960 = vld [vmem:[%s959] sm:$0xff]
    %v961 = vld [vmem:[%s959 + $0x8] sm:$0xff]
    %v962 = vpack.c.bf16 %v956, %v956
    %964 = vrot.lane.b32.xlu0 %v962, 64
    %v965 = vpop.permute.xlu0 %964
    %v967 = vsel %vm503, %v965, 0
    %969 = vmatprep.subr.bf16.mxu0 %v488
    %970 = vmatpush1.bf16.msra.mxu0 %v487
    %971 = vmatprep.subr.bf16.mxu0 %v490
    %972 = vmatpush1.bf16.msra.mxu0 %v489
    %973 = vmatprep.subr.bf16.mxu0 %v492
    %974 = vmatpush1.bf16.msra.mxu0 %v491
    %975 = vmatprep.subr.bf16.mxu0 %v494
    %976 = vmatpush1.bf16.msra.mxu0 %v493
    %977 = vmatprep.subr.bf16.mxu0 0
    %978 = vmatpush1.bf16.msra.mxu0 0
    %979 = vmatprep.subr.bf16.mxu0 0
    %980 = vmatpush1.bf16.msra.mxu0 0
    %981 = vmatprep.subr.bf16.mxu0 0
    %982 = vmatpush1.bf16.msra.mxu0 0
    %983 = vmatprep.subr.bf16.mxu0 0
    %984 = vmatpush1.bf16.msra.mxu0 0
    %985 = vmatprep.subr.bf16.mxu0 0
    %986 = vmatpush1.bf16.msra.mxu0 0
    %987 = vmatprep.subr.bf16.mxu0 0
    %988 = vmatpush1.bf16.msra.mxu0 0
    %989 = vmatprep.subr.bf16.mxu0 0
    %990 = vmatpush1.bf16.msra.mxu0 0
    %991 = vmatprep.subr.bf16.mxu0 0
    %992 = vmatpush1.bf16.msra.mxu0 0
    %993 = vmatprep.subr.bf16.mxu0 0
    %994 = vmatpush1.bf16.msra.mxu0 0
    %995 = vmatprep.subr.bf16.mxu0 0
    %996 = vmatpush1.bf16.msra.mxu0 0
    %997 = vmatprep.subr.bf16.mxu0 0
    %998 = vmatpush1.bf16.msra.mxu0 0
    %999 = vmatprep.subr.bf16.mxu0 0
    %1000 = vmatpush1.bf16.msra.mxu0 0
    %1001 = vmatprep.mubr.bf16.mxu0 0
    %1002 = vmatmul.mubr.bf16.gmra.mrb[0].mxu0 %v967
    %v1003 = vpop.f32.mrb[0].mxu0
    %v1004 = vadd.f32 0.0, %v1003
    %v1005 = vpop.f32.mrb[0].mxu0
    %v1006 = vadd.f32 0.0, %v1005
    %v1007 = vpop.f32.mrb[0].mxu0
    %v1008 = vpop.f32.mrb[0].mxu0
    %1009 = vdwg.mxu0
    %v1010 = vadd.f32 %v960, %v1004
    %v1011 = vadd.f32 %v961, %v1006
    %v1012 = vxor.u32 %v1010, 2147483648
    %v1013 = vmul.f32 %v1012, 1.442695
    %v1014 = vpow.pop %v1013
    %v1015 = vadd.f32 %v1014, 1.0
    %v1016 = vrcp.pop %v1015
    %v1017 = vmul.f32 1.0, %v1016
    %v1018 = vtanh.pop %v1011
    %v1019 = vxor.u32 %v1011, 2147483648
    %v1020 = vmul.f32 %v1019, 1.442695
    %v1021 = vpow.pop %v1020
    %v1022 = vadd.f32 %v1021, 1.0
    %v1023 = vrcp.pop %v1022
    %v1024 = vmul.f32 1.0, %v1023
    %v1025 = vmul.f32 %v1017, %v954
    %v1026 = vmul.f32 %v1017, %v1018
    %1028 = vrot.lane.b32.xlu0 %v1026, 64
    %v1029 = vpop.permute.xlu0 %1028
    %v1031 = vadd.f32 %v1025, %v1029
    %v1032 = vtanh.pop %v1031
    %v1033 = vmul.f32 %v1024, %v1032
    %s1034 = smul.u32 7, 2
    %s1035 = smul.addr %s1034, 8
    %s1036 = scalar_lea.vmem [#allocation2], %s1035
    %v1037 = vld [vmem:[%s1036] sm:$0xff]
    %v1038 = vld [vmem:[%s1036 + $0x8] sm:$0xff]
    %v1039 = vpack.c.bf16 %v1033, %v1033
    %1041 = vrot.lane.b32.xlu0 %v1039, 64
    %v1042 = vpop.permute.xlu0 %1041
    %v1044 = vsel %vm503, %v1042, 0
    %1046 = vmatprep.subr.bf16.mxu0 %v488
    %1047 = vmatpush1.bf16.msra.mxu0 %v487
    %1048 = vmatprep.subr.bf16.mxu0 %v490
    %1049 = vmatpush1.bf16.msra.mxu0 %v489
    %1050 = vmatprep.subr.bf16.mxu0 %v492
    %1051 = vmatpush1.bf16.msra.mxu0 %v491
    %1052 = vmatprep.subr.bf16.mxu0 %v494
    %1053 = vmatpush1.bf16.msra.mxu0 %v493
    %1054 = vmatprep.subr.bf16.mxu0 0
    %1055 = vmatpush1.bf16.msra.mxu0 0
    %1056 = vmatprep.subr.bf16.mxu0 0
    %1057 = vmatpush1.bf16.msra.mxu0 0
    %1058 = vmatprep.subr.bf16.mxu0 0
    %1059 = vmatpush1.bf16.msra.mxu0 0
    %1060 = vmatprep.subr.bf16.mxu0 0
    %1061 = vmatpush1.bf16.msra.mxu0 0
    %1062 = vmatprep.subr.bf16.mxu0 0
    %1063 = vmatpush1.bf16.msra.mxu0 0
    %1064 = vmatprep.subr.bf16.mxu0 0
    %1065 = vmatpush1.bf16.msra.mxu0 0
    %1066 = vmatprep.subr.bf16.mxu0 0
    %1067 = vmatpush1.bf16.msra.mxu0 0
    %1068 = vmatprep.subr.bf16.mxu0 0
    %1069 = vmatpush1.bf16.msra.mxu0 0
    %1070 = vmatprep.subr.bf16.mxu0 0
    %1071 = vmatpush1.bf16.msra.mxu0 0
    %1072 = vmatprep.subr.bf16.mxu0 0
    %1073 = vmatpush1.bf16.msra.mxu0 0
    %1074 = vmatprep.subr.bf16.mxu0 0
    %1075 = vmatpush1.bf16.msra.mxu0 0
    %1076 = vmatprep.subr.bf16.mxu0 0
    %1077 = vmatpush1.bf16.msra.mxu0 0
    %1078 = vmatprep.mubr.bf16.mxu0 0
    %1079 = vmatmul.mubr.bf16.gmra.mrb[0].mxu0 %v1044
    %v1080 = vpop.f32.mrb[0].mxu0
    %v1081 = vadd.f32 0.0, %v1080
    %v1082 = vpop.f32.mrb[0].mxu0
    %v1083 = vadd.f32 0.0, %v1082
    %v1084 = vpop.f32.mrb[0].mxu0
    %v1085 = vpop.f32.mrb[0].mxu0
    %1086 = vdwg.mxu0
    %v1087 = vadd.f32 %v1037, %v1081
    %v1088 = vadd.f32 %v1038, %v1083
    %v1089 = vxor.u32 %v1087, 2147483648
    %v1090 = vmul.f32 %v1089, 1.442695
    %v1091 = vpow.pop %v1090
    %v1092 = vadd.f32 %v1091, 1.0
    %v1093 = vrcp.pop %v1092
    %v1094 = vmul.f32 1.0, %v1093
    %v1095 = vtanh.pop %v1088
    %v1096 = vxor.u32 %v1088, 2147483648
    %v1097 = vmul.f32 %v1096, 1.442695
    %v1098 = vpow.pop %v1097
    %v1099 = vadd.f32 %v1098, 1.0
    %v1100 = vrcp.pop %v1099
    %v1101 = vmul.f32 1.0, %v1100
    %v1102 = vmul.f32 %v1094, %v1031
    %v1103 = vmul.f32 %v1094, %v1095
    %1105 = vrot.lane.b32.xlu0 %v1103, 64
    %v1106 = vpop.permute.xlu0 %1105
    %v1108 = vadd.f32 %v1102, %v1106
    %v1109 = vtanh.pop %v1108
    %v1110 = vmul.f32 %v1101, %v1109
    %s1111 = smul.u32 8, 2
    %s1112 = smul.addr %s1111, 8
    %s1113 = scalar_lea.vmem [#allocation2], %s1112
    %v1114 = vld [vmem:[%s1113] sm:$0xff]
    %v1115 = vld [vmem:[%s1113 + $0x8] sm:$0xff]
    %v1116 = vpack.c.bf16 %v1110, %v1110
    %1118 = vrot.lane.b32.xlu0 %v1116, 64
    %v1119 = vpop.permute.xlu0 %1118
    %v1121 = vsel %vm503, %v1119, 0
    %1123 = vmatprep.subr.bf16.mxu0 %v488
    %1124 = vmatpush1.bf16.msra.mxu0 %v487
    %1125 = vmatprep.subr.bf16.mxu0 %v490
    %1126 = vmatpush1.bf16.msra.mxu0 %v489
    %1127 = vmatprep.subr.bf16.mxu0 %v492
    %1128 = vmatpush1.bf16.msra.mxu0 %v491
    %1129 = vmatprep.subr.bf16.mxu0 %v494
    %1130 = vmatpush1.bf16.msra.mxu0 %v493
    %1131 = vmatprep.subr.bf16.mxu0 0
    %1132 = vmatpush1.bf16.msra.mxu0 0
    %1133 = vmatprep.subr.bf16.mxu0 0
    %1134 = vmatpush1.bf16.msra.mxu0 0
    %1135 = vmatprep.subr.bf16.mxu0 0
    %1136 = vmatpush1.bf16.msra.mxu0 0
    %1137 = vmatprep.subr.bf16.mxu0 0
    %1138 = vmatpush1.bf16.msra.mxu0 0
    %1139 = vmatprep.subr.bf16.mxu0 0
    %1140 = vmatpush1.bf16.msra.mxu0 0
    %1141 = vmatprep.subr.bf16.mxu0 0
    %1142 = vmatpush1.bf16.msra.mxu0 0
    %1143 = vmatprep.subr.bf16.mxu0 0
    %1144 = vmatpush1.bf16.msra.mxu0 0
    %1145 = vmatprep.subr.bf16.mxu0 0
    %1146 = vmatpush1.bf16.msra.mxu0 0
    %1147 = vmatprep.subr.bf16.mxu0 0
    %1148 = vmatpush1.bf16.msra.mxu0 0
    %1149 = vmatprep.subr.bf16.mxu0 0
    %1150 = vmatpush1.bf16.msra.mxu0 0
    %1151 = vmatprep.subr.bf16.mxu0 0
    %1152 = vmatpush1.bf16.msra.mxu0 0
    %1153 = vmatprep.subr.bf16.mxu0 0
    %1154 = vmatpush1.bf16.msra.mxu0 0
    %1155 = vmatprep.mubr.bf16.mxu0 0
    %1156 = vmatmul.mubr.bf16.gmra.mrb[0].mxu0 %v1121
    %v1157 = vpop.f32.mrb[0].mxu0
    %v1158 = vadd.f32 0.0, %v1157
    %v1159 = vpop.f32.mrb[0].mxu0
    %v1160 = vadd.f32 0.0, %v1159
    %v1161 = vpop.f32.mrb[0].mxu0
    %v1162 = vpop.f32.mrb[0].mxu0
    %1163 = vdwg.mxu0
    %v1164 = vadd.f32 %v1114, %v1158
    %v1165 = vadd.f32 %v1115, %v1160
    %v1166 = vxor.u32 %v1164, 2147483648
    %v1167 = vmul.f32 %v1166, 1.442695
    %v1168 = vpow.pop %v1167
    %v1169 = vadd.f32 %v1168, 1.0
    %v1170 = vrcp.pop %v1169
    %v1171 = vmul.f32 1.0, %v1170
    %v1172 = vtanh.pop %v1165
    %v1173 = vxor.u32 %v1165, 2147483648
    %v1174 = vmul.f32 %v1173, 1.442695
    %v1175 = vpow.pop %v1174
    %v1176 = vadd.f32 %v1175, 1.0
    %v1177 = vrcp.pop %v1176
    %v1178 = vmul.f32 1.0, %v1177
    %v1179 = vmul.f32 %v1171, %v1108
    %v1180 = vmul.f32 %v1171, %v1172
    %1182 = vrot.lane.b32.xlu0 %v1180, 64
    %v1183 = vpop.permute.xlu0 %1182
    %v1185 = vadd.f32 %v1179, %v1183
    %v1186 = vtanh.pop %v1185
    %v1187 = vmul.f32 %v1178, %v1186
    %s1188 = smul.u32 9, 2
    %s1189 = smul.addr %s1188, 8
    %s1190 = scalar_lea.vmem [#allocation2], %s1189
    %v1191 = vld [vmem:[%s1190] sm:$0xff]
    %v1192 = vld [vmem:[%s1190 + $0x8] sm:$0xff]
    %v1193 = vpack.c.bf16 %v1187, %v1187
    %1195 = vrot.lane.b32.xlu0 %v1193, 64
    %v1196 = vpop.permute.xlu0 %1195
    %v1198 = vsel %vm503, %v1196, 0
    %1200 = vmatprep.subr.bf16.mxu0 %v488
    %1201 = vmatpush1.bf16.msra.mxu0 %v487
    %1202 = vmatprep.subr.bf16.mxu0 %v490
    %1203 = vmatpush1.bf16.msra.mxu0 %v489
    %1204 = vmatprep.subr.bf16.mxu0 %v492
    %1205 = vmatpush1.bf16.msra.mxu0 %v491
    %1206 = vmatprep.subr.bf16.mxu0 %v494
    %1207 = vmatpush1.bf16.msra.mxu0 %v493
    %1208 = vmatprep.subr.bf16.mxu0 0
    %1209 = vmatpush1.bf16.msra.mxu0 0
    %1210 = vmatprep.subr.bf16.mxu0 0
    %1211 = vmatpush1.bf16.msra.mxu0 0
    %1212 = vmatprep.subr.bf16.mxu0 0
    %1213 = vmatpush1.bf16.msra.mxu0 0
    %1214 = vmatprep.subr.bf16.mxu0 0
    %1215 = vmatpush1.bf16.msra.mxu0 0
    %1216 = vmatprep.subr.bf16.mxu0 0
    %1217 = vmatpush1.bf16.msra.mxu0 0
    %1218 = vmatprep.subr.bf16.mxu0 0
    %1219 = vmatpush1.bf16.msra.mxu0 0
    %1220 = vmatprep.subr.bf16.mxu0 0
    %1221 = vmatpush1.bf16.msra.mxu0 0
    %1222 = vmatprep.subr.bf16.mxu0 0
    %1223 = vmatpush1.bf16.msra.mxu0 0
    %1224 = vmatprep.subr.bf16.mxu0 0
    %1225 = vmatpush1.bf16.msra.mxu0 0
    %1226 = vmatprep.subr.bf16.mxu0 0
    %1227 = vmatpush1.bf16.msra.mxu0 0
    %1228 = vmatprep.subr.bf16.mxu0 0
    %1229 = vmatpush1.bf16.msra.mxu0 0
    %1230 = vmatprep.subr.bf16.mxu0 0
    %1231 = vmatpush1.bf16.msra.mxu0 0
    %1232 = vmatprep.mubr.bf16.mxu0 0
    %1233 = vmatmul.mubr.bf16.gmra.mrb[0].mxu0 %v1198
    %v1234 = vpop.f32.mrb[0].mxu0
    %v1235 = vadd.f32 0.0, %v1234
    %v1236 = vpop.f32.mrb[0].mxu0
    %v1237 = vadd.f32 0.0, %v1236
    %v1238 = vpop.f32.mrb[0].mxu0
    %v1239 = vpop.f32.mrb[0].mxu0
    %1240 = vdwg.mxu0
    %v1241 = vadd.f32 %v1191, %v1235
    %v1242 = vadd.f32 %v1192, %v1237
    %v1243 = vxor.u32 %v1241, 2147483648
    %v1244 = vmul.f32 %v1243, 1.442695
    %v1245 = vpow.pop %v1244
    %v1246 = vadd.f32 %v1245, 1.0
    %v1247 = vrcp.pop %v1246
    %v1248 = vmul.f32 1.0, %v1247
    %v1249 = vtanh.pop %v1242
    %v1250 = vxor.u32 %v1242, 2147483648
    %v1251 = vmul.f32 %v1250, 1.442695
    %v1252 = vpow.pop %v1251
    %v1253 = vadd.f32 %v1252, 1.0
    %v1254 = vrcp.pop %v1253
    %v1255 = vmul.f32 1.0, %v1254
    %v1256 = vmul.f32 %v1248, %v1185
    %v1257 = vmul.f32 %v1248, %v1249
    %1259 = vrot.lane.b32.xlu0 %v1257, 64
    %v1260 = vpop.permute.xlu0 %1259
    %v1262 = vadd.f32 %v1256, %v1260
    %v1263 = vtanh.pop %v1262
    %v1264 = vmul.f32 %v1255, %v1263
    %s1265 = smul.u32 10, 2
    %s1266 = smul.addr %s1265, 8
    %s1267 = scalar_lea.vmem [#allocation2], %s1266
    %v1268 = vld [vmem:[%s1267] sm:$0xff]
    %v1269 = vld [vmem:[%s1267 + $0x8] sm:$0xff]
    %v1270 = vpack.c.bf16 %v1264, %v1264
    %1272 = vrot.lane.b32.xlu0 %v1270, 64
    %v1273 = vpop.permute.xlu0 %1272
    %v1275 = vsel %vm503, %v1273, 0
    %1277 = vmatprep.subr.bf16.mxu0 %v488
    %1278 = vmatpush1.bf16.msra.mxu0 %v487
    %1279 = vmatprep.subr.bf16.mxu0 %v490
    %1280 = vmatpush1.bf16.msra.mxu0 %v489
    %1281 = vmatprep.subr.bf16.mxu0 %v492
    %1282 = vmatpush1.bf16.msra.mxu0 %v491
    %1283 = vmatprep.subr.bf16.mxu0 %v494
    %1284 = vmatpush1.bf16.msra.mxu0 %v493
    %1285 = vmatprep.subr.bf16.mxu0 0
    %1286 = vmatpush1.bf16.msra.mxu0 0
    %1287 = vmatprep.subr.bf16.mxu0 0
    %1288 = vmatpush1.bf16.msra.mxu0 0
    %1289 = vmatprep.subr.bf16.mxu0 0
    %1290 = vmatpush1.bf16.msra.mxu0 0
    %1291 = vmatprep.subr.bf16.mxu0 0
    %1292 = vmatpush1.bf16.msra.mxu0 0
    %1293 = vmatprep.subr.bf16.mxu0 0
    %1294 = vmatpush1.bf16.msra.mxu0 0
    %1295 = vmatprep.subr.bf16.mxu0 0
    %1296 = vmatpush1.bf16.msra.mxu0 0
    %1297 = vmatprep.subr.bf16.mxu0 0
    %1298 = vmatpush1.bf16.msra.mxu0 0
    %1299 = vmatprep.subr.bf16.mxu0 0
    %1300 = vmatpush1.bf16.msra.mxu0 0
    %1301 = vmatprep.subr.bf16.mxu0 0
    %1302 = vmatpush1.bf16.msra.mxu0 0
    %1303 = vmatprep.subr.bf16.mxu0 0
    %1304 = vmatpush1.bf16.msra.mxu0 0
    %1305 = vmatprep.subr.bf16.mxu0 0
    %1306 = vmatpush1.bf16.msra.mxu0 0
    %1307 = vmatprep.subr.bf16.mxu0 0
    %1308 = vmatpush1.bf16.msra.mxu0 0
    %1309 = vmatprep.mubr.bf16.mxu0 0
    %1310 = vmatmul.mubr.bf16.gmra.mrb[0].mxu0 %v1275
    %v1311 = vpop.f32.mrb[0].mxu0
    %v1312 = vadd.f32 0.0, %v1311
    %v1313 = vpop.f32.mrb[0].mxu0
    %v1314 = vadd.f32 0.0, %v1313
    %v1315 = vpop.f32.mrb[0].mxu0
    %v1316 = vpop.f32.mrb[0].mxu0
    %1317 = vdwg.mxu0
    %v1318 = vadd.f32 %v1268, %v1312
    %v1319 = vadd.f32 %v1269, %v1314
    %v1320 = vxor.u32 %v1318, 2147483648
    %v1321 = vmul.f32 %v1320, 1.442695
    %v1322 = vpow.pop %v1321
    %v1323 = vadd.f32 %v1322, 1.0
    %v1324 = vrcp.pop %v1323
    %v1325 = vmul.f32 1.0, %v1324
    %v1326 = vtanh.pop %v1319
    %v1327 = vxor.u32 %v1319, 2147483648
    %v1328 = vmul.f32 %v1327, 1.442695
    %v1329 = vpow.pop %v1328
    %v1330 = vadd.f32 %v1329, 1.0
    %v1331 = vrcp.pop %v1330
    %v1332 = vmul.f32 1.0, %v1331
    %v1333 = vmul.f32 %v1325, %v1262
    %v1334 = vmul.f32 %v1325, %v1326
    %1336 = vrot.lane.b32.xlu0 %v1334, 64
    %v1337 = vpop.permute.xlu0 %1336
    %v1339 = vadd.f32 %v1333, %v1337
    %v1340 = vtanh.pop %v1339
    %v1341 = vmul.f32 %v1332, %v1340
    %s1342 = smul.u32 11, 2
    %s1343 = smul.addr %s1342, 8
    %s1344 = scalar_lea.vmem [#allocation2], %s1343
    %v1345 = vld [vmem:[%s1344] sm:$0xff]
    %v1346 = vld [vmem:[%s1344 + $0x8] sm:$0xff]
    %v1347 = vpack.c.bf16 %v1341, %v1341
    %1349 = vrot.lane.b32.xlu0 %v1347, 64
    %v1350 = vpop.permute.xlu0 %1349
    %v1352 = vsel %vm503, %v1350, 0
    %1354 = vmatprep.subr.bf16.mxu0 %v488
    %1355 = vmatpush1.bf16.msra.mxu0 %v487
    %1356 = vmatprep.subr.bf16.mxu0 %v490
    %1357 = vmatpush1.bf16.msra.mxu0 %v489
    %1358 = vmatprep.subr.bf16.mxu0 %v492
    %1359 = vmatpush1.bf16.msra.mxu0 %v491
    %1360 = vmatprep.subr.bf16.mxu0 %v494
    %1361 = vmatpush1.bf16.msra.mxu0 %v493
    %1362 = vmatprep.subr.bf16.mxu0 0
    %1363 = vmatpush1.bf16.msra.mxu0 0
    %1364 = vmatprep.subr.bf16.mxu0 0
    %1365 = vmatpush1.bf16.msra.mxu0 0
    %1366 = vmatprep.subr.bf16.mxu0 0
    %1367 = vmatpush1.bf16.msra.mxu0 0
    %1368 = vmatprep.subr.bf16.mxu0 0
    %1369 = vmatpush1.bf16.msra.mxu0 0
    %1370 = vmatprep.subr.bf16.mxu0 0
    %1371 = vmatpush1.bf16.msra.mxu0 0
    %1372 = vmatprep.subr.bf16.mxu0 0
    %1373 = vmatpush1.bf16.msra.mxu0 0
    %1374 = vmatprep.subr.bf16.mxu0 0
    %1375 = vmatpush1.bf16.msra.mxu0 0
    %1376 = vmatprep.subr.bf16.mxu0 0
    %1377 = vmatpush1.bf16.msra.mxu0 0
    %1378 = vmatprep.subr.bf16.mxu0 0
    %1379 = vmatpush1.bf16.msra.mxu0 0
    %1380 = vmatprep.subr.bf16.mxu0 0
    %1381 = vmatpush1.bf16.msra.mxu0 0
    %1382 = vmatprep.subr.bf16.mxu0 0
    %1383 = vmatpush1.bf16.msra.mxu0 0
    %1384 = vmatprep.subr.bf16.mxu0 0
    %1385 = vmatpush1.bf16.msra.mxu0 0
    %1386 = vmatprep.mubr.bf16.mxu0 0
    %1387 = vmatmul.mubr.bf16.gmra.mrb[0].mxu0 %v1352
    %v1388 = vpop.f32.mrb[0].mxu0
    %v1389 = vadd.f32 0.0, %v1388
    %v1390 = vpop.f32.mrb[0].mxu0
    %v1391 = vadd.f32 0.0, %v1390
    %v1392 = vpop.f32.mrb[0].mxu0
    %v1393 = vpop.f32.mrb[0].mxu0
    %1394 = vdwg.mxu0
    %v1395 = vadd.f32 %v1345, %v1389
    %v1396 = vadd.f32 %v1346, %v1391
    %v1397 = vxor.u32 %v1395, 2147483648
    %v1398 = vmul.f32 %v1397, 1.442695
    %v1399 = vpow.pop %v1398
    %v1400 = vadd.f32 %v1399, 1.0
    %v1401 = vrcp.pop %v1400
    %v1402 = vmul.f32 1.0, %v1401
    %v1403 = vtanh.pop %v1396
    %v1404 = vxor.u32 %v1396, 2147483648
    %v1405 = vmul.f32 %v1404, 1.442695
    %v1406 = vpow.pop %v1405
    %v1407 = vadd.f32 %v1406, 1.0
    %v1408 = vrcp.pop %v1407
    %v1409 = vmul.f32 1.0, %v1408
    %v1410 = vmul.f32 %v1402, %v1339
    %v1411 = vmul.f32 %v1402, %v1403
    %1413 = vrot.lane.b32.xlu0 %v1411, 64
    %v1414 = vpop.permute.xlu0 %1413
    %v1416 = vadd.f32 %v1410, %v1414
    %v1417 = vtanh.pop %v1416
    %v1418 = vmul.f32 %v1409, %v1417
    %s1419 = smul.u32 12, 2
    %s1420 = smul.addr %s1419, 8
    %s1421 = scalar_lea.vmem [#allocation2], %s1420
    %v1422 = vld [vmem:[%s1421] sm:$0xff]
    %v1423 = vld [vmem:[%s1421 + $0x8] sm:$0xff]
    %v1424 = vpack.c.bf16 %v1418, %v1418
    %1426 = vrot.lane.b32.xlu0 %v1424, 64
    %v1427 = vpop.permute.xlu0 %1426
    %v1429 = vsel %vm503, %v1427, 0
    %1431 = vmatprep.subr.bf16.mxu0 %v488
    %1432 = vmatpush1.bf16.msra.mxu0 %v487
    %1433 = vmatprep.subr.bf16.mxu0 %v490
    %1434 = vmatpush1.bf16.msra.mxu0 %v489
    %1435 = vmatprep.subr.bf16.mxu0 %v492
    %1436 = vmatpush1.bf16.msra.mxu0 %v491
    %1437 = vmatprep.subr.bf16.mxu0 %v494
    %1438 = vmatpush1.bf16.msra.mxu0 %v493
    %1439 = vmatprep.subr.bf16.mxu0 0
    %1440 = vmatpush1.bf16.msra.mxu0 0
    %1441 = vmatprep.subr.bf16.mxu0 0
    %1442 = vmatpush1.bf16.msra.mxu0 0
    %1443 = vmatprep.subr.bf16.mxu0 0
    %1444 = vmatpush1.bf16.msra.mxu0 0
    %1445 = vmatprep.subr.bf16.mxu0 0
    %1446 = vmatpush1.bf16.msra.mxu0 0
    %1447 = vmatprep.subr.bf16.mxu0 0
    %1448 = vmatpush1.bf16.msra.mxu0 0
    %1449 = vmatprep.subr.bf16.mxu0 0
    %1450 = vmatpush1.bf16.msra.mxu0 0
    %1451 = vmatprep.subr.bf16.mxu0 0
    %1452 = vmatpush1.bf16.msra.mxu0 0
    %1453 = vmatprep.subr.bf16.mxu0 0
    %1454 = vmatpush1.bf16.msra.mxu0 0
    %1455 = vmatprep.subr.bf16.mxu0 0
    %1456 = vmatpush1.bf16.msra.mxu0 0
    %1457 = vmatprep.subr.bf16.mxu0 0
    %1458 = vmatpush1.bf16.msra.mxu0 0
    %1459 = vmatprep.subr.bf16.mxu0 0
    %1460 = vmatpush1.bf16.msra.mxu0 0
    %1461 = vmatprep.subr.bf16.mxu0 0
    %1462 = vmatpush1.bf16.msra.mxu0 0
    %1463 = vmatprep.mubr.bf16.mxu0 0
    %1464 = vmatmul.mubr.bf16.gmra.mrb[0].mxu0 %v1429
    %v1465 = vpop.f32.mrb[0].mxu0
    %v1466 = vadd.f32 0.0, %v1465
    %v1467 = vpop.f32.mrb[0].mxu0
    %v1468 = vadd.f32 0.0, %v1467
    %v1469 = vpop.f32.mrb[0].mxu0
    %v1470 = vpop.f32.mrb[0].mxu0
    %1471 = vdwg.mxu0
    %v1472 = vadd.f32 %v1422, %v1466
    %v1473 = vadd.f32 %v1423, %v1468
    %v1474 = vxor.u32 %v1472, 2147483648
    %v1475 = vmul.f32 %v1474, 1.442695
    %v1476 = vpow.pop %v1475
    %v1477 = vadd.f32 %v1476, 1.0
    %v1478 = vrcp.pop %v1477
    %v1479 = vmul.f32 1.0, %v1478
    %v1480 = vtanh.pop %v1473
    %v1481 = vxor.u32 %v1473, 2147483648
    %v1482 = vmul.f32 %v1481, 1.442695
    %v1483 = vpow.pop %v1482
    %v1484 = vadd.f32 %v1483, 1.0
    %v1485 = vrcp.pop %v1484
    %v1486 = vmul.f32 1.0, %v1485
    %v1487 = vmul.f32 %v1479, %v1416
    %v1488 = vmul.f32 %v1479, %v1480
    %1490 = vrot.lane.b32.xlu0 %v1488, 64
    %v1491 = vpop.permute.xlu0 %1490
    %v1493 = vadd.f32 %v1487, %v1491
    %v1494 = vtanh.pop %v1493
    %v1495 = vmul.f32 %v1486, %v1494
    %s1496 = smul.u32 13, 2
    %s1497 = smul.addr %s1496, 8
    %s1498 = scalar_lea.vmem [#allocation2], %s1497
    %v1499 = vld [vmem:[%s1498] sm:$0xff]
    %v1500 = vld [vmem:[%s1498 + $0x8] sm:$0xff]
    %v1501 = vpack.c.bf16 %v1495, %v1495
    %1503 = vrot.lane.b32.xlu0 %v1501, 64
    %v1504 = vpop.permute.xlu0 %1503
    %v1506 = vsel %vm503, %v1504, 0
    %1508 = vmatprep.subr.bf16.mxu0 %v488
    %1509 = vmatpush1.bf16.msra.mxu0 %v487
    %1510 = vmatprep.subr.bf16.mxu0 %v490
    %1511 = vmatpush1.bf16.msra.mxu0 %v489
    %1512 = vmatprep.subr.bf16.mxu0 %v492
    %1513 = vmatpush1.bf16.msra.mxu0 %v491
    %1514 = vmatprep.subr.bf16.mxu0 %v494
    %1515 = vmatpush1.bf16.msra.mxu0 %v493
    %1516 = vmatprep.subr.bf16.mxu0 0
    %1517 = vmatpush1.bf16.msra.mxu0 0
    %1518 = vmatprep.subr.bf16.mxu0 0
    %1519 = vmatpush1.bf16.msra.mxu0 0
    %1520 = vmatprep.subr.bf16.mxu0 0
    %1521 = vmatpush1.bf16.msra.mxu0 0
    %1522 = vmatprep.subr.bf16.mxu0 0
    %1523 = vmatpush1.bf16.msra.mxu0 0
    %1524 = vmatprep.subr.bf16.mxu0 0
    %1525 = vmatpush1.bf16.msra.mxu0 0
    %1526 = vmatprep.subr.bf16.mxu0 0
    %1527 = vmatpush1.bf16.msra.mxu0 0
    %1528 = vmatprep.subr.bf16.mxu0 0
    %1529 = vmatpush1.bf16.msra.mxu0 0
    %1530 = vmatprep.subr.bf16.mxu0 0
    %1531 = vmatpush1.bf16.msra.mxu0 0
    %1532 = vmatprep.subr.bf16.mxu0 0
    %1533 = vmatpush1.bf16.msra.mxu0 0
    %1534 = vmatprep.subr.bf16.mxu0 0
    %1535 = vmatpush1.bf16.msra.mxu0 0
    %1536 = vmatprep.subr.bf16.mxu0 0
    %1537 = vmatpush1.bf16.msra.mxu0 0
    %1538 = vmatprep.subr.bf16.mxu0 0
    %1539 = vmatpush1.bf16.msra.mxu0 0
    %1540 = vmatprep.mubr.bf16.mxu0 0
    %1541 = vmatmul.mubr.bf16.gmra.mrb[0].mxu0 %v1506
    %v1542 = vpop.f32.mrb[0].mxu0
    %v1543 = vadd.f32 0.0, %v1542
    %v1544 = vpop.f32.mrb[0].mxu0
    %v1545 = vadd.f32 0.0, %v1544
    %v1546 = vpop.f32.mrb[0].mxu0
    %v1547 = vpop.f32.mrb[0].mxu0
    %1548 = vdwg.mxu0
    %v1549 = vadd.f32 %v1499, %v1543
    %v1550 = vadd.f32 %v1500, %v1545
    %v1551 = vxor.u32 %v1549, 2147483648
    %v1552 = vmul.f32 %v1551, 1.442695
    %v1553 = vpow.pop %v1552
    %v1554 = vadd.f32 %v1553, 1.0
    %v1555 = vrcp.pop %v1554
    %v1556 = vmul.f32 1.0, %v1555
    %v1557 = vtanh.pop %v1550
    %v1558 = vxor.u32 %v1550, 2147483648
    %v1559 = vmul.f32 %v1558, 1.442695
    %v1560 = vpow.pop %v1559
    %v1561 = vadd.f32 %v1560, 1.0
    %v1562 = vrcp.pop %v1561
    %v1563 = vmul.f32 1.0, %v1562
    %v1564 = vmul.f32 %v1556, %v1493
    %v1565 = vmul.f32 %v1556, %v1557
    %1567 = vrot.lane.b32.xlu0 %v1565, 64
    %v1568 = vpop.permute.xlu0 %1567
    %v1570 = vadd.f32 %v1564, %v1568
    %v1571 = vtanh.pop %v1570
    %v1572 = vmul.f32 %v1563, %v1571
    %s1573 = smul.u32 14, 2
    %s1574 = smul.addr %s1573, 8
    %s1575 = scalar_lea.vmem [#allocation2], %s1574
    %v1576 = vld [vmem:[%s1575] sm:$0xff]
    %v1577 = vld [vmem:[%s1575 + $0x8] sm:$0xff]
    %v1578 = vpack.c.bf16 %v1572, %v1572
    %1580 = vrot.lane.b32.xlu0 %v1578, 64
    %v1581 = vpop.permute.xlu0 %1580
    %v1583 = vsel %vm503, %v1581, 0
    %1585 = vmatprep.subr.bf16.mxu0 %v488
    %1586 = vmatpush1.bf16.msra.mxu0 %v487
    %1587 = vmatprep.subr.bf16.mxu0 %v490
    %1588 = vmatpush1.bf16.msra.mxu0 %v489
    %1589 = vmatprep.subr.bf16.mxu0 %v492
    %1590 = vmatpush1.bf16.msra.mxu0 %v491
    %1591 = vmatprep.subr.bf16.mxu0 %v494
    %1592 = vmatpush1.bf16.msra.mxu0 %v493
    %1593 = vmatprep.subr.bf16.mxu0 0
    %1594 = vmatpush1.bf16.msra.mxu0 0
    %1595 = vmatprep.subr.bf16.mxu0 0
    %1596 = vmatpush1.bf16.msra.mxu0 0
    %1597 = vmatprep.subr.bf16.mxu0 0
    %1598 = vmatpush1.bf16.msra.mxu0 0
    %1599 = vmatprep.subr.bf16.mxu0 0
    %1600 = vmatpush1.bf16.msra.mxu0 0
    %1601 = vmatprep.subr.bf16.mxu0 0
    %1602 = vmatpush1.bf16.msra.mxu0 0
    %1603 = vmatprep.subr.bf16.mxu0 0
    %1604 = vmatpush1.bf16.msra.mxu0 0
    %1605 = vmatprep.subr.bf16.mxu0 0
    %1606 = vmatpush1.bf16.msra.mxu0 0
    %1607 = vmatprep.subr.bf16.mxu0 0
    %1608 = vmatpush1.bf16.msra.mxu0 0
    %1609 = vmatprep.subr.bf16.mxu0 0
    %1610 = vmatpush1.bf16.msra.mxu0 0
    %1611 = vmatprep.subr.bf16.mxu0 0
    %1612 = vmatpush1.bf16.msra.mxu0 0
    %1613 = vmatprep.subr.bf16.mxu0 0
    %1614 = vmatpush1.bf16.msra.mxu0 0
    %1615 = vmatprep.subr.bf16.mxu0 0
    %1616 = vmatpush1.bf16.msra.mxu0 0
    %1617 = vmatprep.mubr.bf16.mxu0 0
    %1618 = vmatmul.mubr.bf16.gmra.mrb[0].mxu0 %v1583
    %v1619 = vpop.f32.mrb[0].mxu0
    %v1620 = vadd.f32 0.0, %v1619
    %v1621 = vpop.f32.mrb[0].mxu0
    %v1622 = vadd.f32 0.0, %v1621
    %v1623 = vpop.f32.mrb[0].mxu0
    %v1624 = vpop.f32.mrb[0].mxu0
    %1625 = vdwg.mxu0
    %v1626 = vadd.f32 %v1576, %v1620
    %v1627 = vadd.f32 %v1577, %v1622
    %v1628 = vxor.u32 %v1626, 2147483648
    %v1629 = vmul.f32 %v1628, 1.442695
    %v1630 = vpow.pop %v1629
    %v1631 = vadd.f32 %v1630, 1.0
    %v1632 = vrcp.pop %v1631
    %v1633 = vmul.f32 1.0, %v1632
    %v1634 = vtanh.pop %v1627
    %v1635 = vxor.u32 %v1627, 2147483648
    %v1636 = vmul.f32 %v1635, 1.442695
    %v1637 = vpow.pop %v1636
    %v1638 = vadd.f32 %v1637, 1.0
    %v1639 = vrcp.pop %v1638
    %v1640 = vmul.f32 1.0, %v1639
    %v1641 = vmul.f32 %v1633, %v1570
    %v1642 = vmul.f32 %v1633, %v1634
    %1644 = vrot.lane.b32.xlu0 %v1642, 64
    %v1645 = vpop.permute.xlu0 %1644
    %v1647 = vadd.f32 %v1641, %v1645
    %v1648 = vtanh.pop %v1647
    %v1649 = vmul.f32 %v1640, %v1648
    %s1650 = smul.u32 15, 2
    %s1651 = smul.addr %s1650, 8
    %s1652 = scalar_lea.vmem [#allocation2], %s1651
    %v1653 = vld [vmem:[%s1652] sm:$0xff]
    %v1654 = vld [vmem:[%s1652 + $0x8] sm:$0xff]
    %v1655 = vpack.c.bf16 %v1649, %v1649
    %1657 = vrot.lane.b32.xlu0 %v1655, 64
    %v1658 = vpop.permute.xlu0 %1657
    %v1660 = vsel %vm503, %v1658, 0
    %1662 = vmatprep.subr.bf16.mxu0 %v488
    %1663 = vmatpush1.bf16.msra.mxu0 %v487
    %1664 = vmatprep.subr.bf16.mxu0 %v490
    %1665 = vmatpush1.bf16.msra.mxu0 %v489
    %1666 = vmatprep.subr.bf16.mxu0 %v492
    %1667 = vmatpush1.bf16.msra.mxu0 %v491
    %1668 = vmatprep.subr.bf16.mxu0 %v494
    %1669 = vmatpush1.bf16.msra.mxu0 %v493
    %1670 = vmatprep.subr.bf16.mxu0 0
    %1671 = vmatpush1.bf16.msra.mxu0 0
    %1672 = vmatprep.subr.bf16.mxu0 0
    %1673 = vmatpush1.bf16.msra.mxu0 0
    %1674 = vmatprep.subr.bf16.mxu0 0
    %1675 = vmatpush1.bf16.msra.mxu0 0
    %1676 = vmatprep.subr.bf16.mxu0 0
    %1677 = vmatpush1.bf16.msra.mxu0 0
    %1678 = vmatprep.subr.bf16.mxu0 0
    %1679 = vmatpush1.bf16.msra.mxu0 0
    %1680 = vmatprep.subr.bf16.mxu0 0
    %1681 = vmatpush1.bf16.msra.mxu0 0
    %1682 = vmatprep.subr.bf16.mxu0 0
    %1683 = vmatpush1.bf16.msra.mxu0 0
    %1684 = vmatprep.subr.bf16.mxu0 0
    %1685 = vmatpush1.bf16.msra.mxu0 0
    %1686 = vmatprep.subr.bf16.mxu0 0
    %1687 = vmatpush1.bf16.msra.mxu0 0
    %1688 = vmatprep.subr.bf16.mxu0 0
    %1689 = vmatpush1.bf16.msra.mxu0 0
    %1690 = vmatprep.subr.bf16.mxu0 0
    %1691 = vmatpush1.bf16.msra.mxu0 0
    %1692 = vmatprep.subr.bf16.mxu0 0
    %1693 = vmatpush1.bf16.msra.mxu0 0
    %1694 = vmatprep.mubr.bf16.mxu0 0
    %1695 = vmatmul.mubr.bf16.gmra.mrb[0].mxu0 %v1660
    %v1696 = vpop.f32.mrb[0].mxu0
    %v1697 = vadd.f32 0.0, %v1696
    %v1698 = vpop.f32.mrb[0].mxu0
    %v1699 = vadd.f32 0.0, %v1698
    %v1700 = vpop.f32.mrb[0].mxu0
    %v1701 = vpop.f32.mrb[0].mxu0
    %1702 = vdwg.mxu0
    %v1703 = vadd.f32 %v1653, %v1697
    %v1704 = vadd.f32 %v1654, %v1699
    %v1705 = vxor.u32 %v1703, 2147483648
    %v1706 = vmul.f32 %v1705, 1.442695
    %v1707 = vpow.pop %v1706
    %v1708 = vadd.f32 %v1707, 1.0
    %v1709 = vrcp.pop %v1708
    %v1710 = vmul.f32 1.0, %v1709
    %v1711 = vtanh.pop %v1704
    %v1712 = vxor.u32 %v1704, 2147483648
    %v1713 = vmul.f32 %v1712, 1.442695
    %v1714 = vpow.pop %v1713
    %v1715 = vadd.f32 %v1714, 1.0
    %v1716 = vrcp.pop %v1715
    %v1717 = vmul.f32 1.0, %v1716
    %v1718 = vmul.f32 %v1710, %v1647
    %v1719 = vmul.f32 %v1710, %v1711
    %1721 = vrot.lane.b32.xlu0 %v1719, 64
    %v1722 = vpop.permute.xlu0 %1721
    %v1724 = vadd.f32 %v1718, %v1722
    %v1725 = vtanh.pop %v1724
    %v1726 = vmul.f32 %v1717, %v1725
    %s1727 = smul.u32 16, 2
    %s1728 = smul.addr %s1727, 8
    %s1729 = scalar_lea.vmem [#allocation2], %s1728
    %v1730 = vld [vmem:[%s1729] sm:$0xff]
    %v1731 = vld [vmem:[%s1729 + $0x8] sm:$0xff]
    %v1732 = vpack.c.bf16 %v1726, %v1726
    %1734 = vrot.lane.b32.xlu0 %v1732, 64
    %v1735 = vpop.permute.xlu0 %1734
    %v1737 = vsel %vm503, %v1735, 0
    %1739 = vmatprep.subr.bf16.mxu0 %v488
    %1740 = vmatpush1.bf16.msra.mxu0 %v487
    %1741 = vmatprep.subr.bf16.mxu0 %v490
    %1742 = vmatpush1.bf16.msra.mxu0 %v489
    %1743 = vmatprep.subr.bf16.mxu0 %v492
    %1744 = vmatpush1.bf16.msra.mxu0 %v491
    %1745 = vmatprep.subr.bf16.mxu0 %v494
    %1746 = vmatpush1.bf16.msra.mxu0 %v493
    %1747 = vmatprep.subr.bf16.mxu0 0
    %1748 = vmatpush1.bf16.msra.mxu0 0
    %1749 = vmatprep.subr.bf16.mxu0 0
    %1750 = vmatpush1.bf16.msra.mxu0 0
    %1751 = vmatprep.subr.bf16.mxu0 0
    %1752 = vmatpush1.bf16.msra.mxu0 0
    %1753 = vmatprep.subr.bf16.mxu0 0
    %1754 = vmatpush1.bf16.msra.mxu0 0
    %1755 = vmatprep.subr.bf16.mxu0 0
    %1756 = vmatpush1.bf16.msra.mxu0 0
    %1757 = vmatprep.subr.bf16.mxu0 0
    %1758 = vmatpush1.bf16.msra.mxu0 0
    %1759 = vmatprep.subr.bf16.mxu0 0
    %1760 = vmatpush1.bf16.msra.mxu0 0
    %1761 = vmatprep.subr.bf16.mxu0 0
    %1762 = vmatpush1.bf16.msra.mxu0 0
    %1763 = vmatprep.subr.bf16.mxu0 0
    %1764 = vmatpush1.bf16.msra.mxu0 0
    %1765 = vmatprep.subr.bf16.mxu0 0
    %1766 = vmatpush1.bf16.msra.mxu0 0
    %1767 = vmatprep.subr.bf16.mxu0 0
    %1768 = vmatpush1.bf16.msra.mxu0 0
    %1769 = vmatprep.subr.bf16.mxu0 0
    %1770 = vmatpush1.bf16.msra.mxu0 0
    %1771 = vmatprep.mubr.bf16.mxu0 0
    %1772 = vmatmul.mubr.bf16.gmra.mrb[0].mxu0 %v1737
    %v1773 = vpop.f32.mrb[0].mxu0
    %v1774 = vadd.f32 0.0, %v1773
    %v1775 = vpop.f32.mrb[0].mxu0
    %v1776 = vadd.f32 0.0, %v1775
    %v1777 = vpop.f32.mrb[0].mxu0
    %v1778 = vpop.f32.mrb[0].mxu0
    %1779 = vdwg.mxu0
    %v1780 = vadd.f32 %v1730, %v1774
    %v1781 = vadd.f32 %v1731, %v1776
    %v1782 = vxor.u32 %v1780, 2147483648
    %v1783 = vmul.f32 %v1782, 1.442695
    %v1784 = vpow.pop %v1783
    %v1785 = vadd.f32 %v1784, 1.0
    %v1786 = vrcp.pop %v1785
    %v1787 = vmul.f32 1.0, %v1786
    %v1788 = vtanh.pop %v1781
    %v1789 = vxor.u32 %v1781, 2147483648
    %v1790 = vmul.f32 %v1789, 1.442695
    %v1791 = vpow.pop %v1790
    %v1792 = vadd.f32 %v1791, 1.0
    %v1793 = vrcp.pop %v1792
    %v1794 = vmul.f32 1.0, %v1793
    %v1795 = vmul.f32 %v1787, %v1724
    %v1796 = vmul.f32 %v1787, %v1788
    %1798 = vrot.lane.b32.xlu0 %v1796, 64
    %v1799 = vpop.permute.xlu0 %1798
    %v1801 = vadd.f32 %v1795, %v1799
    %v1802 = vtanh.pop %v1801
    %v1803 = vmul.f32 %v1794, %v1802
    %s1804 = smul.u32 17, 2
    %s1805 = smul.addr %s1804, 8
    %s1806 = scalar_lea.vmem [#allocation2], %s1805
    %v1807 = vld [vmem:[%s1806] sm:$0xff]
    %v1808 = vld [vmem:[%s1806 + $0x8] sm:$0xff]
    %v1809 = vpack.c.bf16 %v1803, %v1803
    %1811 = vrot.lane.b32.xlu0 %v1809, 64
    %v1812 = vpop.permute.xlu0 %1811
    %v1814 = vsel %vm503, %v1812, 0
    %1816 = vmatprep.subr.bf16.mxu0 %v488
    %1817 = vmatpush1.bf16.msra.mxu0 %v487
    %1818 = vmatprep.subr.bf16.mxu0 %v490
    %1819 = vmatpush1.bf16.msra.mxu0 %v489
    %1820 = vmatprep.subr.bf16.mxu0 %v492
    %1821 = vmatpush1.bf16.msra.mxu0 %v491
    %1822 = vmatprep.subr.bf16.mxu0 %v494
    %1823 = vmatpush1.bf16.msra.mxu0 %v493
    %1824 = vmatprep.subr.bf16.mxu0 0
    %1825 = vmatpush1.bf16.msra.mxu0 0
    %1826 = vmatprep.subr.bf16.mxu0 0
    %1827 = vmatpush1.bf16.msra.mxu0 0
    %1828 = vmatprep.subr.bf16.mxu0 0
    %1829 = vmatpush1.bf16.msra.mxu0 0
    %1830 = vmatprep.subr.bf16.mxu0 0
    %1831 = vmatpush1.bf16.msra.mxu0 0
    %1832 = vmatprep.subr.bf16.mxu0 0
    %1833 = vmatpush1.bf16.msra.mxu0 0
    %1834 = vmatprep.subr.bf16.mxu0 0
    %1835 = vmatpush1.bf16.msra.mxu0 0
    %1836 = vmatprep.subr.bf16.mxu0 0
    %1837 = vmatpush1.bf16.msra.mxu0 0
    %1838 = vmatprep.subr.bf16.mxu0 0
    %1839 = vmatpush1.bf16.msra.mxu0 0
    %1840 = vmatprep.subr.bf16.mxu0 0
    %1841 = vmatpush1.bf16.msra.mxu0 0
    %1842 = vmatprep.subr.bf16.mxu0 0
    %1843 = vmatpush1.bf16.msra.mxu0 0
    %1844 = vmatprep.subr.bf16.mxu0 0
    %1845 = vmatpush1.bf16.msra.mxu0 0
    %1846 = vmatprep.subr.bf16.mxu0 0
    %1847 = vmatpush1.bf16.msra.mxu0 0
    %1848 = vmatprep.mubr.bf16.mxu0 0
    %1849 = vmatmul.mubr.bf16.gmra.mrb[0].mxu0 %v1814
    %v1850 = vpop.f32.mrb[0].mxu0
    %v1851 = vadd.f32 0.0, %v1850
    %v1852 = vpop.f32.mrb[0].mxu0
    %v1853 = vadd.f32 0.0, %v1852
    %v1854 = vpop.f32.mrb[0].mxu0
    %v1855 = vpop.f32.mrb[0].mxu0
    %1856 = vdwg.mxu0
    %v1857 = vadd.f32 %v1807, %v1851
    %v1858 = vadd.f32 %v1808, %v1853
    %v1859 = vxor.u32 %v1857, 2147483648
    %v1860 = vmul.f32 %v1859, 1.442695
    %v1861 = vpow.pop %v1860
    %v1862 = vadd.f32 %v1861, 1.0
    %v1863 = vrcp.pop %v1862
    %v1864 = vmul.f32 1.0, %v1863
    %v1865 = vtanh.pop %v1858
    %v1866 = vxor.u32 %v1858, 2147483648
    %v1867 = vmul.f32 %v1866, 1.442695
    %v1868 = vpow.pop %v1867
    %v1869 = vadd.f32 %v1868, 1.0
    %v1870 = vrcp.pop %v1869
    %v1871 = vmul.f32 1.0, %v1870
    %v1872 = vmul.f32 %v1864, %v1801
    %v1873 = vmul.f32 %v1864, %v1865
    %1875 = vrot.lane.b32.xlu0 %v1873, 64
    %v1876 = vpop.permute.xlu0 %1875
    %v1878 = vadd.f32 %v1872, %v1876
    %v1879 = vtanh.pop %v1878
    %v1880 = vmul.f32 %v1871, %v1879
    %s1881 = smul.u32 18, 2
    %s1882 = smul.addr %s1881, 8
    %s1883 = scalar_lea.vmem [#allocation2], %s1882
    %v1884 = vld [vmem:[%s1883] sm:$0xff]
    %v1885 = vld [vmem:[%s1883 + $0x8] sm:$0xff]
    %v1886 = vpack.c.bf16 %v1880, %v1880
    %1888 = vrot.lane.b32.xlu0 %v1886, 64
    %v1889 = vpop.permute.xlu0 %1888
    %v1891 = vsel %vm503, %v1889, 0
    %1893 = vmatprep.subr.bf16.mxu0 %v488
    %1894 = vmatpush1.bf16.msra.mxu0 %v487
    %1895 = vmatprep.subr.bf16.mxu0 %v490
    %1896 = vmatpush1.bf16.msra.mxu0 %v489
    %1897 = vmatprep.subr.bf16.mxu0 %v492
    %1898 = vmatpush1.bf16.msra.mxu0 %v491
    %1899 = vmatprep.subr.bf16.mxu0 %v494
    %1900 = vmatpush1.bf16.msra.mxu0 %v493
    %1901 = vmatprep.subr.bf16.mxu0 0
    %1902 = vmatpush1.bf16.msra.mxu0 0
    %1903 = vmatprep.subr.bf16.mxu0 0
    %1904 = vmatpush1.bf16.msra.mxu0 0
    %1905 = vmatprep.subr.bf16.mxu0 0
    %1906 = vmatpush1.bf16.msra.mxu0 0
    %1907 = vmatprep.subr.bf16.mxu0 0
    %1908 = vmatpush1.bf16.msra.mxu0 0
    %1909 = vmatprep.subr.bf16.mxu0 0
    %1910 = vmatpush1.bf16.msra.mxu0 0
    %1911 = vmatprep.subr.bf16.mxu0 0
    %1912 = vmatpush1.bf16.msra.mxu0 0
    %1913 = vmatprep.subr.bf16.mxu0 0
    %1914 = vmatpush1.bf16.msra.mxu0 0
    %1915 = vmatprep.subr.bf16.mxu0 0
    %1916 = vmatpush1.bf16.msra.mxu0 0
    %1917 = vmatprep.subr.bf16.mxu0 0
    %1918 = vmatpush1.bf16.msra.mxu0 0
    %1919 = vmatprep.subr.bf16.mxu0 0
    %1920 = vmatpush1.bf16.msra.mxu0 0
    %1921 = vmatprep.subr.bf16.mxu0 0
    %1922 = vmatpush1.bf16.msra.mxu0 0
    %1923 = vmatprep.subr.bf16.mxu0 0
    %1924 = vmatpush1.bf16.msra.mxu0 0
    %1925 = vmatprep.mubr.bf16.mxu0 0
    %1926 = vmatmul.mubr.bf16.gmra.mrb[0].mxu0 %v1891
    %v1927 = vpop.f32.mrb[0].mxu0
    %v1928 = vadd.f32 0.0, %v1927
    %v1929 = vpop.f32.mrb[0].mxu0
    %v1930 = vadd.f32 0.0, %v1929
    %v1931 = vpop.f32.mrb[0].mxu0
    %v1932 = vpop.f32.mrb[0].mxu0
    %1933 = vdwg.mxu0
    %v1934 = vadd.f32 %v1884, %v1928
    %v1935 = vadd.f32 %v1885, %v1930
    %v1936 = vxor.u32 %v1934, 2147483648
    %v1937 = vmul.f32 %v1936, 1.442695
    %v1938 = vpow.pop %v1937
    %v1939 = vadd.f32 %v1938, 1.0
    %v1940 = vrcp.pop %v1939
    %v1941 = vmul.f32 1.0, %v1940
    %v1942 = vtanh.pop %v1935
    %v1943 = vxor.u32 %v1935, 2147483648
    %v1944 = vmul.f32 %v1943, 1.442695
    %v1945 = vpow.pop %v1944
    %v1946 = vadd.f32 %v1945, 1.0
    %v1947 = vrcp.pop %v1946
    %v1948 = vmul.f32 1.0, %v1947
    %v1949 = vmul.f32 %v1941, %v1878
    %v1950 = vmul.f32 %v1941, %v1942
    %1952 = vrot.lane.b32.xlu0 %v1950, 64
    %v1953 = vpop.permute.xlu0 %1952
    %v1955 = vadd.f32 %v1949, %v1953
    %v1956 = vtanh.pop %v1955
    %v1957 = vmul.f32 %v1948, %v1956
    %s1958 = smul.u32 19, 2
    %s1959 = smul.addr %s1958, 8
    %s1960 = scalar_lea.vmem [#allocation2], %s1959
    %v1961 = vld [vmem:[%s1960] sm:$0xff]
    %v1962 = vld [vmem:[%s1960 + $0x8] sm:$0xff]
    %v1963 = vpack.c.bf16 %v1957, %v1957
    %1965 = vrot.lane.b32.xlu0 %v1963, 64
    %v1966 = vpop.permute.xlu0 %1965
    %v1968 = vsel %vm503, %v1966, 0
    %1970 = vmatprep.subr.bf16.mxu0 %v488
    %1971 = vmatpush1.bf16.msra.mxu0 %v487
    %1972 = vmatprep.subr.bf16.mxu0 %v490
    %1973 = vmatpush1.bf16.msra.mxu0 %v489
    %1974 = vmatprep.subr.bf16.mxu0 %v492
    %1975 = vmatpush1.bf16.msra.mxu0 %v491
    %1976 = vmatprep.subr.bf16.mxu0 %v494
    %1977 = vmatpush1.bf16.msra.mxu0 %v493
    %1978 = vmatprep.subr.bf16.mxu0 0
    %1979 = vmatpush1.bf16.msra.mxu0 0
    %1980 = vmatprep.subr.bf16.mxu0 0
    %1981 = vmatpush1.bf16.msra.mxu0 0
    %1982 = vmatprep.subr.bf16.mxu0 0
    %1983 = vmatpush1.bf16.msra.mxu0 0
    %1984 = vmatprep.subr.bf16.mxu0 0
    %1985 = vmatpush1.bf16.msra.mxu0 0
    %1986 = vmatprep.subr.bf16.mxu0 0
    %1987 = vmatpush1.bf16.msra.mxu0 0
    %1988 = vmatprep.subr.bf16.mxu0 0
    %1989 = vmatpush1.bf16.msra.mxu0 0
    %1990 = vmatprep.subr.bf16.mxu0 0
    %1991 = vmatpush1.bf16.msra.mxu0 0
    %1992 = vmatprep.subr.bf16.mxu0 0
    %1993 = vmatpush1.bf16.msra.mxu0 0
    %1994 = vmatprep.subr.bf16.mxu0 0
    %1995 = vmatpush1.bf16.msra.mxu0 0
    %1996 = vmatprep.subr.bf16.mxu0 0
    %1997 = vmatpush1.bf16.msra.mxu0 0
    %1998 = vmatprep.subr.bf16.mxu0 0
    %1999 = vmatpush1.bf16.msra.mxu0 0
    %2000 = vmatprep.subr.bf16.mxu0 0
    %2001 = vmatpush1.bf16.msra.mxu0 0
    %2002 = vmatprep.mubr.bf16.mxu0 0
    %2003 = vmatmul.mubr.bf16.gmra.mrb[0].mxu0 %v1968
    %v2004 = vpop.f32.mrb[0].mxu0
    %v2005 = vadd.f32 0.0, %v2004
    %v2006 = vpop.f32.mrb[0].mxu0
    %v2007 = vadd.f32 0.0, %v2006
    %v2008 = vpop.f32.mrb[0].mxu0
    %v2009 = vpop.f32.mrb[0].mxu0
    %2010 = vdwg.mxu0
    %v2011 = vadd.f32 %v1961, %v2005
    %v2012 = vadd.f32 %v1962, %v2007
    %v2013 = vxor.u32 %v2011, 2147483648
    %v2014 = vmul.f32 %v2013, 1.442695
    %v2015 = vpow.pop %v2014
    %v2016 = vadd.f32 %v2015, 1.0
    %v2017 = vrcp.pop %v2016
    %v2018 = vmul.f32 1.0, %v2017
    %v2019 = vtanh.pop %v2012
    %v2020 = vxor.u32 %v2012, 2147483648
    %v2021 = vmul.f32 %v2020, 1.442695
    %v2022 = vpow.pop %v2021
    %v2023 = vadd.f32 %v2022, 1.0
    %v2024 = vrcp.pop %v2023
    %v2025 = vmul.f32 1.0, %v2024
    %v2026 = vmul.f32 %v2018, %v1955
    %v2027 = vmul.f32 %v2018, %v2019
    %2029 = vrot.lane.b32.xlu0 %v2027, 64
    %v2030 = vpop.permute.xlu0 %2029
    %v2032 = vadd.f32 %v2026, %v2030
    %v2033 = vtanh.pop %v2032
    %v2034 = vmul.f32 %v2025, %v2033
    %s2035 = smul.u32 20, 2
    %s2036 = smul.addr %s2035, 8
    %s2037 = scalar_lea.vmem [#allocation2], %s2036
    %v2038 = vld [vmem:[%s2037] sm:$0xff]
    %v2039 = vld [vmem:[%s2037 + $0x8] sm:$0xff]
    %v2040 = vpack.c.bf16 %v2034, %v2034
    %2042 = vrot.lane.b32.xlu0 %v2040, 64
    %v2043 = vpop.permute.xlu0 %2042
    %v2045 = vsel %vm503, %v2043, 0
    %2047 = vmatprep.subr.bf16.mxu0 %v488
    %2048 = vmatpush1.bf16.msra.mxu0 %v487
    %2049 = vmatprep.subr.bf16.mxu0 %v490
    %2050 = vmatpush1.bf16.msra.mxu0 %v489
    %2051 = vmatprep.subr.bf16.mxu0 %v492
    %2052 = vmatpush1.bf16.msra.mxu0 %v491
    %2053 = vmatprep.subr.bf16.mxu0 %v494
    %2054 = vmatpush1.bf16.msra.mxu0 %v493
    %2055 = vmatprep.subr.bf16.mxu0 0
    %2056 = vmatpush1.bf16.msra.mxu0 0
    %2057 = vmatprep.subr.bf16.mxu0 0
    %2058 = vmatpush1.bf16.msra.mxu0 0
    %2059 = vmatprep.subr.bf16.mxu0 0
    %2060 = vmatpush1.bf16.msra.mxu0 0
    %2061 = vmatprep.subr.bf16.mxu0 0
    %2062 = vmatpush1.bf16.msra.mxu0 0
    %2063 = vmatprep.subr.bf16.mxu0 0
    %2064 = vmatpush1.bf16.msra.mxu0 0
    %2065 = vmatprep.subr.bf16.mxu0 0
    %2066 = vmatpush1.bf16.msra.mxu0 0
    %2067 = vmatprep.subr.bf16.mxu0 0
    %2068 = vmatpush1.bf16.msra.mxu0 0
    %2069 = vmatprep.subr.bf16.mxu0 0
    %2070 = vmatpush1.bf16.msra.mxu0 0
    %2071 = vmatprep.subr.bf16.mxu0 0
    %2072 = vmatpush1.bf16.msra.mxu0 0
    %2073 = vmatprep.subr.bf16.mxu0 0
    %2074 = vmatpush1.bf16.msra.mxu0 0
    %2075 = vmatprep.subr.bf16.mxu0 0
    %2076 = vmatpush1.bf16.msra.mxu0 0
    %2077 = vmatprep.subr.bf16.mxu0 0
    %2078 = vmatpush1.bf16.msra.mxu0 0
    %2079 = vmatprep.mubr.bf16.mxu0 0
    %2080 = vmatmul.mubr.bf16.gmra.mrb[0].mxu0 %v2045
    %v2081 = vpop.f32.mrb[0].mxu0
    %v2082 = vadd.f32 0.0, %v2081
    %v2083 = vpop.f32.mrb[0].mxu0
    %v2084 = vadd.f32 0.0, %v2083
    %v2085 = vpop.f32.mrb[0].mxu0
    %v2086 = vpop.f32.mrb[0].mxu0
    %2087 = vdwg.mxu0
    %v2088 = vadd.f32 %v2038, %v2082
    %v2089 = vadd.f32 %v2039, %v2084
    %v2090 = vxor.u32 %v2088, 2147483648
    %v2091 = vmul.f32 %v2090, 1.442695
    %v2092 = vpow.pop %v2091
    %v2093 = vadd.f32 %v2092, 1.0
    %v2094 = vrcp.pop %v2093
    %v2095 = vmul.f32 1.0, %v2094
    %v2096 = vtanh.pop %v2089
    %v2097 = vxor.u32 %v2089, 2147483648
    %v2098 = vmul.f32 %v2097, 1.442695
    %v2099 = vpow.pop %v2098
    %v2100 = vadd.f32 %v2099, 1.0
    %v2101 = vrcp.pop %v2100
    %v2102 = vmul.f32 1.0, %v2101
    %v2103 = vmul.f32 %v2095, %v2032
    %v2104 = vmul.f32 %v2095, %v2096
    %2106 = vrot.lane.b32.xlu0 %v2104, 64
    %v2107 = vpop.permute.xlu0 %2106
    %v2109 = vadd.f32 %v2103, %v2107
    %v2110 = vtanh.pop %v2109
    %v2111 = vmul.f32 %v2102, %v2110
    %s2112 = smul.u32 21, 2
    %s2113 = smul.addr %s2112, 8
    %s2114 = scalar_lea.vmem [#allocation2], %s2113
    %v2115 = vld [vmem:[%s2114] sm:$0xff]
    %v2116 = vld [vmem:[%s2114 + $0x8] sm:$0xff]
    %v2117 = vpack.c.bf16 %v2111, %v2111
    %2119 = vrot.lane.b32.xlu0 %v2117, 64
    %v2120 = vpop.permute.xlu0 %2119
    %v2122 = vsel %vm503, %v2120, 0
    %2124 = vmatprep.subr.bf16.mxu0 %v488
    %2125 = vmatpush1.bf16.msra.mxu0 %v487
    %2126 = vmatprep.subr.bf16.mxu0 %v490
    %2127 = vmatpush1.bf16.msra.mxu0 %v489
    %2128 = vmatprep.subr.bf16.mxu0 %v492
    %2129 = vmatpush1.bf16.msra.mxu0 %v491
    %2130 = vmatprep.subr.bf16.mxu0 %v494
    %2131 = vmatpush1.bf16.msra.mxu0 %v493
    %2132 = vmatprep.subr.bf16.mxu0 0
    %2133 = vmatpush1.bf16.msra.mxu0 0
    %2134 = vmatprep.subr.bf16.mxu0 0
    %2135 = vmatpush1.bf16.msra.mxu0 0
    %2136 = vmatprep.subr.bf16.mxu0 0
    %2137 = vmatpush1.bf16.msra.mxu0 0
    %2138 = vmatprep.subr.bf16.mxu0 0
    %2139 = vmatpush1.bf16.msra.mxu0 0
    %2140 = vmatprep.subr.bf16.mxu0 0
    %2141 = vmatpush1.bf16.msra.mxu0 0
    %2142 = vmatprep.subr.bf16.mxu0 0
    %2143 = vmatpush1.bf16.msra.mxu0 0
    %2144 = vmatprep.subr.bf16.mxu0 0
    %2145 = vmatpush1.bf16.msra.mxu0 0
    %2146 = vmatprep.subr.bf16.mxu0 0
    %2147 = vmatpush1.bf16.msra.mxu0 0
    %2148 = vmatprep.subr.bf16.mxu0 0
    %2149 = vmatpush1.bf16.msra.mxu0 0
    %2150 = vmatprep.subr.bf16.mxu0 0
    %2151 = vmatpush1.bf16.msra.mxu0 0
    %2152 = vmatprep.subr.bf16.mxu0 0
    %2153 = vmatpush1.bf16.msra.mxu0 0
    %2154 = vmatprep.subr.bf16.mxu0 0
    %2155 = vmatpush1.bf16.msra.mxu0 0
    %2156 = vmatprep.mubr.bf16.mxu0 0
    %2157 = vmatmul.mubr.bf16.gmra.mrb[0].mxu0 %v2122
    %v2158 = vpop.f32.mrb[0].mxu0
    %v2159 = vadd.f32 0.0, %v2158
    %v2160 = vpop.f32.mrb[0].mxu0
    %v2161 = vadd.f32 0.0, %v2160
    %v2162 = vpop.f32.mrb[0].mxu0
    %v2163 = vpop.f32.mrb[0].mxu0
    %2164 = vdwg.mxu0
    %v2165 = vadd.f32 %v2115, %v2159
    %v2166 = vadd.f32 %v2116, %v2161
    %v2167 = vxor.u32 %v2165, 2147483648
    %v2168 = vmul.f32 %v2167, 1.442695
    %v2169 = vpow.pop %v2168
    %v2170 = vadd.f32 %v2169, 1.0
    %v2171 = vrcp.pop %v2170
    %v2172 = vmul.f32 1.0, %v2171
    %v2173 = vtanh.pop %v2166
    %v2174 = vxor.u32 %v2166, 2147483648
    %v2175 = vmul.f32 %v2174, 1.442695
    %v2176 = vpow.pop %v2175
    %v2177 = vadd.f32 %v2176, 1.0
    %v2178 = vrcp.pop %v2177
    %v2179 = vmul.f32 1.0, %v2178
    %v2180 = vmul.f32 %v2172, %v2109
    %v2181 = vmul.f32 %v2172, %v2173
    %2183 = vrot.lane.b32.xlu0 %v2181, 64
    %v2184 = vpop.permute.xlu0 %2183
    %v2186 = vadd.f32 %v2180, %v2184
    %v2187 = vtanh.pop %v2186
    %v2188 = vmul.f32 %v2179, %v2187
    %s2189 = smul.u32 22, 2
    %s2190 = smul.addr %s2189, 8
    %s2191 = scalar_lea.vmem [#allocation2], %s2190
    %v2192 = vld [vmem:[%s2191] sm:$0xff]
    %v2193 = vld [vmem:[%s2191 + $0x8] sm:$0xff]
    %v2194 = vpack.c.bf16 %v2188, %v2188
    %2196 = vrot.lane.b32.xlu0 %v2194, 64
    %v2197 = vpop.permute.xlu0 %2196
    %v2199 = vsel %vm503, %v2197, 0
    %2201 = vmatprep.subr.bf16.mxu0 %v488
    %2202 = vmatpush1.bf16.msra.mxu0 %v487
    %2203 = vmatprep.subr.bf16.mxu0 %v490
    %2204 = vmatpush1.bf16.msra.mxu0 %v489
    %2205 = vmatprep.subr.bf16.mxu0 %v492
    %2206 = vmatpush1.bf16.msra.mxu0 %v491
    %2207 = vmatprep.subr.bf16.mxu0 %v494
    %2208 = vmatpush1.bf16.msra.mxu0 %v493
    %2209 = vmatprep.subr.bf16.mxu0 0
    %2210 = vmatpush1.bf16.msra.mxu0 0
    %2211 = vmatprep.subr.bf16.mxu0 0
    %2212 = vmatpush1.bf16.msra.mxu0 0
    %2213 = vmatprep.subr.bf16.mxu0 0
    %2214 = vmatpush1.bf16.msra.mxu0 0
    %2215 = vmatprep.subr.bf16.mxu0 0
    %2216 = vmatpush1.bf16.msra.mxu0 0
    %2217 = vmatprep.subr.bf16.mxu0 0
    %2218 = vmatpush1.bf16.msra.mxu0 0
    %2219 = vmatprep.subr.bf16.mxu0 0
    %2220 = vmatpush1.bf16.msra.mxu0 0
    %2221 = vmatprep.subr.bf16.mxu0 0
    %2222 = vmatpush1.bf16.msra.mxu0 0
    %2223 = vmatprep.subr.bf16.mxu0 0
    %2224 = vmatpush1.bf16.msra.mxu0 0
    %2225 = vmatprep.subr.bf16.mxu0 0
    %2226 = vmatpush1.bf16.msra.mxu0 0
    %2227 = vmatprep.subr.bf16.mxu0 0
    %2228 = vmatpush1.bf16.msra.mxu0 0
    %2229 = vmatprep.subr.bf16.mxu0 0
    %2230 = vmatpush1.bf16.msra.mxu0 0
    %2231 = vmatprep.subr.bf16.mxu0 0
    %2232 = vmatpush1.bf16.msra.mxu0 0
    %2233 = vmatprep.mubr.bf16.mxu0 0
    %2234 = vmatmul.mubr.bf16.gmra.mrb[0].mxu0 %v2199
    %v2235 = vpop.f32.mrb[0].mxu0
    %v2236 = vadd.f32 0.0, %v2235
    %v2237 = vpop.f32.mrb[0].mxu0
    %v2238 = vadd.f32 0.0, %v2237
    %v2239 = vpop.f32.mrb[0].mxu0
    %v2240 = vpop.f32.mrb[0].mxu0
    %2241 = vdwg.mxu0
    %v2242 = vadd.f32 %v2192, %v2236
    %v2243 = vadd.f32 %v2193, %v2238
    %v2244 = vxor.u32 %v2242, 2147483648
    %v2245 = vmul.f32 %v2244, 1.442695
    %v2246 = vpow.pop %v2245
    %v2247 = vadd.f32 %v2246, 1.0
    %v2248 = vrcp.pop %v2247
    %v2249 = vmul.f32 1.0, %v2248
    %v2250 = vtanh.pop %v2243
    %v2251 = vxor.u32 %v2243, 2147483648
    %v2252 = vmul.f32 %v2251, 1.442695
    %v2253 = vpow.pop %v2252
    %v2254 = vadd.f32 %v2253, 1.0
    %v2255 = vrcp.pop %v2254
    %v2256 = vmul.f32 1.0, %v2255
    %v2257 = vmul.f32 %v2249, %v2186
    %v2258 = vmul.f32 %v2249, %v2250
    %2260 = vrot.lane.b32.xlu0 %v2258, 64
    %v2261 = vpop.permute.xlu0 %2260
    %v2263 = vadd.f32 %v2257, %v2261
    %v2264 = vtanh.pop %v2263
    %v2265 = vmul.f32 %v2256, %v2264
    %s2266 = smul.u32 23, 2
    %s2267 = smul.addr %s2266, 8
    %s2268 = scalar_lea.vmem [#allocation2], %s2267
    %v2269 = vld [vmem:[%s2268] sm:$0xff]
    %v2270 = vld [vmem:[%s2268 + $0x8] sm:$0xff]
    %v2271 = vpack.c.bf16 %v2265, %v2265
    %2273 = vrot.lane.b32.xlu0 %v2271, 64
    %v2274 = vpop.permute.xlu0 %2273
    %v2276 = vsel %vm503, %v2274, 0
    %2278 = vmatprep.subr.bf16.mxu0 %v488
    %2279 = vmatpush1.bf16.msra.mxu0 %v487
    %2280 = vmatprep.subr.bf16.mxu0 %v490
    %2281 = vmatpush1.bf16.msra.mxu0 %v489
    %2282 = vmatprep.subr.bf16.mxu0 %v492
    %2283 = vmatpush1.bf16.msra.mxu0 %v491
    %2284 = vmatprep.subr.bf16.mxu0 %v494
    %2285 = vmatpush1.bf16.msra.mxu0 %v493
    %2286 = vmatprep.subr.bf16.mxu0 0
    %2287 = vmatpush1.bf16.msra.mxu0 0
    %2288 = vmatprep.subr.bf16.mxu0 0
    %2289 = vmatpush1.bf16.msra.mxu0 0
    %2290 = vmatprep.subr.bf16.mxu0 0
    %2291 = vmatpush1.bf16.msra.mxu0 0
    %2292 = vmatprep.subr.bf16.mxu0 0
    %2293 = vmatpush1.bf16.msra.mxu0 0
    %2294 = vmatprep.subr.bf16.mxu0 0
    %2295 = vmatpush1.bf16.msra.mxu0 0
    %2296 = vmatprep.subr.bf16.mxu0 0
    %2297 = vmatpush1.bf16.msra.mxu0 0
    %2298 = vmatprep.subr.bf16.mxu0 0
    %2299 = vmatpush1.bf16.msra.mxu0 0
    %2300 = vmatprep.subr.bf16.mxu0 0
    %2301 = vmatpush1.bf16.msra.mxu0 0
    %2302 = vmatprep.subr.bf16.mxu0 0
    %2303 = vmatpush1.bf16.msra.mxu0 0
    %2304 = vmatprep.subr.bf16.mxu0 0
    %2305 = vmatpush1.bf16.msra.mxu0 0
    %2306 = vmatprep.subr.bf16.mxu0 0
    %2307 = vmatpush1.bf16.msra.mxu0 0
    %2308 = vmatprep.subr.bf16.mxu0 0
    %2309 = vmatpush1.bf16.msra.mxu0 0
    %2310 = vmatprep.mubr.bf16.mxu0 0
    %2311 = vmatmul.mubr.bf16.gmra.mrb[0].mxu0 %v2276
    %v2312 = vpop.f32.mrb[0].mxu0
    %v2313 = vadd.f32 0.0, %v2312
    %v2314 = vpop.f32.mrb[0].mxu0
    %v2315 = vadd.f32 0.0, %v2314
    %v2316 = vpop.f32.mrb[0].mxu0
    %v2317 = vpop.f32.mrb[0].mxu0
    %2318 = vdwg.mxu0
    %v2319 = vadd.f32 %v2269, %v2313
    %v2320 = vadd.f32 %v2270, %v2315
    %v2321 = vxor.u32 %v2319, 2147483648
    %v2322 = vmul.f32 %v2321, 1.442695
    %v2323 = vpow.pop %v2322
    %v2324 = vadd.f32 %v2323, 1.0
    %v2325 = vrcp.pop %v2324
    %v2326 = vmul.f32 1.0, %v2325
    %v2327 = vtanh.pop %v2320
    %v2328 = vxor.u32 %v2320, 2147483648
    %v2329 = vmul.f32 %v2328, 1.442695
    %v2330 = vpow.pop %v2329
    %v2331 = vadd.f32 %v2330, 1.0
    %v2332 = vrcp.pop %v2331
    %v2333 = vmul.f32 1.0, %v2332
    %v2334 = vmul.f32 %v2326, %v2263
    %v2335 = vmul.f32 %v2326, %v2327
    %2337 = vrot.lane.b32.xlu0 %v2335, 64
    %v2338 = vpop.permute.xlu0 %2337
    %v2340 = vadd.f32 %v2334, %v2338
    %v2341 = vtanh.pop %v2340
    %v2342 = vmul.f32 %v2333, %v2341
    %s2343 = smul.u32 24, 2
    %s2344 = smul.addr %s2343, 8
    %s2345 = scalar_lea.vmem [#allocation2], %s2344
    %v2346 = vld [vmem:[%s2345] sm:$0xff]
    %v2347 = vld [vmem:[%s2345 + $0x8] sm:$0xff]
    %v2348 = vpack.c.bf16 %v2342, %v2342
    %2350 = vrot.lane.b32.xlu0 %v2348, 64
    %v2351 = vpop.permute.xlu0 %2350
    %v2353 = vsel %vm503, %v2351, 0
    %2355 = vmatprep.subr.bf16.mxu0 %v488
    %2356 = vmatpush1.bf16.msra.mxu0 %v487
    %2357 = vmatprep.subr.bf16.mxu0 %v490
    %2358 = vmatpush1.bf16.msra.mxu0 %v489
    %2359 = vmatprep.subr.bf16.mxu0 %v492
    %2360 = vmatpush1.bf16.msra.mxu0 %v491
    %2361 = vmatprep.subr.bf16.mxu0 %v494
    %2362 = vmatpush1.bf16.msra.mxu0 %v493
    %2363 = vmatprep.subr.bf16.mxu0 0
    %2364 = vmatpush1.bf16.msra.mxu0 0
    %2365 = vmatprep.subr.bf16.mxu0 0
    %2366 = vmatpush1.bf16.msra.mxu0 0
    %2367 = vmatprep.subr.bf16.mxu0 0
    %2368 = vmatpush1.bf16.msra.mxu0 0
    %2369 = vmatprep.subr.bf16.mxu0 0
    %2370 = vmatpush1.bf16.msra.mxu0 0
    %2371 = vmatprep.subr.bf16.mxu0 0
    %2372 = vmatpush1.bf16.msra.mxu0 0
    %2373 = vmatprep.subr.bf16.mxu0 0
    %2374 = vmatpush1.bf16.msra.mxu0 0
    %2375 = vmatprep.subr.bf16.mxu0 0
    %2376 = vmatpush1.bf16.msra.mxu0 0
    %2377 = vmatprep.subr.bf16.mxu0 0
    %2378 = vmatpush1.bf16.msra.mxu0 0
    %2379 = vmatprep.subr.bf16.mxu0 0
    %2380 = vmatpush1.bf16.msra.mxu0 0
    %2381 = vmatprep.subr.bf16.mxu0 0
    %2382 = vmatpush1.bf16.msra.mxu0 0
    %2383 = vmatprep.subr.bf16.mxu0 0
    %2384 = vmatpush1.bf16.msra.mxu0 0
    %2385 = vmatprep.subr.bf16.mxu0 0
    %2386 = vmatpush1.bf16.msra.mxu0 0
    %2387 = vmatprep.mubr.bf16.mxu0 0
    %2388 = vmatmul.mubr.bf16.gmra.mrb[0].mxu0 %v2353
    %v2389 = vpop.f32.mrb[0].mxu0
    %v2390 = vadd.f32 0.0, %v2389
    %v2391 = vpop.f32.mrb[0].mxu0
    %v2392 = vadd.f32 0.0, %v2391
    %v2393 = vpop.f32.mrb[0].mxu0
    %v2394 = vpop.f32.mrb[0].mxu0
    %2395 = vdwg.mxu0
    %v2396 = vadd.f32 %v2346, %v2390
    %v2397 = vadd.f32 %v2347, %v2392
    %v2398 = vxor.u32 %v2396, 2147483648
    %v2399 = vmul.f32 %v2398, 1.442695
    %v2400 = vpow.pop %v2399
    %v2401 = vadd.f32 %v2400, 1.0
    %v2402 = vrcp.pop %v2401
    %v2403 = vmul.f32 1.0, %v2402
    %v2404 = vtanh.pop %v2397
    %v2405 = vxor.u32 %v2397, 2147483648
    %v2406 = vmul.f32 %v2405, 1.442695
    %v2407 = vpow.pop %v2406
    %v2408 = vadd.f32 %v2407, 1.0
    %v2409 = vrcp.pop %v2408
    %v2410 = vmul.f32 1.0, %v2409
    %v2411 = vmul.f32 %v2403, %v2340
    %v2412 = vmul.f32 %v2403, %v2404
    %2414 = vrot.lane.b32.xlu0 %v2412, 64
    %v2415 = vpop.permute.xlu0 %2414
    %v2417 = vadd.f32 %v2411, %v2415
    %v2418 = vtanh.pop %v2417
    %v2419 = vmul.f32 %v2410, %v2418
    %s2420 = smul.u32 25, 2
    %s2421 = smul.addr %s2420, 8
    %s2422 = scalar_lea.vmem [#allocation2], %s2421
    %v2423 = vld [vmem:[%s2422] sm:$0xff]
    %v2424 = vld [vmem:[%s2422 + $0x8] sm:$0xff]
    %v2425 = vpack.c.bf16 %v2419, %v2419
    %2427 = vrot.lane.b32.xlu0 %v2425, 64
    %v2428 = vpop.permute.xlu0 %2427
    %v2430 = vsel %vm503, %v2428, 0
    %2432 = vmatprep.subr.bf16.mxu0 %v488
    %2433 = vmatpush1.bf16.msra.mxu0 %v487
    %2434 = vmatprep.subr.bf16.mxu0 %v490
    %2435 = vmatpush1.bf16.msra.mxu0 %v489
    %2436 = vmatprep.subr.bf16.mxu0 %v492
    %2437 = vmatpush1.bf16.msra.mxu0 %v491
    %2438 = vmatprep.subr.bf16.mxu0 %v494
    %2439 = vmatpush1.bf16.msra.mxu0 %v493
    %2440 = vmatprep.subr.bf16.mxu0 0
    %2441 = vmatpush1.bf16.msra.mxu0 0
    %2442 = vmatprep.subr.bf16.mxu0 0
    %2443 = vmatpush1.bf16.msra.mxu0 0
    %2444 = vmatprep.subr.bf16.mxu0 0
    %2445 = vmatpush1.bf16.msra.mxu0 0
    %2446 = vmatprep.subr.bf16.mxu0 0
    %2447 = vmatpush1.bf16.msra.mxu0 0
    %2448 = vmatprep.subr.bf16.mxu0 0
    %2449 = vmatpush1.bf16.msra.mxu0 0
    %2450 = vmatprep.subr.bf16.mxu0 0
    %2451 = vmatpush1.bf16.msra.mxu0 0
    %2452 = vmatprep.subr.bf16.mxu0 0
    %2453 = vmatpush1.bf16.msra.mxu0 0
    %2454 = vmatprep.subr.bf16.mxu0 0
    %2455 = vmatpush1.bf16.msra.mxu0 0
    %2456 = vmatprep.subr.bf16.mxu0 0
    %2457 = vmatpush1.bf16.msra.mxu0 0
    %2458 = vmatprep.subr.bf16.mxu0 0
    %2459 = vmatpush1.bf16.msra.mxu0 0
    %2460 = vmatprep.subr.bf16.mxu0 0
    %2461 = vmatpush1.bf16.msra.mxu0 0
    %2462 = vmatprep.subr.bf16.mxu0 0
    %2463 = vmatpush1.bf16.msra.mxu0 0
    %2464 = vmatprep.mubr.bf16.mxu0 0
    %2465 = vmatmul.mubr.bf16.gmra.mrb[0].mxu0 %v2430
    %v2466 = vpop.f32.mrb[0].mxu0
    %v2467 = vadd.f32 0.0, %v2466
    %v2468 = vpop.f32.mrb[0].mxu0
    %v2469 = vadd.f32 0.0, %v2468
    %v2470 = vpop.f32.mrb[0].mxu0
    %v2471 = vpop.f32.mrb[0].mxu0
    %2472 = vdwg.mxu0
    %v2473 = vadd.f32 %v2423, %v2467
    %v2474 = vadd.f32 %v2424, %v2469
    %v2475 = vxor.u32 %v2473, 2147483648
    %v2476 = vmul.f32 %v2475, 1.442695
    %v2477 = vpow.pop %v2476
    %v2478 = vadd.f32 %v2477, 1.0
    %v2479 = vrcp.pop %v2478
    %v2480 = vmul.f32 1.0, %v2479
    %v2481 = vtanh.pop %v2474
    %v2482 = vxor.u32 %v2474, 2147483648
    %v2483 = vmul.f32 %v2482, 1.442695
    %v2484 = vpow.pop %v2483
    %v2485 = vadd.f32 %v2484, 1.0
    %v2486 = vrcp.pop %v2485
    %v2487 = vmul.f32 1.0, %v2486
    %v2488 = vmul.f32 %v2480, %v2417
    %v2489 = vmul.f32 %v2480, %v2481
    %2491 = vrot.lane.b32.xlu0 %v2489, 64
    %v2492 = vpop.permute.xlu0 %2491
    %v2494 = vadd.f32 %v2488, %v2492
    %v2495 = vtanh.pop %v2494
    %v2496 = vmul.f32 %v2487, %v2495
    %s2497 = smul.u32 26, 2
    %s2498 = smul.addr %s2497, 8
    %s2499 = scalar_lea.vmem [#allocation2], %s2498
    %v2500 = vld [vmem:[%s2499] sm:$0xff]
    %v2501 = vld [vmem:[%s2499 + $0x8] sm:$0xff]
    %v2502 = vpack.c.bf16 %v2496, %v2496
    %2504 = vrot.lane.b32.xlu0 %v2502, 64
    %v2505 = vpop.permute.xlu0 %2504
    %v2507 = vsel %vm503, %v2505, 0
    %2509 = vmatprep.subr.bf16.mxu0 %v488
    %2510 = vmatpush1.bf16.msra.mxu0 %v487
    %2511 = vmatprep.subr.bf16.mxu0 %v490
    %2512 = vmatpush1.bf16.msra.mxu0 %v489
    %2513 = vmatprep.subr.bf16.mxu0 %v492
    %2514 = vmatpush1.bf16.msra.mxu0 %v491
    %2515 = vmatprep.subr.bf16.mxu0 %v494
    %2516 = vmatpush1.bf16.msra.mxu0 %v493
    %2517 = vmatprep.subr.bf16.mxu0 0
    %2518 = vmatpush1.bf16.msra.mxu0 0
    %2519 = vmatprep.subr.bf16.mxu0 0
    %2520 = vmatpush1.bf16.msra.mxu0 0
    %2521 = vmatprep.subr.bf16.mxu0 0
    %2522 = vmatpush1.bf16.msra.mxu0 0
    %2523 = vmatprep.subr.bf16.mxu0 0
    %2524 = vmatpush1.bf16.msra.mxu0 0
    %2525 = vmatprep.subr.bf16.mxu0 0
    %2526 = vmatpush1.bf16.msra.mxu0 0
    %2527 = vmatprep.subr.bf16.mxu0 0
    %2528 = vmatpush1.bf16.msra.mxu0 0
    %2529 = vmatprep.subr.bf16.mxu0 0
    %2530 = vmatpush1.bf16.msra.mxu0 0
    %2531 = vmatprep.subr.bf16.mxu0 0
    %2532 = vmatpush1.bf16.msra.mxu0 0
    %2533 = vmatprep.subr.bf16.mxu0 0
    %2534 = vmatpush1.bf16.msra.mxu0 0
    %2535 = vmatprep.subr.bf16.mxu0 0
    %2536 = vmatpush1.bf16.msra.mxu0 0
    %2537 = vmatprep.subr.bf16.mxu0 0
    %2538 = vmatpush1.bf16.msra.mxu0 0
    %2539 = vmatprep.subr.bf16.mxu0 0
    %2540 = vmatpush1.bf16.msra.mxu0 0
    %2541 = vmatprep.mubr.bf16.mxu0 0
    %2542 = vmatmul.mubr.bf16.gmra.mrb[0].mxu0 %v2507
    %v2543 = vpop.f32.mrb[0].mxu0
    %v2544 = vadd.f32 0.0, %v2543
    %v2545 = vpop.f32.mrb[0].mxu0
    %v2546 = vadd.f32 0.0, %v2545
    %v2547 = vpop.f32.mrb[0].mxu0
    %v2548 = vpop.f32.mrb[0].mxu0
    %2549 = vdwg.mxu0
    %v2550 = vadd.f32 %v2500, %v2544
    %v2551 = vadd.f32 %v2501, %v2546
    %v2552 = vxor.u32 %v2550, 2147483648
    %v2553 = vmul.f32 %v2552, 1.442695
    %v2554 = vpow.pop %v2553
    %v2555 = vadd.f32 %v2554, 1.0
    %v2556 = vrcp.pop %v2555
    %v2557 = vmul.f32 1.0, %v2556
    %v2558 = vtanh.pop %v2551
    %v2559 = vxor.u32 %v2551, 2147483648
    %v2560 = vmul.f32 %v2559, 1.442695
    %v2561 = vpow.pop %v2560
    %v2562 = vadd.f32 %v2561, 1.0
    %v2563 = vrcp.pop %v2562
    %v2564 = vmul.f32 1.0, %v2563
    %v2565 = vmul.f32 %v2557, %v2494
    %v2566 = vmul.f32 %v2557, %v2558
    %2568 = vrot.lane.b32.xlu0 %v2566, 64
    %v2569 = vpop.permute.xlu0 %2568
    %v2571 = vadd.f32 %v2565, %v2569
    %v2572 = vtanh.pop %v2571
    %v2573 = vmul.f32 %v2564, %v2572
    %s2574 = smul.u32 27, 2
    %s2575 = smul.addr %s2574, 8
    %s2576 = scalar_lea.vmem [#allocation2], %s2575
    %v2577 = vld [vmem:[%s2576] sm:$0xff]
    %v2578 = vld [vmem:[%s2576 + $0x8] sm:$0xff]
    %v2579 = vpack.c.bf16 %v2573, %v2573
    %2581 = vrot.lane.b32.xlu0 %v2579, 64
    %v2582 = vpop.permute.xlu0 %2581
    %v2584 = vsel %vm503, %v2582, 0
    %2586 = vmatprep.subr.bf16.mxu0 %v488
    %2587 = vmatpush1.bf16.msra.mxu0 %v487
    %2588 = vmatprep.subr.bf16.mxu0 %v490
    %2589 = vmatpush1.bf16.msra.mxu0 %v489
    %2590 = vmatprep.subr.bf16.mxu0 %v492
    %2591 = vmatpush1.bf16.msra.mxu0 %v491
    %2592 = vmatprep.subr.bf16.mxu0 %v494
    %2593 = vmatpush1.bf16.msra.mxu0 %v493
    %2594 = vmatprep.subr.bf16.mxu0 0
    %2595 = vmatpush1.bf16.msra.mxu0 0
    %2596 = vmatprep.subr.bf16.mxu0 0
    %2597 = vmatpush1.bf16.msra.mxu0 0
    %2598 = vmatprep.subr.bf16.mxu0 0
    %2599 = vmatpush1.bf16.msra.mxu0 0
    %2600 = vmatprep.subr.bf16.mxu0 0
    %2601 = vmatpush1.bf16.msra.mxu0 0
    %2602 = vmatprep.subr.bf16.mxu0 0
    %2603 = vmatpush1.bf16.msra.mxu0 0
    %2604 = vmatprep.subr.bf16.mxu0 0
    %2605 = vmatpush1.bf16.msra.mxu0 0
    %2606 = vmatprep.subr.bf16.mxu0 0
    %2607 = vmatpush1.bf16.msra.mxu0 0
    %2608 = vmatprep.subr.bf16.mxu0 0
    %2609 = vmatpush1.bf16.msra.mxu0 0
    %2610 = vmatprep.subr.bf16.mxu0 0
    %2611 = vmatpush1.bf16.msra.mxu0 0
    %2612 = vmatprep.subr.bf16.mxu0 0
    %2613 = vmatpush1.bf16.msra.mxu0 0
    %2614 = vmatprep.subr.bf16.mxu0 0
    %2615 = vmatpush1.bf16.msra.mxu0 0
    %2616 = vmatprep.subr.bf16.mxu0 0
    %2617 = vmatpush1.bf16.msra.mxu0 0
    %2618 = vmatprep.mubr.bf16.mxu0 0
    %2619 = vmatmul.mubr.bf16.gmra.mrb[0].mxu0 %v2584
    %v2620 = vpop.f32.mrb[0].mxu0
    %v2621 = vadd.f32 0.0, %v2620
    %v2622 = vpop.f32.mrb[0].mxu0
    %v2623 = vadd.f32 0.0, %v2622
    %v2624 = vpop.f32.mrb[0].mxu0
    %v2625 = vpop.f32.mrb[0].mxu0
    %2626 = vdwg.mxu0
    %v2627 = vadd.f32 %v2577, %v2621
    %v2628 = vadd.f32 %v2578, %v2623
    %v2629 = vxor.u32 %v2627, 2147483648
    %v2630 = vmul.f32 %v2629, 1.442695
    %v2631 = vpow.pop %v2630
    %v2632 = vadd.f32 %v2631, 1.0
    %v2633 = vrcp.pop %v2632
    %v2634 = vmul.f32 1.0, %v2633
    %v2635 = vtanh.pop %v2628
    %v2636 = vxor.u32 %v2628, 2147483648
    %v2637 = vmul.f32 %v2636, 1.442695
    %v2638 = vpow.pop %v2637
    %v2639 = vadd.f32 %v2638, 1.0
    %v2640 = vrcp.pop %v2639
    %v2641 = vmul.f32 1.0, %v2640
    %v2642 = vmul.f32 %v2634, %v2571
    %v2643 = vmul.f32 %v2634, %v2635
    %2645 = vrot.lane.b32.xlu0 %v2643, 64
    %v2646 = vpop.permute.xlu0 %2645
    %v2648 = vadd.f32 %v2642, %v2646
    %v2649 = vtanh.pop %v2648
    %v2650 = vmul.f32 %v2641, %v2649
    %v2651 = vld [vmem:[%s4] sm:$0xff]
    %v2652 = vld [vmem:[%s4 + $0x8] sm:$0xff]
    %v2653 = vld [vmem:[%s4 + $0x10] sm:$0xff]
    %v2654 = vld [vmem:[%s4 + $0x18] sm:$0xff]
    %v2655 = vld [vmem:[%s4 + $0x20] sm:$0xff]
    %v2656 = vld [vmem:[%s4 + $0x28] sm:$0xff]
    %v2657 = vld [vmem:[%s4 + $0x30] sm:$0xff]
    %v2658 = vld [vmem:[%s4 + $0x38] sm:$0xff]
    %v2659 = vld [vmem:[%s5] sm:$0x1]
    %v2661 = vlaneseq
    %v2662 = vshrl.u32 %v2661, 7
    %v2663 = vsub.s32 0, %v2662
    %v2664 = vrot.slane %v2659, %v2663
    %2667 = vrot.lane.b32.xlu0 %v2650, 64
    %v2668 = vpop.permute.xlu0 %2667
    %v2669 = vsel %vm503, %v2668, 0
    %2671 = vmatprep.subr.mxu0 0.0
    %2672 = vmatpush1.msra.mxu0 %v2651
    %2673 = vmatprep.subr.mxu0 0.0
    %2674 = vmatpush1.msra.mxu0 %v2652
    %2675 = vmatprep.subr.mxu0 0.0
    %2676 = vmatpush1.msra.mxu0 %v2653
    %2677 = vmatprep.subr.mxu0 0.0
    %2678 = vmatpush1.msra.mxu0 %v2654
    %2679 = vmatprep.subr.mxu0 0.0
    %2680 = vmatpush1.msra.mxu0 %v2655
    %2681 = vmatprep.subr.mxu0 0.0
    %2682 = vmatpush1.msra.mxu0 %v2656
    %2683 = vmatprep.subr.mxu0 0.0
    %2684 = vmatpush1.msra.mxu0 %v2657
    %2685 = vmatprep.subr.mxu0 0.0
    %2686 = vmatpush1.msra.mxu0 %v2658
    %2687 = vmatprep.subr.mxu0 0.0
    %2688 = vmatpush1.msra.mxu0 0.0
    %2689 = vmatprep.subr.mxu0 0.0
    %2690 = vmatpush1.msra.mxu0 0.0
    %2691 = vmatprep.subr.mxu0 0.0
    %2692 = vmatpush1.msra.mxu0 0.0
    %2693 = vmatprep.subr.mxu0 0.0
    %2694 = vmatpush1.msra.mxu0 0.0
    %2695 = vmatprep.subr.mxu0 0.0
    %2696 = vmatpush1.msra.mxu0 0.0
    %2697 = vmatprep.subr.mxu0 0.0
    %2698 = vmatpush1.msra.mxu0 0.0
    %2699 = vmatprep.subr.mxu0 0.0
    %2700 = vmatpush1.msra.mxu0 0.0
    %2701 = vmatprep.subr.mxu0 0.0
    %2702 = vmatpush1.msra.mxu0 0.0
    %2703 = vmatprep.subr.mxu0 0.0
    %2704 = vmatpush1.msra.mxu0 0.0
    %2705 = vmatprep.subr.mxu0 0.0
    %2706 = vmatpush1.msra.mxu0 0.0
    %2707 = vmatprep.subr.mxu0 0.0
    %2708 = vmatpush1.msra.mxu0 0.0
    %2709 = vmatprep.subr.mxu0 0.0
    %2710 = vmatpush1.msra.mxu0 0.0
    %2711 = vmatprep.subr.mxu0 0.0
    %2712 = vmatpush1.msra.mxu0 0.0
    %2713 = vmatprep.subr.mxu0 0.0
    %2714 = vmatpush1.msra.mxu0 0.0
    %2715 = vmatprep.subr.mxu0 0.0
    %2716 = vmatpush1.msra.mxu0 0.0
    %2717 = vmatprep.subr.mxu0 0.0
    %2718 = vmatpush1.msra.mxu0 0.0
    %2719 = vmatprep.subr.mxu0 0.0
    %2720 = vmatpush1.msra.mxu0 0.0
    %2721 = vmatprep.subr.mxu0 0.0
    %2722 = vmatpush1.msra.mxu0 0.0
    %2723 = vmatprep.subr.mxu0 0.0
    %2724 = vmatpush1.msra.mxu0 0.0
    %2725 = vmatprep.subr.mxu0 0.0
    %2726 = vmatpush1.msra.mxu0 0.0
    %2727 = vmatprep.subr.mxu0 0.0
    %2728 = vmatpush1.msra.mxu0 0.0
    %2729 = vmatprep.subr.mxu0 0.0
    %2730 = vmatpush1.msra.mxu0 0.0
    %2731 = vmatprep.subr.mxu0 0.0
    %2732 = vmatpush1.msra.mxu0 0.0
    %2733 = vmatprep.subr.mxu0 0.0
    %2734 = vmatpush1.msra.mxu0 0.0
    %2735 = vmatprep.mubr.f32.mxu0 0.0
    %2736 = vmatmul.mubr.f32.gmra.mrb[0].mxu0 %v2669
    %v2737 = vpop.f32.mrb[0].mxu0
    %v2738 = vadd.f32 %v2664, %v2737
    %v2739 = vpop.f32.mrb[0].mxu0
    %2740 = vdwg.mxu0
    %2741 = vst [vmem:[#allocation6] sm:$0xff] %v2738
    // Predicated region
    $region30: #{tpu_custom_call.1} parent=1 // pred_check
      _
    $region31: #{tpu_custom_call.1} parent=1 // pred_check_branch
      %2743 = sbr.rel (0) target = $region33
    $region32: #{tpu_custom_call.1} parent=1 // pred_region
      %s2745 = ssub.s32 128, 128
      %2746 = vsyncadd [#allocation5], %s2745
      %s2748 = sshll.u32 [#allocation6], 4
      %s2749 = int_to_ptr.vmem [resolvable:$true] %s2748
      %2751 = dma.vmem_to_hbm [thread:$0]  %s2749, 128, %s6, [#allocation5]
    $region33: #{tpu_custom_call.1} parent=1 // pred_fallthru
      _
    // Predicated region
    $region34: #{tpu_custom_call.1} parent=1 // pred_check
      _
    $region35: #{tpu_custom_call.1} parent=1 // pred_check_branch
      %2753 = sbr.rel (0) target = $region37
    $region36: #{tpu_custom_call.1} parent=1 // pred_region
      %2754 = dma.done [#allocation5], 128
    $region37: #{tpu_custom_call.1} parent=1 // pred_fallthru
      _
    %2755 = vsyncpa [#allocation4], 1
    %2756 = vsyncpa [#allocation5], 1

</llo_original>
